<compile_context>
chip_gen: v7x
topology: tpu7x:2x2x1
jax: 0.10.0
libtpu: 0.0.40
codegen_flags: <defaults>
</compile_context>

<pallas_src>
import jax
import jax.numpy as jnp
from jax.experimental import pallas as pl
from jax.experimental.pallas import tpu as pltpu


def make_lstm_kernel(L, T, Bp, H):
    """Build a Pallas kernel for an L-layer LSTM + linear head.

    Kernel ref order:
      inputs : seqlen (Bp,1) i32, x (T*Bp, E) f32 (time-major, row = t*Bp + b),
               w_ih[0..L-1] (in_dim,4H), w_hh[0..L-1] (H,4H), b[0..L-1] (1,4H),
               w_lin (2*H*L, out_dim), b_lin (1, out_dim)
      outputs: out (Bp, out_dim)
    """

    def kernel(*refs):
        seqlen_ref = refs[0]
        x_ref = refs[1]
        w_ih = refs[2:2 + L]
        w_hh = refs[2 + L:2 + 2 * L]
        bias = refs[2 + 2 * L:2 + 3 * L]
        w_lin_ref = refs[2 + 3 * L]
        b_lin_ref = refs[3 + 3 * L]
        out_ref = refs[4 + 3 * L]

        # Hoisted loop invariants: per-timestep "sequence still active" masks,
        # shared by every layer (computed once, not L*T times).
        seqlen = seqlen_ref[...]                          # (Bp, 1) int32
        masks = [t < seqlen for t in range(T)]            # T x (Bp, 1) bool

        h_finals = []
        c_finals = []
        src = x_ref[...]                                   # (T*Bp, in_dim)

        for l in range(L):
            # Per-layer invariant loads (hoisted out of the time loop).
            w_ih_l = w_ih[l][...]                          # (in_dim, 4H)
            w_hh_l = w_hh[l][...]                          # (H, 4H)
            b_l = bias[l][...]                             # (1, 4H)

            # Batched input-to-hidden projection for ALL timesteps at once,
            # off the serial recurrence path.
            gates_in = jnp.dot(src, w_ih_l,
                               preferred_element_type=jnp.float32) + b_l  # (T*Bp, 4H)

            # Recurrence: h/c live in vregs; time loop fully unrolled (T static).
            h = jnp.zeros((Bp, H), jnp.float32)
            c = jnp.zeros((Bp, H), jnp.float32)
            h_seq = []
            last_layer = (l == L - 1)
            for t in range(T):
                # Bp is a multiple of 8 -> this slice is sublane/vreg aligned.
                g = gates_in[t * Bp:(t + 1) * Bp, :] + jnp.dot(
                    h, w_hh_l, preferred_element_type=jnp.float32)   # (Bp, 4H)
                # PyTorch gate order: i, f, g, o
                i_g = jax.nn.sigmoid(g[:, 0 * H:1 * H])
                f_g = jax.nn.sigmoid(g[:, 1 * H:2 * H])
                g_g = jnp.tanh(g[:, 2 * H:3 * H])
                o_g = jax.nn.sigmoid(g[:, 3 * H:4 * H])
                c_new = f_g * c + i_g * g_g
                h_new = o_g * jnp.tanh(c_new)
                # packed-sequence semantics: freeze state once the sequence ends
                h = jnp.where(masks[t], h_new, h)
                c = jnp.where(masks[t], c_new, c)
                if not last_layer:
                    h_seq.append(h)
            if not last_layer:
                # Next layer's input sequence, assembled in registers
                # (sublane-aligned concat, no VMEM scratch round-trip).
                src = jnp.concatenate(h_seq, axis=0)       # (T*Bp, H)
            h_finals.append(h)
            c_finals.append(c)

        # Epilogue: torch.cat((hn[0..L-1], cn[0..L-1]), dim=1) @ W_lin^T + b_lin
        # expressed as a sum of sublane-aligned row-sliced matmuls (no lane
        # concatenation of 32-wide pieces).
        acc = jnp.dot(h_finals[0], w_lin_ref[0:H, :],
                      preferred_element_type=jnp.float32)
        for l in range(1, L):
            acc = acc + jnp.dot(h_finals[l],
                                w_lin_ref[l * H:(l + 1) * H, :],
                                preferred_element_type=jnp.float32)
        for l in range(L):
            acc = acc + jnp.dot(c_finals[l],
                                w_lin_ref[(L + l) * H:(L + l + 1) * H, :],
                                preferred_element_type=jnp.float32)
        out_ref[...] = acc + b_lin_ref[...]

    return kernel


def lstm_rnn_forward(sentence, seq_length, params):
    embed_table = params["embedding"]                       # (V, E)
    # Embedding lookup is a gather -> plain-JAX glue (not a rectangular DMA).
    x = jnp.take(embed_table, sentence, axis=0)             # (B, T, E)
    B, T, E = x.shape
    H = params["hidden_dim"]
    L = params["num_layers"]
    out_dim = params["b_lin"].shape[1]

    # Pad batch to a sublane multiple (8) so all per-timestep slices in the
    # kernel are vreg-aligned; padded rows get seq_length = 0 (state stays 0).
    Bp = ((B + 7) // 8) * 8
    xt = jnp.transpose(x, (1, 0, 2)).astype(jnp.float32)    # (T, B, E) time-major
    seqlen = seq_length.astype(jnp.int32).reshape(B, 1)
    if Bp != B:
        xt = jnp.pad(xt, ((0, 0), (0, Bp - B), (0, 0)))
        seqlen = jnp.pad(seqlen, ((0, Bp - B), (0, 0)))
    x2d = xt.reshape(T * Bp, E)                              # row index = t*Bp + b

    inputs = [seqlen, x2d]
    inputs += [params["w_ih"][l] for l in range(L)]          # (in_dim, 4H)
    inputs += [params["w_hh"][l] for l in range(L)]          # (H, 4H)
    inputs += [params["b"][l] for l in range(L)]             # (1, 4H)
    inputs += [params["w_lin"], params["b_lin"]]             # (2*H*L,out),(1,out)

    vmem = pl.BlockSpec(memory_space=pltpu.MemorySpace.VMEM)
    out = pl.pallas_call(
        make_lstm_kernel(L, T, Bp, H),
        out_shape=jax.ShapeDtypeStruct((Bp, out_dim), jnp.float32),
        in_specs=[vmem] * len(inputs),
        out_specs=vmem,
    )(*inputs)
    return out[:B]


def reference_forward(sentence, seq_length, params):
    """Pure-JAX reference with identical semantics (for verification)."""
    x = jnp.take(params["embedding"], sentence, axis=0).astype(jnp.float32)
    B, T, _ = x.shape
    H = params["hidden_dim"]
    L = params["num_layers"]
    h = jnp.zeros((L, B, H), jnp.float32)
    c = jnp.zeros((L, B, H), jnp.float32)
    for t in range(T):
        mask = (t < seq_length)[:, None]
        inp = x[:, t, :]
        new_h, new_c = [], []
        for l in range(L):
            gates = inp @ params["w_ih"][l] + h[l] @ params["w_hh"][l] + params["b"][l]
            i_g = jax.nn.sigmoid(gates[:, :H])
            f_g = jax.nn.sigmoid(gates[:, H:2 * H])
            g_g = jnp.tanh(gates[:, 2 * H:3 * H])
            o_g = jax.nn.sigmoid(gates[:, 3 * H:])
            c_n = f_g * c[l] + i_g * g_g
            h_n = o_g * jnp.tanh(c_n)
            h_u = jnp.where(mask, h_n, h[l])
            c_u = jnp.where(mask, c_n, c[l])
            new_h.append(h_u)
            new_c.append(c_u)
            inp = h_u
        h = jnp.stack(new_h)
        c = jnp.stack(new_c)
    feat = jnp.concatenate([h[l] for l in range(L)] + [c[l] for l in range(L)], axis=1)
    return feat @ params["w_lin"] + params["b_lin"]


def init_params(key, vocab_size, embedding_dim, hidden_dim, num_layers, out_dim=1024):
    keys = jax.random.split(key, 4 + 6 * num_layers)
    k = iter(keys)
    scale_lstm = 1.0 / jnp.sqrt(hidden_dim)
    params = {
        "hidden_dim": hidden_dim,
        "num_layers": num_layers,
        "embedding": jax.random.normal(next(k), (vocab_size, embedding_dim),
                                       jnp.float32),
        "w_ih": [], "w_hh": [], "b": [],
    }
    for l in range(num_layers):
        in_dim = embedding_dim if l == 0 else hidden_dim
        # stored pre-transposed: (in_dim, 4H) / (H, 4H)
        params["w_ih"].append(jax.random.uniform(
            next(k), (in_dim, 4 * hidden_dim), jnp.float32,
            -scale_lstm, scale_lstm))
        params["w_hh"].append(jax.random.uniform(
            next(k), (hidden_dim, 4 * hidden_dim), jnp.float32,
            -scale_lstm, scale_lstm))
        b_ih = jax.random.uniform(next(k), (4 * hidden_dim,), jnp.float32,
                                  -scale_lstm, scale_lstm)
        b_hh = jax.random.uniform(next(k), (4 * hidden_dim,), jnp.float32,
                                  -scale_lstm, scale_lstm)
        params["b"].append((b_ih + b_hh).reshape(1, 4 * hidden_dim))
    feat_dim = 2 * hidden_dim * num_layers
    scale_lin = 1.0 / jnp.sqrt(feat_dim)
    params["w_lin"] = jax.random.uniform(next(k), (feat_dim, out_dim), jnp.float32,
                                         -scale_lin, scale_lin)
    params["b_lin"] = jax.random.uniform(next(k), (1, out_dim), jnp.float32,
                                         -scale_lin, scale_lin)
    return params


if __name__ == "__main__":
    # Small shapes consistent with the module:
    B, T = 4, 8
    vocab_size, embedding_dim, hidden_dim, num_layers = 50, 16, 32, 2

    key = jax.random.PRNGKey(0)
    k_param, k_sent = jax.random.split(key)
    params = init_params(k_param, vocab_size, embedding_dim, hidden_dim, num_layers)

    sentence = jax.random.randint(k_sent, (B, T), 0, vocab_size, dtype=jnp.int32)
    # pack_padded_sequence expects descending lengths
    seq_length = jnp.array([8, 6, 5, 3], dtype=jnp.int32)

    out = lstm_rnn_forward(sentence, seq_length, params)
    out = jax.block_until_ready(out)

    ref = jax.block_until_ready(reference_forward(sentence, seq_length, params))
    assert out.shape == (B, 1024)
    assert jnp.allclose(out, ref, atol=1e-3, rtol=1e-3), "mismatch vs reference"

    print("KERNEL_OK")
</pallas_src>

<mosaic_0001>
module attributes {stable_mosaic.version = 11 : i64} {
  func.func @kernel(%arg0: memref<8x1xi32, #tpu.memory_space<vmem>>, %arg1: memref<64x16xf32, #tpu.memory_space<vmem>>, %arg2: memref<16x128xf32, #tpu.memory_space<vmem>>, %arg3: memref<32x128xf32, #tpu.memory_space<vmem>>, %arg4: memref<32x128xf32, #tpu.memory_space<vmem>>, %arg5: memref<32x128xf32, #tpu.memory_space<vmem>>, %arg6: memref<1x128xf32, #tpu.memory_space<vmem>>, %arg7: memref<1x128xf32, #tpu.memory_space<vmem>>, %arg8: memref<128x1024xf32, #tpu.memory_space<vmem>>, %arg9: memref<1x1024xf32, #tpu.memory_space<vmem>>, %arg10: memref<8x1024xf32, #tpu.memory_space<vmem>>) attributes {dimension_semantics = [], scalar_prefetch = 0 : i64, scratch_operands = 0 : i64, tpu.core_type = #tpu.core_type<tc>} {
    %c0 = arith.constant 0 : index
    %c0_0 = arith.constant 0 : index
    %0 = vector.load %arg0[%c0, %c0_0] : memref<8x1xi32, #tpu.memory_space<vmem>>, vector<8x1xi32>
    %c0_i32 = arith.constant 0 : i32
    %1 = vector.broadcast %c0_i32 : i32 to vector<8x1xi32>
    %2 = arith.cmpi sgt, %0, %1 : vector<8x1xi32>
    %c1_i32 = arith.constant 1 : i32
    %3 = vector.broadcast %c1_i32 : i32 to vector<8x1xi32>
    %4 = arith.cmpi sgt, %0, %3 : vector<8x1xi32>
    %c2_i32 = arith.constant 2 : i32
    %5 = vector.broadcast %c2_i32 : i32 to vector<8x1xi32>
    %6 = arith.cmpi sgt, %0, %5 : vector<8x1xi32>
    %c3_i32 = arith.constant 3 : i32
    %7 = vector.broadcast %c3_i32 : i32 to vector<8x1xi32>
    %8 = arith.cmpi sgt, %0, %7 : vector<8x1xi32>
    %c4_i32 = arith.constant 4 : i32
    %9 = vector.broadcast %c4_i32 : i32 to vector<8x1xi32>
    %10 = arith.cmpi sgt, %0, %9 : vector<8x1xi32>
    %c5_i32 = arith.constant 5 : i32
    %11 = vector.broadcast %c5_i32 : i32 to vector<8x1xi32>
    %12 = arith.cmpi sgt, %0, %11 : vector<8x1xi32>
    %c6_i32 = arith.constant 6 : i32
    %13 = vector.broadcast %c6_i32 : i32 to vector<8x1xi32>
    %14 = arith.cmpi sgt, %0, %13 : vector<8x1xi32>
    %c7_i32 = arith.constant 7 : i32
    %15 = vector.broadcast %c7_i32 : i32 to vector<8x1xi32>
    %16 = arith.cmpi sgt, %0, %15 : vector<8x1xi32>
    %c0_1 = arith.constant 0 : index
    %c0_2 = arith.constant 0 : index
    %17 = vector.load %arg1[%c0_1, %c0_2] : memref<64x16xf32, #tpu.memory_space<vmem>>, vector<64x16xf32>
    %c0_3 = arith.constant 0 : index
    %c0_4 = arith.constant 0 : index
    %18 = vector.load %arg2[%c0_3, %c0_4] : memref<16x128xf32, #tpu.memory_space<vmem>>, vector<16x128xf32>
    %c0_5 = arith.constant 0 : index
    %c0_6 = arith.constant 0 : index
    %19 = vector.load %arg4[%c0_5, %c0_6] : memref<32x128xf32, #tpu.memory_space<vmem>>, vector<32x128xf32>
    %c0_7 = arith.constant 0 : index
    %c0_8 = arith.constant 0 : index
    %20 = vector.load %arg6[%c0_7, %c0_8] : memref<1x128xf32, #tpu.memory_space<vmem>>, vector<1x128xf32>
    %cst = arith.constant dense<0.000000e+00> : vector<64x128xf32>
    %21 = tpu.matmul %17, %18, %cst {dimension_numbers = #tpu.dot_dimension_numbers<[1], [0], [0], [1], [0, 0, 1, 1], [], []>} : vector<64x16xf32>, vector<16x128xf32>, vector<64x128xf32> -> vector<64x128xf32>
    %22 = vector.broadcast %20 : vector<1x128xf32> to vector<64x128xf32>
    %23 = arith.addf %21, %22 : vector<64x128xf32>
    %cst_9 = arith.constant 0.000000e+00 : f32
    %24 = vector.broadcast %cst_9 : f32 to vector<8x32xf32>
    %cst_10 = arith.constant 0.000000e+00 : f32
    %25 = vector.broadcast %cst_10 : f32 to vector<8x32xf32>
    %26 = vector.extract_strided_slice %23 {offsets = [0, 0], sizes = [8, 128], strides = [1, 1]} : vector<64x128xf32> to vector<8x128xf32>
    %cst_11 = arith.constant dense<0.000000e+00> : vector<8x128xf32>
    %27 = tpu.matmul %24, %19, %cst_11 {dimension_numbers = #tpu.dot_dimension_numbers<[1], [0], [0], [1], [0, 0, 1, 1], [], []>} : vector<8x32xf32>, vector<32x128xf32>, vector<8x128xf32> -> vector<8x128xf32>
    %28 = arith.addf %26, %27 : vector<8x128xf32>
    %29 = vector.extract_strided_slice %28 {offsets = [0, 0], sizes = [8, 32], strides = [1, 1]} : vector<8x128xf32> to vector<8x32xf32>
    %30 = arith.negf %29 : vector<8x32xf32>
    %31 = math.exp %30 : vector<8x32xf32>
    %cst_12 = arith.constant 1.000000e+00 : f32
    %32 = vector.broadcast %cst_12 : f32 to vector<8x32xf32>
    %33 = arith.addf %32, %31 : vector<8x32xf32>
    %34 = arith.divf %32, %33 : vector<8x32xf32>
    %35 = vector.extract_strided_slice %28 {offsets = [0, 32], sizes = [8, 32], strides = [1, 1]} : vector<8x128xf32> to vector<8x32xf32>
    %36 = arith.negf %35 : vector<8x32xf32>
    %37 = math.exp %36 : vector<8x32xf32>
    %cst_13 = arith.constant 1.000000e+00 : f32
    %38 = vector.broadcast %cst_13 : f32 to vector<8x32xf32>
    %39 = arith.addf %38, %37 : vector<8x32xf32>
    %40 = arith.divf %38, %39 : vector<8x32xf32>
    %41 = vector.extract_strided_slice %28 {offsets = [0, 64], sizes = [8, 32], strides = [1, 1]} : vector<8x128xf32> to vector<8x32xf32>
    %42 = math.tanh %41 : vector<8x32xf32>
    %43 = vector.extract_strided_slice %28 {offsets = [0, 96], sizes = [8, 32], strides = [1, 1]} : vector<8x128xf32> to vector<8x32xf32>
    %44 = arith.negf %43 : vector<8x32xf32>
    %45 = math.exp %44 : vector<8x32xf32>
    %cst_14 = arith.constant 1.000000e+00 : f32
    %46 = vector.broadcast %cst_14 : f32 to vector<8x32xf32>
    %47 = arith.addf %46, %45 : vector<8x32xf32>
    %48 = arith.divf %46, %47 : vector<8x32xf32>
    %49 = arith.mulf %40, %25 : vector<8x32xf32>
    %50 = arith.mulf %34, %42 : vector<8x32xf32>
    %51 = arith.addf %49, %50 : vector<8x32xf32>
    %52 = math.tanh %51 : vector<8x32xf32>
    %53 = arith.mulf %48, %52 : vector<8x32xf32>
    %54 = vector.shape_cast %2 : vector<8x1xi1> to vector<8x1xi1>
    %55 = vector.broadcast %54 : vector<8x1xi1> to vector<8x32xi1>
    %56 = arith.select %55, %53, %24 : vector<8x32xi1>, vector<8x32xf32>
    %57 = vector.shape_cast %2 : vector<8x1xi1> to vector<8x1xi1>
    %58 = vector.broadcast %57 : vector<8x1xi1> to vector<8x32xi1>
    %59 = arith.select %58, %51, %25 : vector<8x32xi1>, vector<8x32xf32>
    %60 = vector.extract_strided_slice %23 {offsets = [8, 0], sizes = [8, 128], strides = [1, 1]} : vector<64x128xf32> to vector<8x128xf32>
    %cst_15 = arith.constant dense<0.000000e+00> : vector<8x128xf32>
    %61 = tpu.matmul %56, %19, %cst_15 {dimension_numbers = #tpu.dot_dimension_numbers<[1], [0], [0], [1], [0, 0, 1, 1], [], []>} : vector<8x32xf32>, vector<32x128xf32>, vector<8x128xf32> -> vector<8x128xf32>
    %62 = arith.addf %60, %61 : vector<8x128xf32>
    %63 = vector.extract_strided_slice %62 {offsets = [0, 0], sizes = [8, 32], strides = [1, 1]} : vector<8x128xf32> to vector<8x32xf32>
    %64 = arith.negf %63 : vector<8x32xf32>
    %65 = math.exp %64 : vector<8x32xf32>
    %cst_16 = arith.constant 1.000000e+00 : f32
    %66 = vector.broadcast %cst_16 : f32 to vector<8x32xf32>
    %67 = arith.addf %66, %65 : vector<8x32xf32>
    %68 = arith.divf %66, %67 : vector<8x32xf32>
    %69 = vector.extract_strided_slice %62 {offsets = [0, 32], sizes = [8, 32], strides = [1, 1]} : vector<8x128xf32> to vector<8x32xf32>
    %70 = arith.negf %69 : vector<8x32xf32>
    %71 = math.exp %70 : vector<8x32xf32>
    %cst_17 = arith.constant 1.000000e+00 : f32
    %72 = vector.broadcast %cst_17 : f32 to vector<8x32xf32>
    %73 = arith.addf %72, %71 : vector<8x32xf32>
    %74 = arith.divf %72, %73 : vector<8x32xf32>
    %75 = vector.extract_strided_slice %62 {offsets = [0, 64], sizes = [8, 32], strides = [1, 1]} : vector<8x128xf32> to vector<8x32xf32>
    %76 = math.tanh %75 : vector<8x32xf32>
    %77 = vector.extract_strided_slice %62 {offsets = [0, 96], sizes = [8, 32], strides = [1, 1]} : vector<8x128xf32> to vector<8x32xf32>
    %78 = arith.negf %77 : vector<8x32xf32>
    %79 = math.exp %78 : vector<8x32xf32>
    %cst_18 = arith.constant 1.000000e+00 : f32
    %80 = vector.broadcast %cst_18 : f32 to vector<8x32xf32>
    %81 = arith.addf %80, %79 : vector<8x32xf32>
    %82 = arith.divf %80, %81 : vector<8x32xf32>
    %83 = arith.mulf %74, %59 : vector<8x32xf32>
    %84 = arith.mulf %68, %76 : vector<8x32xf32>
    %85 = arith.addf %83, %84 : vector<8x32xf32>
    %86 = math.tanh %85 : vector<8x32xf32>
    %87 = arith.mulf %82, %86 : vector<8x32xf32>
    %88 = vector.shape_cast %4 : vector<8x1xi1> to vector<8x1xi1>
    %89 = vector.broadcast %88 : vector<8x1xi1> to vector<8x32xi1>
    %90 = arith.select %89, %87, %56 : vector<8x32xi1>, vector<8x32xf32>
    %91 = vector.shape_cast %4 : vector<8x1xi1> to vector<8x1xi1>
    %92 = vector.broadcast %91 : vector<8x1xi1> to vector<8x32xi1>
    %93 = arith.select %92, %85, %59 : vector<8x32xi1>, vector<8x32xf32>
    %94 = vector.extract_strided_slice %23 {offsets = [16, 0], sizes = [8, 128], strides = [1, 1]} : vector<64x128xf32> to vector<8x128xf32>
    %cst_19 = arith.constant dense<0.000000e+00> : vector<8x128xf32>
    %95 = tpu.matmul %90, %19, %cst_19 {dimension_numbers = #tpu.dot_dimension_numbers<[1], [0], [0], [1], [0, 0, 1, 1], [], []>} : vector<8x32xf32>, vector<32x128xf32>, vector<8x128xf32> -> vector<8x128xf32>
    %96 = arith.addf %94, %95 : vector<8x128xf32>
    %97 = vector.extract_strided_slice %96 {offsets = [0, 0], sizes = [8, 32], strides = [1, 1]} : vector<8x128xf32> to vector<8x32xf32>
    %98 = arith.negf %97 : vector<8x32xf32>
    %99 = math.exp %98 : vector<8x32xf32>
    %cst_20 = arith.constant 1.000000e+00 : f32
    %100 = vector.broadcast %cst_20 : f32 to vector<8x32xf32>
    %101 = arith.addf %100, %99 : vector<8x32xf32>
    %102 = arith.divf %100, %101 : vector<8x32xf32>
    %103 = vector.extract_strided_slice %96 {offsets = [0, 32], sizes = [8, 32], strides = [1, 1]} : vector<8x128xf32> to vector<8x32xf32>
    %104 = arith.negf %103 : vector<8x32xf32>
    %105 = math.exp %104 : vector<8x32xf32>
    %cst_21 = arith.constant 1.000000e+00 : f32
    %106 = vector.broadcast %cst_21 : f32 to vector<8x32xf32>
    %107 = arith.addf %106, %105 : vector<8x32xf32>
    %108 = arith.divf %106, %107 : vector<8x32xf32>
    %109 = vector.extract_strided_slice %96 {offsets = [0, 64], sizes = [8, 32], strides = [1, 1]} : vector<8x128xf32> to vector<8x32xf32>
    %110 = math.tanh %109 : vector<8x32xf32>
    %111 = vector.extract_strided_slice %96 {offsets = [0, 96], sizes = [8, 32], strides = [1, 1]} : vector<8x128xf32> to vector<8x32xf32>
    %112 = arith.negf %111 : vector<8x32xf32>
    %113 = math.exp %112 : vector<8x32xf32>
    %cst_22 = arith.constant 1.000000e+00 : f32
    %114 = vector.broadcast %cst_22 : f32 to vector<8x32xf32>
    %115 = arith.addf %114, %113 : vector<8x32xf32>
    %116 = arith.divf %114, %115 : vector<8x32xf32>
    %117 = arith.mulf %108, %93 : vector<8x32xf32>
    %118 = arith.mulf %102, %110 : vector<8x32xf32>
    %119 = arith.addf %117, %118 : vector<8x32xf32>
    %120 = math.tanh %119 : vector<8x32xf32>
    %121 = arith.mulf %116, %120 : vector<8x32xf32>
    %122 = vector.shape_cast %6 : vector<8x1xi1> to vector<8x1xi1>
    %123 = vector.broadcast %122 : vector<8x1xi1> to vector<8x32xi1>
    %124 = arith.select %123, %121, %90 : vector<8x32xi1>, vector<8x32xf32>
    %125 = vector.shape_cast %6 : vector<8x1xi1> to vector<8x1xi1>
    %126 = vector.broadcast %125 : vector<8x1xi1> to vector<8x32xi1>
    %127 = arith.select %126, %119, %93 : vector<8x32xi1>, vector<8x32xf32>
    %128 = vector.extract_strided_slice %23 {offsets = [24, 0], sizes = [8, 128], strides = [1, 1]} : vector<64x128xf32> to vector<8x128xf32>
    %cst_23 = arith.constant dense<0.000000e+00> : vector<8x128xf32>
    %129 = tpu.matmul %124, %19, %cst_23 {dimension_numbers = #tpu.dot_dimension_numbers<[1], [0], [0], [1], [0, 0, 1, 1], [], []>} : vector<8x32xf32>, vector<32x128xf32>, vector<8x128xf32> -> vector<8x128xf32>
    %130 = arith.addf %128, %129 : vector<8x128xf32>
    %131 = vector.extract_strided_slice %130 {offsets = [0, 0], sizes = [8, 32], strides = [1, 1]} : vector<8x128xf32> to vector<8x32xf32>
    %132 = arith.negf %131 : vector<8x32xf32>
    %133 = math.exp %132 : vector<8x32xf32>
    %cst_24 = arith.constant 1.000000e+00 : f32
    %134 = vector.broadcast %cst_24 : f32 to vector<8x32xf32>
    %135 = arith.addf %134, %133 : vector<8x32xf32>
    %136 = arith.divf %134, %135 : vector<8x32xf32>
    %137 = vector.extract_strided_slice %130 {offsets = [0, 32], sizes = [8, 32], strides = [1, 1]} : vector<8x128xf32> to vector<8x32xf32>
    %138 = arith.negf %137 : vector<8x32xf32>
    %139 = math.exp %138 : vector<8x32xf32>
    %cst_25 = arith.constant 1.000000e+00 : f32
    %140 = vector.broadcast %cst_25 : f32 to vector<8x32xf32>
    %141 = arith.addf %140, %139 : vector<8x32xf32>
    %142 = arith.divf %140, %141 : vector<8x32xf32>
    %143 = vector.extract_strided_slice %130 {offsets = [0, 64], sizes = [8, 32], strides = [1, 1]} : vector<8x128xf32> to vector<8x32xf32>
    %144 = math.tanh %143 : vector<8x32xf32>
    %145 = vector.extract_strided_slice %130 {offsets = [0, 96], sizes = [8, 32], strides = [1, 1]} : vector<8x128xf32> to vector<8x32xf32>
    %146 = arith.negf %145 : vector<8x32xf32>
    %147 = math.exp %146 : vector<8x32xf32>
    %cst_26 = arith.constant 1.000000e+00 : f32
    %148 = vector.broadcast %cst_26 : f32 to vector<8x32xf32>
    %149 = arith.addf %148, %147 : vector<8x32xf32>
    %150 = arith.divf %148, %149 : vector<8x32xf32>
    %151 = arith.mulf %142, %127 : vector<8x32xf32>
    %152 = arith.mulf %136, %144 : vector<8x32xf32>
    %153 = arith.addf %151, %152 : vector<8x32xf32>
    %154 = math.tanh %153 : vector<8x32xf32>
    %155 = arith.mulf %150, %154 : vector<8x32xf32>
    %156 = vector.shape_cast %8 : vector<8x1xi1> to vector<8x1xi1>
    %157 = vector.broadcast %156 : vector<8x1xi1> to vector<8x32xi1>
    %158 = arith.select %157, %155, %124 : vector<8x32xi1>, vector<8x32xf32>
    %159 = vector.shape_cast %8 : vector<8x1xi1> to vector<8x1xi1>
    %160 = vector.broadcast %159 : vector<8x1xi1> to vector<8x32xi1>
    %161 = arith.select %160, %153, %127 : vector<8x32xi1>, vector<8x32xf32>
    %162 = vector.extract_strided_slice %23 {offsets = [32, 0], sizes = [8, 128], strides = [1, 1]} : vector<64x128xf32> to vector<8x128xf32>
    %cst_27 = arith.constant dense<0.000000e+00> : vector<8x128xf32>
    %163 = tpu.matmul %158, %19, %cst_27 {dimension_numbers = #tpu.dot_dimension_numbers<[1], [0], [0], [1], [0, 0, 1, 1], [], []>} : vector<8x32xf32>, vector<32x128xf32>, vector<8x128xf32> -> vector<8x128xf32>
    %164 = arith.addf %162, %163 : vector<8x128xf32>
    %165 = vector.extract_strided_slice %164 {offsets = [0, 0], sizes = [8, 32], strides = [1, 1]} : vector<8x128xf32> to vector<8x32xf32>
    %166 = arith.negf %165 : vector<8x32xf32>
    %167 = math.exp %166 : vector<8x32xf32>
    %cst_28 = arith.constant 1.000000e+00 : f32
    %168 = vector.broadcast %cst_28 : f32 to vector<8x32xf32>
    %169 = arith.addf %168, %167 : vector<8x32xf32>
    %170 = arith.divf %168, %169 : vector<8x32xf32>
    %171 = vector.extract_strided_slice %164 {offsets = [0, 32], sizes = [8, 32], strides = [1, 1]} : vector<8x128xf32> to vector<8x32xf32>
    %172 = arith.negf %171 : vector<8x32xf32>
    %173 = math.exp %172 : vector<8x32xf32>
    %cst_29 = arith.constant 1.000000e+00 : f32
    %174 = vector.broadcast %cst_29 : f32 to vector<8x32xf32>
    %175 = arith.addf %174, %173 : vector<8x32xf32>
    %176 = arith.divf %174, %175 : vector<8x32xf32>
    %177 = vector.extract_strided_slice %164 {offsets = [0, 64], sizes = [8, 32], strides = [1, 1]} : vector<8x128xf32> to vector<8x32xf32>
    %178 = math.tanh %177 : vector<8x32xf32>
    %179 = vector.extract_strided_slice %164 {offsets = [0, 96], sizes = [8, 32], strides = [1, 1]} : vector<8x128xf32> to vector<8x32xf32>
    %180 = arith.negf %179 : vector<8x32xf32>
    %181 = math.exp %180 : vector<8x32xf32>
    %cst_30 = arith.constant 1.000000e+00 : f32
    %182 = vector.broadcast %cst_30 : f32 to vector<8x32xf32>
    %183 = arith.addf %182, %181 : vector<8x32xf32>
    %184 = arith.divf %182, %183 : vector<8x32xf32>
    %185 = arith.mulf %176, %161 : vector<8x32xf32>
    %186 = arith.mulf %170, %178 : vector<8x32xf32>
    %187 = arith.addf %185, %186 : vector<8x32xf32>
    %188 = math.tanh %187 : vector<8x32xf32>
    %189 = arith.mulf %184, %188 : vector<8x32xf32>
    %190 = vector.shape_cast %10 : vector<8x1xi1> to vector<8x1xi1>
    %191 = vector.broadcast %190 : vector<8x1xi1> to vector<8x32xi1>
    %192 = arith.select %191, %189, %158 : vector<8x32xi1>, vector<8x32xf32>
    %193 = vector.shape_cast %10 : vector<8x1xi1> to vector<8x1xi1>
    %194 = vector.broadcast %193 : vector<8x1xi1> to vector<8x32xi1>
    %195 = arith.select %194, %187, %161 : vector<8x32xi1>, vector<8x32xf32>
    %196 = vector.extract_strided_slice %23 {offsets = [40, 0], sizes = [8, 128], strides = [1, 1]} : vector<64x128xf32> to vector<8x128xf32>
    %cst_31 = arith.constant dense<0.000000e+00> : vector<8x128xf32>
    %197 = tpu.matmul %192, %19, %cst_31 {dimension_numbers = #tpu.dot_dimension_numbers<[1], [0], [0], [1], [0, 0, 1, 1], [], []>} : vector<8x32xf32>, vector<32x128xf32>, vector<8x128xf32> -> vector<8x128xf32>
    %198 = arith.addf %196, %197 : vector<8x128xf32>
    %199 = vector.extract_strided_slice %198 {offsets = [0, 0], sizes = [8, 32], strides = [1, 1]} : vector<8x128xf32> to vector<8x32xf32>
    %200 = arith.negf %199 : vector<8x32xf32>
    %201 = math.exp %200 : vector<8x32xf32>
    %cst_32 = arith.constant 1.000000e+00 : f32
    %202 = vector.broadcast %cst_32 : f32 to vector<8x32xf32>
    %203 = arith.addf %202, %201 : vector<8x32xf32>
    %204 = arith.divf %202, %203 : vector<8x32xf32>
    %205 = vector.extract_strided_slice %198 {offsets = [0, 32], sizes = [8, 32], strides = [1, 1]} : vector<8x128xf32> to vector<8x32xf32>
    %206 = arith.negf %205 : vector<8x32xf32>
    %207 = math.exp %206 : vector<8x32xf32>
    %cst_33 = arith.constant 1.000000e+00 : f32
    %208 = vector.broadcast %cst_33 : f32 to vector<8x32xf32>
    %209 = arith.addf %208, %207 : vector<8x32xf32>
    %210 = arith.divf %208, %209 : vector<8x32xf32>
    %211 = vector.extract_strided_slice %198 {offsets = [0, 64], sizes = [8, 32], strides = [1, 1]} : vector<8x128xf32> to vector<8x32xf32>
    %212 = math.tanh %211 : vector<8x32xf32>
    %213 = vector.extract_strided_slice %198 {offsets = [0, 96], sizes = [8, 32], strides = [1, 1]} : vector<8x128xf32> to vector<8x32xf32>
    %214 = arith.negf %213 : vector<8x32xf32>
    %215 = math.exp %214 : vector<8x32xf32>
    %cst_34 = arith.constant 1.000000e+00 : f32
    %216 = vector.broadcast %cst_34 : f32 to vector<8x32xf32>
    %217 = arith.addf %216, %215 : vector<8x32xf32>
    %218 = arith.divf %216, %217 : vector<8x32xf32>
    %219 = arith.mulf %210, %195 : vector<8x32xf32>
    %220 = arith.mulf %204, %212 : vector<8x32xf32>
    %221 = arith.addf %219, %220 : vector<8x32xf32>
    %222 = math.tanh %221 : vector<8x32xf32>
    %223 = arith.mulf %218, %222 : vector<8x32xf32>
    %224 = vector.shape_cast %12 : vector<8x1xi1> to vector<8x1xi1>
    %225 = vector.broadcast %224 : vector<8x1xi1> to vector<8x32xi1>
    %226 = arith.select %225, %223, %192 : vector<8x32xi1>, vector<8x32xf32>
    %227 = vector.shape_cast %12 : vector<8x1xi1> to vector<8x1xi1>
    %228 = vector.broadcast %227 : vector<8x1xi1> to vector<8x32xi1>
    %229 = arith.select %228, %221, %195 : vector<8x32xi1>, vector<8x32xf32>
    %230 = vector.extract_strided_slice %23 {offsets = [48, 0], sizes = [8, 128], strides = [1, 1]} : vector<64x128xf32> to vector<8x128xf32>
    %cst_35 = arith.constant dense<0.000000e+00> : vector<8x128xf32>
    %231 = tpu.matmul %226, %19, %cst_35 {dimension_numbers = #tpu.dot_dimension_numbers<[1], [0], [0], [1], [0, 0, 1, 1], [], []>} : vector<8x32xf32>, vector<32x128xf32>, vector<8x128xf32> -> vector<8x128xf32>
    %232 = arith.addf %230, %231 : vector<8x128xf32>
    %233 = vector.extract_strided_slice %232 {offsets = [0, 0], sizes = [8, 32], strides = [1, 1]} : vector<8x128xf32> to vector<8x32xf32>
    %234 = arith.negf %233 : vector<8x32xf32>
    %235 = math.exp %234 : vector<8x32xf32>
    %cst_36 = arith.constant 1.000000e+00 : f32
    %236 = vector.broadcast %cst_36 : f32 to vector<8x32xf32>
    %237 = arith.addf %236, %235 : vector<8x32xf32>
    %238 = arith.divf %236, %237 : vector<8x32xf32>
    %239 = vector.extract_strided_slice %232 {offsets = [0, 32], sizes = [8, 32], strides = [1, 1]} : vector<8x128xf32> to vector<8x32xf32>
    %240 = arith.negf %239 : vector<8x32xf32>
    %241 = math.exp %240 : vector<8x32xf32>
    %cst_37 = arith.constant 1.000000e+00 : f32
    %242 = vector.broadcast %cst_37 : f32 to vector<8x32xf32>
    %243 = arith.addf %242, %241 : vector<8x32xf32>
    %244 = arith.divf %242, %243 : vector<8x32xf32>
    %245 = vector.extract_strided_slice %232 {offsets = [0, 64], sizes = [8, 32], strides = [1, 1]} : vector<8x128xf32> to vector<8x32xf32>
    %246 = math.tanh %245 : vector<8x32xf32>
    %247 = vector.extract_strided_slice %232 {offsets = [0, 96], sizes = [8, 32], strides = [1, 1]} : vector<8x128xf32> to vector<8x32xf32>
    %248 = arith.negf %247 : vector<8x32xf32>
    %249 = math.exp %248 : vector<8x32xf32>
    %cst_38 = arith.constant 1.000000e+00 : f32
    %250 = vector.broadcast %cst_38 : f32 to vector<8x32xf32>
    %251 = arith.addf %250, %249 : vector<8x32xf32>
    %252 = arith.divf %250, %251 : vector<8x32xf32>
    %253 = arith.mulf %244, %229 : vector<8x32xf32>
    %254 = arith.mulf %238, %246 : vector<8x32xf32>
    %255 = arith.addf %253, %254 : vector<8x32xf32>
    %256 = math.tanh %255 : vector<8x32xf32>
    %257 = arith.mulf %252, %256 : vector<8x32xf32>
    %258 = vector.shape_cast %14 : vector<8x1xi1> to vector<8x1xi1>
    %259 = vector.broadcast %258 : vector<8x1xi1> to vector<8x32xi1>
    %260 = arith.select %259, %257, %226 : vector<8x32xi1>, vector<8x32xf32>
    %261 = vector.shape_cast %14 : vector<8x1xi1> to vector<8x1xi1>
    %262 = vector.broadcast %261 : vector<8x1xi1> to vector<8x32xi1>
    %263 = arith.select %262, %255, %229 : vector<8x32xi1>, vector<8x32xf32>
    %264 = vector.extract_strided_slice %23 {offsets = [56, 0], sizes = [8, 128], strides = [1, 1]} : vector<64x128xf32> to vector<8x128xf32>
    %cst_39 = arith.constant dense<0.000000e+00> : vector<8x128xf32>
    %265 = tpu.matmul %260, %19, %cst_39 {dimension_numbers = #tpu.dot_dimension_numbers<[1], [0], [0], [1], [0, 0, 1, 1], [], []>} : vector<8x32xf32>, vector<32x128xf32>, vector<8x128xf32> -> vector<8x128xf32>
    %266 = arith.addf %264, %265 : vector<8x128xf32>
    %267 = vector.extract_strided_slice %266 {offsets = [0, 0], sizes = [8, 32], strides = [1, 1]} : vector<8x128xf32> to vector<8x32xf32>
    %268 = arith.negf %267 : vector<8x32xf32>
    %269 = math.exp %268 : vector<8x32xf32>
    %cst_40 = arith.constant 1.000000e+00 : f32
    %270 = vector.broadcast %cst_40 : f32 to vector<8x32xf32>
    %271 = arith.addf %270, %269 : vector<8x32xf32>
    %272 = arith.divf %270, %271 : vector<8x32xf32>
    %273 = vector.extract_strided_slice %266 {offsets = [0, 32], sizes = [8, 32], strides = [1, 1]} : vector<8x128xf32> to vector<8x32xf32>
    %274 = arith.negf %273 : vector<8x32xf32>
    %275 = math.exp %274 : vector<8x32xf32>
    %cst_41 = arith.constant 1.000000e+00 : f32
    %276 = vector.broadcast %cst_41 : f32 to vector<8x32xf32>
    %277 = arith.addf %276, %275 : vector<8x32xf32>
    %278 = arith.divf %276, %277 : vector<8x32xf32>
    %279 = vector.extract_strided_slice %266 {offsets = [0, 64], sizes = [8, 32], strides = [1, 1]} : vector<8x128xf32> to vector<8x32xf32>
    %280 = math.tanh %279 : vector<8x32xf32>
    %281 = vector.extract_strided_slice %266 {offsets = [0, 96], sizes = [8, 32], strides = [1, 1]} : vector<8x128xf32> to vector<8x32xf32>
    %282 = arith.negf %281 : vector<8x32xf32>
    %283 = math.exp %282 : vector<8x32xf32>
    %cst_42 = arith.constant 1.000000e+00 : f32
    %284 = vector.broadcast %cst_42 : f32 to vector<8x32xf32>
    %285 = arith.addf %284, %283 : vector<8x32xf32>
    %286 = arith.divf %284, %285 : vector<8x32xf32>
    %287 = arith.mulf %278, %263 : vector<8x32xf32>
    %288 = arith.mulf %272, %280 : vector<8x32xf32>
    %289 = arith.addf %287, %288 : vector<8x32xf32>
    %290 = math.tanh %289 : vector<8x32xf32>
    %291 = arith.mulf %286, %290 : vector<8x32xf32>
    %292 = vector.shape_cast %16 : vector<8x1xi1> to vector<8x1xi1>
    %293 = vector.broadcast %292 : vector<8x1xi1> to vector<8x32xi1>
    %294 = arith.select %293, %291, %260 : vector<8x32xi1>, vector<8x32xf32>
    %295 = vector.shape_cast %16 : vector<8x1xi1> to vector<8x1xi1>
    %296 = vector.broadcast %295 : vector<8x1xi1> to vector<8x32xi1>
    %297 = arith.select %296, %289, %263 : vector<8x32xi1>, vector<8x32xf32>
    %298 = tpu.concatenate %56, %90, %124, %158, %192, %226, %260, %294 in 0 : vector<8x32xf32>, vector<8x32xf32>, vector<8x32xf32>, vector<8x32xf32>, vector<8x32xf32>, vector<8x32xf32>, vector<8x32xf32>, vector<8x32xf32> -> vector<64x32xf32>
    %c0_43 = arith.constant 0 : index
    %c0_44 = arith.constant 0 : index
    %299 = vector.load %arg3[%c0_43, %c0_44] : memref<32x128xf32, #tpu.memory_space<vmem>>, vector<32x128xf32>
    %c0_45 = arith.constant 0 : index
    %c0_46 = arith.constant 0 : index
    %300 = vector.load %arg5[%c0_45, %c0_46] : memref<32x128xf32, #tpu.memory_space<vmem>>, vector<32x128xf32>
    %c0_47 = arith.constant 0 : index
    %c0_48 = arith.constant 0 : index
    %301 = vector.load %arg7[%c0_47, %c0_48] : memref<1x128xf32, #tpu.memory_space<vmem>>, vector<1x128xf32>
    %cst_49 = arith.constant dense<0.000000e+00> : vector<64x128xf32>
    %302 = tpu.matmul %298, %299, %cst_49 {dimension_numbers = #tpu.dot_dimension_numbers<[1], [0], [0], [1], [0, 0, 1, 1], [], []>} : vector<64x32xf32>, vector<32x128xf32>, vector<64x128xf32> -> vector<64x128xf32>
    %303 = vector.broadcast %301 : vector<1x128xf32> to vector<64x128xf32>
    %304 = arith.addf %302, %303 : vector<64x128xf32>
    %cst_50 = arith.constant 0.000000e+00 : f32
    %305 = vector.broadcast %cst_50 : f32 to vector<8x32xf32>
    %cst_51 = arith.constant 0.000000e+00 : f32
    %306 = vector.broadcast %cst_51 : f32 to vector<8x32xf32>
    %307 = vector.extract_strided_slice %304 {offsets = [0, 0], sizes = [8, 128], strides = [1, 1]} : vector<64x128xf32> to vector<8x128xf32>
    %cst_52 = arith.constant dense<0.000000e+00> : vector<8x128xf32>
    %308 = tpu.matmul %305, %300, %cst_52 {dimension_numbers = #tpu.dot_dimension_numbers<[1], [0], [0], [1], [0, 0, 1, 1], [], []>} : vector<8x32xf32>, vector<32x128xf32>, vector<8x128xf32> -> vector<8x128xf32>
    %309 = arith.addf %307, %308 : vector<8x128xf32>
    %310 = vector.extract_strided_slice %309 {offsets = [0, 0], sizes = [8, 32], strides = [1, 1]} : vector<8x128xf32> to vector<8x32xf32>
    %311 = arith.negf %310 : vector<8x32xf32>
    %312 = math.exp %311 : vector<8x32xf32>
    %cst_53 = arith.constant 1.000000e+00 : f32
    %313 = vector.broadcast %cst_53 : f32 to vector<8x32xf32>
    %314 = arith.addf %313, %312 : vector<8x32xf32>
    %315 = arith.divf %313, %314 : vector<8x32xf32>
    %316 = vector.extract_strided_slice %309 {offsets = [0, 32], sizes = [8, 32], strides = [1, 1]} : vector<8x128xf32> to vector<8x32xf32>
    %317 = arith.negf %316 : vector<8x32xf32>
    %318 = math.exp %317 : vector<8x32xf32>
    %cst_54 = arith.constant 1.000000e+00 : f32
    %319 = vector.broadcast %cst_54 : f32 to vector<8x32xf32>
    %320 = arith.addf %319, %318 : vector<8x32xf32>
    %321 = arith.divf %319, %320 : vector<8x32xf32>
    %322 = vector.extract_strided_slice %309 {offsets = [0, 64], sizes = [8, 32], strides = [1, 1]} : vector<8x128xf32> to vector<8x32xf32>
    %323 = math.tanh %322 : vector<8x32xf32>
    %324 = vector.extract_strided_slice %309 {offsets = [0, 96], sizes = [8, 32], strides = [1, 1]} : vector<8x128xf32> to vector<8x32xf32>
    %325 = arith.negf %324 : vector<8x32xf32>
    %326 = math.exp %325 : vector<8x32xf32>
    %cst_55 = arith.constant 1.000000e+00 : f32
    %327 = vector.broadcast %cst_55 : f32 to vector<8x32xf32>
    %328 = arith.addf %327, %326 : vector<8x32xf32>
    %329 = arith.divf %327, %328 : vector<8x32xf32>
    %330 = arith.mulf %321, %306 : vector<8x32xf32>
    %331 = arith.mulf %315, %323 : vector<8x32xf32>
    %332 = arith.addf %330, %331 : vector<8x32xf32>
    %333 = math.tanh %332 : vector<8x32xf32>
    %334 = arith.mulf %329, %333 : vector<8x32xf32>
    %335 = vector.shape_cast %2 : vector<8x1xi1> to vector<8x1xi1>
    %336 = vector.broadcast %335 : vector<8x1xi1> to vector<8x32xi1>
    %337 = arith.select %336, %334, %305 : vector<8x32xi1>, vector<8x32xf32>
    %338 = vector.shape_cast %2 : vector<8x1xi1> to vector<8x1xi1>
    %339 = vector.broadcast %338 : vector<8x1xi1> to vector<8x32xi1>
    %340 = arith.select %339, %332, %306 : vector<8x32xi1>, vector<8x32xf32>
    %341 = vector.extract_strided_slice %304 {offsets = [8, 0], sizes = [8, 128], strides = [1, 1]} : vector<64x128xf32> to vector<8x128xf32>
    %cst_56 = arith.constant dense<0.000000e+00> : vector<8x128xf32>
    %342 = tpu.matmul %337, %300, %cst_56 {dimension_numbers = #tpu.dot_dimension_numbers<[1], [0], [0], [1], [0, 0, 1, 1], [], []>} : vector<8x32xf32>, vector<32x128xf32>, vector<8x128xf32> -> vector<8x128xf32>
    %343 = arith.addf %341, %342 : vector<8x128xf32>
    %344 = vector.extract_strided_slice %343 {offsets = [0, 0], sizes = [8, 32], strides = [1, 1]} : vector<8x128xf32> to vector<8x32xf32>
    %345 = arith.negf %344 : vector<8x32xf32>
    %346 = math.exp %345 : vector<8x32xf32>
    %cst_57 = arith.constant 1.000000e+00 : f32
    %347 = vector.broadcast %cst_57 : f32 to vector<8x32xf32>
    %348 = arith.addf %347, %346 : vector<8x32xf32>
    %349 = arith.divf %347, %348 : vector<8x32xf32>
    %350 = vector.extract_strided_slice %343 {offsets = [0, 32], sizes = [8, 32], strides = [1, 1]} : vector<8x128xf32> to vector<8x32xf32>
    %351 = arith.negf %350 : vector<8x32xf32>
    %352 = math.exp %351 : vector<8x32xf32>
    %cst_58 = arith.constant 1.000000e+00 : f32
    %353 = vector.broadcast %cst_58 : f32 to vector<8x32xf32>
    %354 = arith.addf %353, %352 : vector<8x32xf32>
    %355 = arith.divf %353, %354 : vector<8x32xf32>
    %356 = vector.extract_strided_slice %343 {offsets = [0, 64], sizes = [8, 32], strides = [1, 1]} : vector<8x128xf32> to vector<8x32xf32>
    %357 = math.tanh %356 : vector<8x32xf32>
    %358 = vector.extract_strided_slice %343 {offsets = [0, 96], sizes = [8, 32], strides = [1, 1]} : vector<8x128xf32> to vector<8x32xf32>
    %359 = arith.negf %358 : vector<8x32xf32>
    %360 = math.exp %359 : vector<8x32xf32>
    %cst_59 = arith.constant 1.000000e+00 : f32
    %361 = vector.broadcast %cst_59 : f32 to vector<8x32xf32>
    %362 = arith.addf %361, %360 : vector<8x32xf32>
    %363 = arith.divf %361, %362 : vector<8x32xf32>
    %364 = arith.mulf %355, %340 : vector<8x32xf32>
    %365 = arith.mulf %349, %357 : vector<8x32xf32>
    %366 = arith.addf %364, %365 : vector<8x32xf32>
    %367 = math.tanh %366 : vector<8x32xf32>
    %368 = arith.mulf %363, %367 : vector<8x32xf32>
    %369 = vector.shape_cast %4 : vector<8x1xi1> to vector<8x1xi1>
    %370 = vector.broadcast %369 : vector<8x1xi1> to vector<8x32xi1>
    %371 = arith.select %370, %368, %337 : vector<8x32xi1>, vector<8x32xf32>
    %372 = vector.shape_cast %4 : vector<8x1xi1> to vector<8x1xi1>
    %373 = vector.broadcast %372 : vector<8x1xi1> to vector<8x32xi1>
    %374 = arith.select %373, %366, %340 : vector<8x32xi1>, vector<8x32xf32>
    %375 = vector.extract_strided_slice %304 {offsets = [16, 0], sizes = [8, 128], strides = [1, 1]} : vector<64x128xf32> to vector<8x128xf32>
    %cst_60 = arith.constant dense<0.000000e+00> : vector<8x128xf32>
    %376 = tpu.matmul %371, %300, %cst_60 {dimension_numbers = #tpu.dot_dimension_numbers<[1], [0], [0], [1], [0, 0, 1, 1], [], []>} : vector<8x32xf32>, vector<32x128xf32>, vector<8x128xf32> -> vector<8x128xf32>
    %377 = arith.addf %375, %376 : vector<8x128xf32>
    %378 = vector.extract_strided_slice %377 {offsets = [0, 0], sizes = [8, 32], strides = [1, 1]} : vector<8x128xf32> to vector<8x32xf32>
    %379 = arith.negf %378 : vector<8x32xf32>
    %380 = math.exp %379 : vector<8x32xf32>
    %cst_61 = arith.constant 1.000000e+00 : f32
    %381 = vector.broadcast %cst_61 : f32 to vector<8x32xf32>
    %382 = arith.addf %381, %380 : vector<8x32xf32>
    %383 = arith.divf %381, %382 : vector<8x32xf32>
    %384 = vector.extract_strided_slice %377 {offsets = [0, 32], sizes = [8, 32], strides = [1, 1]} : vector<8x128xf32> to vector<8x32xf32>
    %385 = arith.negf %384 : vector<8x32xf32>
    %386 = math.exp %385 : vector<8x32xf32>
    %cst_62 = arith.constant 1.000000e+00 : f32
    %387 = vector.broadcast %cst_62 : f32 to vector<8x32xf32>
    %388 = arith.addf %387, %386 : vector<8x32xf32>
    %389 = arith.divf %387, %388 : vector<8x32xf32>
    %390 = vector.extract_strided_slice %377 {offsets = [0, 64], sizes = [8, 32], strides = [1, 1]} : vector<8x128xf32> to vector<8x32xf32>
    %391 = math.tanh %390 : vector<8x32xf32>
    %392 = vector.extract_strided_slice %377 {offsets = [0, 96], sizes = [8, 32], strides = [1, 1]} : vector<8x128xf32> to vector<8x32xf32>
    %393 = arith.negf %392 : vector<8x32xf32>
    %394 = math.exp %393 : vector<8x32xf32>
    %cst_63 = arith.constant 1.000000e+00 : f32
    %395 = vector.broadcast %cst_63 : f32 to vector<8x32xf32>
    %396 = arith.addf %395, %394 : vector<8x32xf32>
    %397 = arith.divf %395, %396 : vector<8x32xf32>
    %398 = arith.mulf %389, %374 : vector<8x32xf32>
    %399 = arith.mulf %383, %391 : vector<8x32xf32>
    %400 = arith.addf %398, %399 : vector<8x32xf32>
    %401 = math.tanh %400 : vector<8x32xf32>
    %402 = arith.mulf %397, %401 : vector<8x32xf32>
    %403 = vector.shape_cast %6 : vector<8x1xi1> to vector<8x1xi1>
    %404 = vector.broadcast %403 : vector<8x1xi1> to vector<8x32xi1>
    %405 = arith.select %404, %402, %371 : vector<8x32xi1>, vector<8x32xf32>
    %406 = vector.shape_cast %6 : vector<8x1xi1> to vector<8x1xi1>
    %407 = vector.broadcast %406 : vector<8x1xi1> to vector<8x32xi1>
    %408 = arith.select %407, %400, %374 : vector<8x32xi1>, vector<8x32xf32>
    %409 = vector.extract_strided_slice %304 {offsets = [24, 0], sizes = [8, 128], strides = [1, 1]} : vector<64x128xf32> to vector<8x128xf32>
    %cst_64 = arith.constant dense<0.000000e+00> : vector<8x128xf32>
    %410 = tpu.matmul %405, %300, %cst_64 {dimension_numbers = #tpu.dot_dimension_numbers<[1], [0], [0], [1], [0, 0, 1, 1], [], []>} : vector<8x32xf32>, vector<32x128xf32>, vector<8x128xf32> -> vector<8x128xf32>
    %411 = arith.addf %409, %410 : vector<8x128xf32>
    %412 = vector.extract_strided_slice %411 {offsets = [0, 0], sizes = [8, 32], strides = [1, 1]} : vector<8x128xf32> to vector<8x32xf32>
    %413 = arith.negf %412 : vector<8x32xf32>
    %414 = math.exp %413 : vector<8x32xf32>
    %cst_65 = arith.constant 1.000000e+00 : f32
    %415 = vector.broadcast %cst_65 : f32 to vector<8x32xf32>
    %416 = arith.addf %415, %414 : vector<8x32xf32>
    %417 = arith.divf %415, %416 : vector<8x32xf32>
    %418 = vector.extract_strided_slice %411 {offsets = [0, 32], sizes = [8, 32], strides = [1, 1]} : vector<8x128xf32> to vector<8x32xf32>
    %419 = arith.negf %418 : vector<8x32xf32>
    %420 = math.exp %419 : vector<8x32xf32>
    %cst_66 = arith.constant 1.000000e+00 : f32
    %421 = vector.broadcast %cst_66 : f32 to vector<8x32xf32>
    %422 = arith.addf %421, %420 : vector<8x32xf32>
    %423 = arith.divf %421, %422 : vector<8x32xf32>
    %424 = vector.extract_strided_slice %411 {offsets = [0, 64], sizes = [8, 32], strides = [1, 1]} : vector<8x128xf32> to vector<8x32xf32>
    %425 = math.tanh %424 : vector<8x32xf32>
    %426 = vector.extract_strided_slice %411 {offsets = [0, 96], sizes = [8, 32], strides = [1, 1]} : vector<8x128xf32> to vector<8x32xf32>
    %427 = arith.negf %426 : vector<8x32xf32>
    %428 = math.exp %427 : vector<8x32xf32>
    %cst_67 = arith.constant 1.000000e+00 : f32
    %429 = vector.broadcast %cst_67 : f32 to vector<8x32xf32>
    %430 = arith.addf %429, %428 : vector<8x32xf32>
    %431 = arith.divf %429, %430 : vector<8x32xf32>
    %432 = arith.mulf %423, %408 : vector<8x32xf32>
    %433 = arith.mulf %417, %425 : vector<8x32xf32>
    %434 = arith.addf %432, %433 : vector<8x32xf32>
    %435 = math.tanh %434 : vector<8x32xf32>
    %436 = arith.mulf %431, %435 : vector<8x32xf32>
    %437 = vector.shape_cast %8 : vector<8x1xi1> to vector<8x1xi1>
    %438 = vector.broadcast %437 : vector<8x1xi1> to vector<8x32xi1>
    %439 = arith.select %438, %436, %405 : vector<8x32xi1>, vector<8x32xf32>
    %440 = vector.shape_cast %8 : vector<8x1xi1> to vector<8x1xi1>
    %441 = vector.broadcast %440 : vector<8x1xi1> to vector<8x32xi1>
    %442 = arith.select %441, %434, %408 : vector<8x32xi1>, vector<8x32xf32>
    %443 = vector.extract_strided_slice %304 {offsets = [32, 0], sizes = [8, 128], strides = [1, 1]} : vector<64x128xf32> to vector<8x128xf32>
    %cst_68 = arith.constant dense<0.000000e+00> : vector<8x128xf32>
    %444 = tpu.matmul %439, %300, %cst_68 {dimension_numbers = #tpu.dot_dimension_numbers<[1], [0], [0], [1], [0, 0, 1, 1], [], []>} : vector<8x32xf32>, vector<32x128xf32>, vector<8x128xf32> -> vector<8x128xf32>
    %445 = arith.addf %443, %444 : vector<8x128xf32>
    %446 = vector.extract_strided_slice %445 {offsets = [0, 0], sizes = [8, 32], strides = [1, 1]} : vector<8x128xf32> to vector<8x32xf32>
    %447 = arith.negf %446 : vector<8x32xf32>
    %448 = math.exp %447 : vector<8x32xf32>
    %cst_69 = arith.constant 1.000000e+00 : f32
    %449 = vector.broadcast %cst_69 : f32 to vector<8x32xf32>
    %450 = arith.addf %449, %448 : vector<8x32xf32>
    %451 = arith.divf %449, %450 : vector<8x32xf32>
    %452 = vector.extract_strided_slice %445 {offsets = [0, 32], sizes = [8, 32], strides = [1, 1]} : vector<8x128xf32> to vector<8x32xf32>
    %453 = arith.negf %452 : vector<8x32xf32>
    %454 = math.exp %453 : vector<8x32xf32>
    %cst_70 = arith.constant 1.000000e+00 : f32
    %455 = vector.broadcast %cst_70 : f32 to vector<8x32xf32>
    %456 = arith.addf %455, %454 : vector<8x32xf32>
    %457 = arith.divf %455, %456 : vector<8x32xf32>
    %458 = vector.extract_strided_slice %445 {offsets = [0, 64], sizes = [8, 32], strides = [1, 1]} : vector<8x128xf32> to vector<8x32xf32>
    %459 = math.tanh %458 : vector<8x32xf32>
    %460 = vector.extract_strided_slice %445 {offsets = [0, 96], sizes = [8, 32], strides = [1, 1]} : vector<8x128xf32> to vector<8x32xf32>
    %461 = arith.negf %460 : vector<8x32xf32>
    %462 = math.exp %461 : vector<8x32xf32>
    %cst_71 = arith.constant 1.000000e+00 : f32
    %463 = vector.broadcast %cst_71 : f32 to vector<8x32xf32>
    %464 = arith.addf %463, %462 : vector<8x32xf32>
    %465 = arith.divf %463, %464 : vector<8x32xf32>
    %466 = arith.mulf %457, %442 : vector<8x32xf32>
    %467 = arith.mulf %451, %459 : vector<8x32xf32>
    %468 = arith.addf %466, %467 : vector<8x32xf32>
    %469 = math.tanh %468 : vector<8x32xf32>
    %470 = arith.mulf %465, %469 : vector<8x32xf32>
    %471 = vector.shape_cast %10 : vector<8x1xi1> to vector<8x1xi1>
    %472 = vector.broadcast %471 : vector<8x1xi1> to vector<8x32xi1>
    %473 = arith.select %472, %470, %439 : vector<8x32xi1>, vector<8x32xf32>
    %474 = vector.shape_cast %10 : vector<8x1xi1> to vector<8x1xi1>
    %475 = vector.broadcast %474 : vector<8x1xi1> to vector<8x32xi1>
    %476 = arith.select %475, %468, %442 : vector<8x32xi1>, vector<8x32xf32>
    %477 = vector.extract_strided_slice %304 {offsets = [40, 0], sizes = [8, 128], strides = [1, 1]} : vector<64x128xf32> to vector<8x128xf32>
    %cst_72 = arith.constant dense<0.000000e+00> : vector<8x128xf32>
    %478 = tpu.matmul %473, %300, %cst_72 {dimension_numbers = #tpu.dot_dimension_numbers<[1], [0], [0], [1], [0, 0, 1, 1], [], []>} : vector<8x32xf32>, vector<32x128xf32>, vector<8x128xf32> -> vector<8x128xf32>
    %479 = arith.addf %477, %478 : vector<8x128xf32>
    %480 = vector.extract_strided_slice %479 {offsets = [0, 0], sizes = [8, 32], strides = [1, 1]} : vector<8x128xf32> to vector<8x32xf32>
    %481 = arith.negf %480 : vector<8x32xf32>
    %482 = math.exp %481 : vector<8x32xf32>
    %cst_73 = arith.constant 1.000000e+00 : f32
    %483 = vector.broadcast %cst_73 : f32 to vector<8x32xf32>
    %484 = arith.addf %483, %482 : vector<8x32xf32>
    %485 = arith.divf %483, %484 : vector<8x32xf32>
    %486 = vector.extract_strided_slice %479 {offsets = [0, 32], sizes = [8, 32], strides = [1, 1]} : vector<8x128xf32> to vector<8x32xf32>
    %487 = arith.negf %486 : vector<8x32xf32>
    %488 = math.exp %487 : vector<8x32xf32>
    %cst_74 = arith.constant 1.000000e+00 : f32
    %489 = vector.broadcast %cst_74 : f32 to vector<8x32xf32>
    %490 = arith.addf %489, %488 : vector<8x32xf32>
    %491 = arith.divf %489, %490 : vector<8x32xf32>
    %492 = vector.extract_strided_slice %479 {offsets = [0, 64], sizes = [8, 32], strides = [1, 1]} : vector<8x128xf32> to vector<8x32xf32>
    %493 = math.tanh %492 : vector<8x32xf32>
    %494 = vector.extract_strided_slice %479 {offsets = [0, 96], sizes = [8, 32], strides = [1, 1]} : vector<8x128xf32> to vector<8x32xf32>
    %495 = arith.negf %494 : vector<8x32xf32>
    %496 = math.exp %495 : vector<8x32xf32>
    %cst_75 = arith.constant 1.000000e+00 : f32
    %497 = vector.broadcast %cst_75 : f32 to vector<8x32xf32>
    %498 = arith.addf %497, %496 : vector<8x32xf32>
    %499 = arith.divf %497, %498 : vector<8x32xf32>
    %500 = arith.mulf %491, %476 : vector<8x32xf32>
    %501 = arith.mulf %485, %493 : vector<8x32xf32>
    %502 = arith.addf %500, %501 : vector<8x32xf32>
    %503 = math.tanh %502 : vector<8x32xf32>
    %504 = arith.mulf %499, %503 : vector<8x32xf32>
    %505 = vector.shape_cast %12 : vector<8x1xi1> to vector<8x1xi1>
    %506 = vector.broadcast %505 : vector<8x1xi1> to vector<8x32xi1>
    %507 = arith.select %506, %504, %473 : vector<8x32xi1>, vector<8x32xf32>
    %508 = vector.shape_cast %12 : vector<8x1xi1> to vector<8x1xi1>
    %509 = vector.broadcast %508 : vector<8x1xi1> to vector<8x32xi1>
    %510 = arith.select %509, %502, %476 : vector<8x32xi1>, vector<8x32xf32>
    %511 = vector.extract_strided_slice %304 {offsets = [48, 0], sizes = [8, 128], strides = [1, 1]} : vector<64x128xf32> to vector<8x128xf32>
    %cst_76 = arith.constant dense<0.000000e+00> : vector<8x128xf32>
    %512 = tpu.matmul %507, %300, %cst_76 {dimension_numbers = #tpu.dot_dimension_numbers<[1], [0], [0], [1], [0, 0, 1, 1], [], []>} : vector<8x32xf32>, vector<32x128xf32>, vector<8x128xf32> -> vector<8x128xf32>
    %513 = arith.addf %511, %512 : vector<8x128xf32>
    %514 = vector.extract_strided_slice %513 {offsets = [0, 0], sizes = [8, 32], strides = [1, 1]} : vector<8x128xf32> to vector<8x32xf32>
    %515 = arith.negf %514 : vector<8x32xf32>
    %516 = math.exp %515 : vector<8x32xf32>
    %cst_77 = arith.constant 1.000000e+00 : f32
    %517 = vector.broadcast %cst_77 : f32 to vector<8x32xf32>
    %518 = arith.addf %517, %516 : vector<8x32xf32>
    %519 = arith.divf %517, %518 : vector<8x32xf32>
    %520 = vector.extract_strided_slice %513 {offsets = [0, 32], sizes = [8, 32], strides = [1, 1]} : vector<8x128xf32> to vector<8x32xf32>
    %521 = arith.negf %520 : vector<8x32xf32>
    %522 = math.exp %521 : vector<8x32xf32>
    %cst_78 = arith.constant 1.000000e+00 : f32
    %523 = vector.broadcast %cst_78 : f32 to vector<8x32xf32>
    %524 = arith.addf %523, %522 : vector<8x32xf32>
    %525 = arith.divf %523, %524 : vector<8x32xf32>
    %526 = vector.extract_strided_slice %513 {offsets = [0, 64], sizes = [8, 32], strides = [1, 1]} : vector<8x128xf32> to vector<8x32xf32>
    %527 = math.tanh %526 : vector<8x32xf32>
    %528 = vector.extract_strided_slice %513 {offsets = [0, 96], sizes = [8, 32], strides = [1, 1]} : vector<8x128xf32> to vector<8x32xf32>
    %529 = arith.negf %528 : vector<8x32xf32>
    %530 = math.exp %529 : vector<8x32xf32>
    %cst_79 = arith.constant 1.000000e+00 : f32
    %531 = vector.broadcast %cst_79 : f32 to vector<8x32xf32>
    %532 = arith.addf %531, %530 : vector<8x32xf32>
    %533 = arith.divf %531, %532 : vector<8x32xf32>
    %534 = arith.mulf %525, %510 : vector<8x32xf32>
    %535 = arith.mulf %519, %527 : vector<8x32xf32>
    %536 = arith.addf %534, %535 : vector<8x32xf32>
    %537 = math.tanh %536 : vector<8x32xf32>
    %538 = arith.mulf %533, %537 : vector<8x32xf32>
    %539 = vector.shape_cast %14 : vector<8x1xi1> to vector<8x1xi1>
    %540 = vector.broadcast %539 : vector<8x1xi1> to vector<8x32xi1>
    %541 = arith.select %540, %538, %507 : vector<8x32xi1>, vector<8x32xf32>
    %542 = vector.shape_cast %14 : vector<8x1xi1> to vector<8x1xi1>
    %543 = vector.broadcast %542 : vector<8x1xi1> to vector<8x32xi1>
    %544 = arith.select %543, %536, %510 : vector<8x32xi1>, vector<8x32xf32>
    %545 = vector.extract_strided_slice %304 {offsets = [56, 0], sizes = [8, 128], strides = [1, 1]} : vector<64x128xf32> to vector<8x128xf32>
    %cst_80 = arith.constant dense<0.000000e+00> : vector<8x128xf32>
    %546 = tpu.matmul %541, %300, %cst_80 {dimension_numbers = #tpu.dot_dimension_numbers<[1], [0], [0], [1], [0, 0, 1, 1], [], []>} : vector<8x32xf32>, vector<32x128xf32>, vector<8x128xf32> -> vector<8x128xf32>
    %547 = arith.addf %545, %546 : vector<8x128xf32>
    %548 = vector.extract_strided_slice %547 {offsets = [0, 0], sizes = [8, 32], strides = [1, 1]} : vector<8x128xf32> to vector<8x32xf32>
    %549 = arith.negf %548 : vector<8x32xf32>
    %550 = math.exp %549 : vector<8x32xf32>
    %cst_81 = arith.constant 1.000000e+00 : f32
    %551 = vector.broadcast %cst_81 : f32 to vector<8x32xf32>
    %552 = arith.addf %551, %550 : vector<8x32xf32>
    %553 = arith.divf %551, %552 : vector<8x32xf32>
    %554 = vector.extract_strided_slice %547 {offsets = [0, 32], sizes = [8, 32], strides = [1, 1]} : vector<8x128xf32> to vector<8x32xf32>
    %555 = arith.negf %554 : vector<8x32xf32>
    %556 = math.exp %555 : vector<8x32xf32>
    %cst_82 = arith.constant 1.000000e+00 : f32
    %557 = vector.broadcast %cst_82 : f32 to vector<8x32xf32>
    %558 = arith.addf %557, %556 : vector<8x32xf32>
    %559 = arith.divf %557, %558 : vector<8x32xf32>
    %560 = vector.extract_strided_slice %547 {offsets = [0, 64], sizes = [8, 32], strides = [1, 1]} : vector<8x128xf32> to vector<8x32xf32>
    %561 = math.tanh %560 : vector<8x32xf32>
    %562 = vector.extract_strided_slice %547 {offsets = [0, 96], sizes = [8, 32], strides = [1, 1]} : vector<8x128xf32> to vector<8x32xf32>
    %563 = arith.negf %562 : vector<8x32xf32>
    %564 = math.exp %563 : vector<8x32xf32>
    %cst_83 = arith.constant 1.000000e+00 : f32
    %565 = vector.broadcast %cst_83 : f32 to vector<8x32xf32>
    %566 = arith.addf %565, %564 : vector<8x32xf32>
    %567 = arith.divf %565, %566 : vector<8x32xf32>
    %568 = arith.mulf %559, %544 : vector<8x32xf32>
    %569 = arith.mulf %553, %561 : vector<8x32xf32>
    %570 = arith.addf %568, %569 : vector<8x32xf32>
    %571 = math.tanh %570 : vector<8x32xf32>
    %572 = arith.mulf %567, %571 : vector<8x32xf32>
    %573 = vector.shape_cast %16 : vector<8x1xi1> to vector<8x1xi1>
    %574 = vector.broadcast %573 : vector<8x1xi1> to vector<8x32xi1>
    %575 = arith.select %574, %572, %541 : vector<8x32xi1>, vector<8x32xf32>
    %576 = vector.shape_cast %16 : vector<8x1xi1> to vector<8x1xi1>
    %577 = vector.broadcast %576 : vector<8x1xi1> to vector<8x32xi1>
    %578 = arith.select %577, %570, %544 : vector<8x32xi1>, vector<8x32xf32>
    %c0_84 = arith.constant 0 : index
    %c0_85 = arith.constant 0 : index
    %579 = vector.load %arg8[%c0_84, %c0_85] : memref<128x1024xf32, #tpu.memory_space<vmem>>, vector<32x1024xf32>
    %cst_86 = arith.constant dense<0.000000e+00> : vector<8x1024xf32>
    %580 = tpu.matmul %294, %579, %cst_86 {dimension_numbers = #tpu.dot_dimension_numbers<[1], [0], [0], [1], [0, 0, 1, 1], [], []>} : vector<8x32xf32>, vector<32x1024xf32>, vector<8x1024xf32> -> vector<8x1024xf32>
    %c32 = arith.constant 32 : index
    %c0_87 = arith.constant 0 : index
    %581 = vector.load %arg8[%c32, %c0_87] : memref<128x1024xf32, #tpu.memory_space<vmem>>, vector<32x1024xf32>
    %cst_88 = arith.constant dense<0.000000e+00> : vector<8x1024xf32>
    %582 = tpu.matmul %575, %581, %cst_88 {dimension_numbers = #tpu.dot_dimension_numbers<[1], [0], [0], [1], [0, 0, 1, 1], [], []>} : vector<8x32xf32>, vector<32x1024xf32>, vector<8x1024xf32> -> vector<8x1024xf32>
    %583 = arith.addf %580, %582 : vector<8x1024xf32>
    %c64 = arith.constant 64 : index
    %c0_89 = arith.constant 0 : index
    %584 = vector.load %arg8[%c64, %c0_89] : memref<128x1024xf32, #tpu.memory_space<vmem>>, vector<32x1024xf32>
    %cst_90 = arith.constant dense<0.000000e+00> : vector<8x1024xf32>
    %585 = tpu.matmul %297, %584, %cst_90 {dimension_numbers = #tpu.dot_dimension_numbers<[1], [0], [0], [1], [0, 0, 1, 1], [], []>} : vector<8x32xf32>, vector<32x1024xf32>, vector<8x1024xf32> -> vector<8x1024xf32>
    %586 = arith.addf %583, %585 : vector<8x1024xf32>
    %c96 = arith.constant 96 : index
    %c0_91 = arith.constant 0 : index
    %587 = vector.load %arg8[%c96, %c0_91] : memref<128x1024xf32, #tpu.memory_space<vmem>>, vector<32x1024xf32>
    %cst_92 = arith.constant dense<0.000000e+00> : vector<8x1024xf32>
    %588 = tpu.matmul %578, %587, %cst_92 {dimension_numbers = #tpu.dot_dimension_numbers<[1], [0], [0], [1], [0, 0, 1, 1], [], []>} : vector<8x32xf32>, vector<32x1024xf32>, vector<8x1024xf32> -> vector<8x1024xf32>
    %589 = arith.addf %586, %588 : vector<8x1024xf32>
    %c0_93 = arith.constant 0 : index
    %c0_94 = arith.constant 0 : index
    %590 = vector.load %arg9[%c0_93, %c0_94] : memref<1x1024xf32, #tpu.memory_space<vmem>>, vector<1x1024xf32>
    %591 = vector.broadcast %590 : vector<1x1024xf32> to vector<8x1024xf32>
    %592 = arith.addf %589, %591 : vector<8x1024xf32>
    %c0_95 = arith.constant 0 : index
    %c0_96 = arith.constant 0 : index
    %593 = vector.load %arg10[%c0_95, %c0_96] : memref<8x1024xf32, #tpu.memory_space<vmem>>, vector<8x1024xf32>
    tpu.vector_store %arg10[%c0_95, %c0_96], %592 {strides = array<i32>} : memref<8x1024xf32, #tpu.memory_space<vmem>>, vector<8x1024xf32>,
    return
  }
}

</mosaic_0001>

<llo_original>
// kernel: tpu_custom_call.1
$region0: #{tpu_custom_call.1}
  #allocation0 [shape = 'u32[]', space=smem, size = 0x4, offset = 0x4, fixed_abs, tag = 'smem constant byte address 0x4 - core index']
  #allocation1 [shape = 'u32[144,128]{1,0:T(1,128)}', space=vmem, size = 0x12000, scoped, tag = 'internal scratch']
  %s0 = inlined_call_operand.vmem [shape: s32[8,1], index: 0, kind: input, shape index: {}]
  %s1 = inlined_call_operand.vmem [shape: f32[64,16], index: 1, kind: input, shape index: {}]
  %s2 = inlined_call_operand.hbm [shape: f32[16,128], index: 2, kind: input, shape index: {}]
  %s3 = inlined_call_operand.vmem [shape: f32[32,128], index: 3, kind: input, shape index: {}]
  %s4 = inlined_call_operand.vmem [shape: f32[32,128], index: 4, kind: input, shape index: {}]
  %s5 = inlined_call_operand.vmem [shape: f32[32,128], index: 5, kind: input, shape index: {}]
  %s6 = inlined_call_operand.vmem [shape: f32[1,128], index: 6, kind: input, shape index: {}]
  %s7 = inlined_call_operand.vmem [shape: f32[1,128], index: 7, kind: input, shape index: {}]
  %s8 = inlined_call_operand.hbm [shape: f32[128,1024], index: 8, kind: input, shape index: {}]
  %s9 = inlined_call_operand.vmem [shape: f32[1,1024], index: 9, kind: input, shape index: {}]
  %s10 = inlined_call_operand.hbm [shape: f32[8,1024], index: 10, kind: output, shape index: {}]
  %s11 = sld [smem:[#allocation0]]
  $region58: #{tpu_custom_call.1} parent=0
    _
  %s13 = ssub.s32 1, %s11
  %s14 = scalar_select 0, %s13, %s11
  $region1: #{tpu_custom_call.1} parent=0
    #allocation2 [shape = 'u8[8192]{0}', space=vmem, size = 0x2000, scoped, tag = 'input window, operand 2, single buffered']
    #allocation3 [shape = 's32[1]{0}', space=sflag, size = 0x4, scoped, tag = 'scoped memory for tpu_custom_call.1']
    #allocation4 [shape = 's32[1]{0}', space=sflag, size = 0x4, scoped, tag = 'scoped memory for tpu_custom_call.1']
    #allocation5 [shape = 'u8[524288]{0}', space=vmem, size = 0x80000, scoped, tag = 'input window, operand 8, single buffered']
    #allocation6 [shape = 's32[1]{0}', space=sflag, size = 0x4, scoped, tag = 'scoped memory for tpu_custom_call.1']
    #allocation7 [shape = 'u8[32768]{0}', space=vmem, size = 0x8000, scoped, tag = 'output window, operand 0, single buffered']
    %15 = vsyncpa [#allocation3], 0
    %16 = vsyncpa [#allocation6], 0
    %17 = vsyncpa [#allocation4], 0
    // Predicated region
    $region2: #{tpu_custom_call.1} parent=1 // pred_check
      _
    $region3: #{tpu_custom_call.1} parent=1 // pred_check_branch
      %19 = sbr.rel (0) target = $region5
    $region4: #{tpu_custom_call.1} parent=1 // pred_region
      _
    $region5: #{tpu_custom_call.1} parent=1 // pred_fallthru
      _
    // Predicated region
    $region6: #{tpu_custom_call.1} parent=1 // pred_check
      _
    $region7: #{tpu_custom_call.1} parent=1 // pred_check_branch
      %21 = sbr.rel (0) target = $region9
    $region8: #{tpu_custom_call.1} parent=1 // pred_region
      _
    $region9: #{tpu_custom_call.1} parent=1 // pred_fallthru
      _
    // Predicated region
    $region10: #{tpu_custom_call.1} parent=1 // pred_check
      _
    $region11: #{tpu_custom_call.1} parent=1 // pred_check_branch
      %23 = sbr.rel (0) target = $region13
    $region12: #{tpu_custom_call.1} parent=1 // pred_region
      %s25 = ssub.s32 256, 256
      %26 = vsyncadd [#allocation3], %s25
      %s27 = sshll.u32 [#allocation2], 4
      %s28 = int_to_ptr.vmem [resolvable:$true] %s27
      %33 = dma.hbm_to_vmem [thread:$0]  %s2, 256, %s28, [#allocation3], 128, 128, 8
    $region13: #{tpu_custom_call.1} parent=1 // pred_fallthru
      _
    // Predicated region
    $region14: #{tpu_custom_call.1} parent=1 // pred_check
      _
    $region15: #{tpu_custom_call.1} parent=1 // pred_check_branch
      %35 = sbr.rel (0) target = $region17
    $region16: #{tpu_custom_call.1} parent=1 // pred_region
      _
    $region17: #{tpu_custom_call.1} parent=1 // pred_fallthru
      _
    // Predicated region
    $region18: #{tpu_custom_call.1} parent=1 // pred_check
      _
    $region19: #{tpu_custom_call.1} parent=1 // pred_check_branch
      %37 = sbr.rel (0) target = $region21
    $region20: #{tpu_custom_call.1} parent=1 // pred_region
      _
    $region21: #{tpu_custom_call.1} parent=1 // pred_fallthru
      _
    // Predicated region
    $region22: #{tpu_custom_call.1} parent=1 // pred_check
      _
    $region23: #{tpu_custom_call.1} parent=1 // pred_check_branch
      %39 = sbr.rel (0) target = $region25
    $region24: #{tpu_custom_call.1} parent=1 // pred_region
      _
    $region25: #{tpu_custom_call.1} parent=1 // pred_fallthru
      _
    // Predicated region
    $region26: #{tpu_custom_call.1} parent=1 // pred_check
      _
    $region27: #{tpu_custom_call.1} parent=1 // pred_check_branch
      %41 = sbr.rel (0) target = $region29
    $region28: #{tpu_custom_call.1} parent=1 // pred_region
      _
    $region29: #{tpu_custom_call.1} parent=1 // pred_fallthru
      _
    // Predicated region
    $region30: #{tpu_custom_call.1} parent=1 // pred_check
      _
    $region31: #{tpu_custom_call.1} parent=1 // pred_check_branch
      %43 = sbr.rel (0) target = $region33
    $region32: #{tpu_custom_call.1} parent=1 // pred_region
      _
    $region33: #{tpu_custom_call.1} parent=1 // pred_fallthru
      _
    // Predicated region
    $region34: #{tpu_custom_call.1} parent=1 // pred_check
      _
    $region35: #{tpu_custom_call.1} parent=1 // pred_check_branch
      %45 = sbr.rel (0) target = $region37
    $region36: #{tpu_custom_call.1} parent=1 // pred_region
      %s47 = ssub.s32 16384, 16384
      %48 = vsyncadd [#allocation6], %s47
      %s49 = sshll.u32 [#allocation5], 4
      %s50 = int_to_ptr.vmem [resolvable:$true] %s49
      %55 = dma.hbm_to_vmem [thread:$0]  %s8, 16384, %s50, [#allocation6], 1024, 1024, 64
    $region37: #{tpu_custom_call.1} parent=1 // pred_fallthru
      _
    // Predicated region
    $region38: #{tpu_custom_call.1} parent=1 // pred_check
      _
    $region39: #{tpu_custom_call.1} parent=1 // pred_check_branch
      %57 = sbr.rel (0) target = $region41
    $region40: #{tpu_custom_call.1} parent=1 // pred_region
      _
    $region41: #{tpu_custom_call.1} parent=1 // pred_fallthru
      _
    // Predicated region
    $region42: #{tpu_custom_call.1} parent=1 // pred_check
      _
    $region43: #{tpu_custom_call.1} parent=1 // pred_check_branch
      %59 = sbr.rel (0) target = $region45
    $region44: #{tpu_custom_call.1} parent=1 // pred_region
      %60 = dma.done [#allocation3], 256
    $region45: #{tpu_custom_call.1} parent=1 // pred_fallthru
      _
    // Predicated region
    $region46: #{tpu_custom_call.1} parent=1 // pred_check
      _
    $region47: #{tpu_custom_call.1} parent=1 // pred_check_branch
      %62 = sbr.rel (0) target = $region49
    $region48: #{tpu_custom_call.1} parent=1 // pred_region
      %63 = dma.done [#allocation6], 16384
    $region49: #{tpu_custom_call.1} parent=1 // pred_fallthru
      _
    %v64 = vld [vmem:[%s0] sm:$0xff]
    %vm65 = vcmp.gt.s32.totalorder %v64, 0
    %vm66 = vcmp.gt.s32.totalorder %v64, 1
    %vm67 = vcmp.gt.s32.totalorder %v64, 2
    %vm68 = vcmp.gt.s32.totalorder %v64, 3
    %vm69 = vcmp.gt.s32.totalorder %v64, 4
    %vm70 = vcmp.gt.s32.totalorder %v64, 5
    %vm71 = vcmp.gt.s32.totalorder %v64, 6
    %vm72 = vcmp.gt.s32.totalorder %v64, 7
    %v73 = vld [vmem:[%s1] sm:$0xff]
    %v74 = vld [vmem:[%s1 + $0x8] sm:$0xff]
    %v75 = vld [vmem:[%s1 + $0x10] sm:$0xff]
    %v76 = vld [vmem:[%s1 + $0x18] sm:$0xff]
    %v77 = vld [vmem:[%s1 + $0x20] sm:$0xff]
    %v78 = vld [vmem:[%s1 + $0x28] sm:$0xff]
    %v79 = vld [vmem:[%s1 + $0x30] sm:$0xff]
    %v80 = vld [vmem:[%s1 + $0x38] sm:$0xff]
    %v81 = vld [vmem:[#allocation2] sm:$0xff]
    %v82 = vld [vmem:[#allocation2 + $0x8] sm:$0xff]
    %v83 = vld [vmem:[%s4] sm:$0xff]
    %v84 = vld [vmem:[%s4 + $0x8] sm:$0xff]
    %v85 = vld [vmem:[%s4 + $0x10] sm:$0xff]
    %v86 = vld [vmem:[%s4 + $0x18] sm:$0xff]
    %v87 = vld [vmem:[%s6] sm:$0x1]
    %v89 = vlaneseq
    %v90 = vshrl.u32 %v89, 7
    %v91 = vsub.s32 0, %v90
    %v92 = vrot.slane %v87, %v91
    %vm94 = vcmask 130048
    %v96 = vsel %vm94, %v73, 0
    %v99 = vsel %vm94, %v74, 0
    %v102 = vsel %vm94, %v75, 0
    %v105 = vsel %vm94, %v76, 0
    %v108 = vsel %vm94, %v77, 0
    %v111 = vsel %vm94, %v78, 0
    %v114 = vsel %vm94, %v79, 0
    %v117 = vsel %vm94, %v80, 0
    %119 = vmatprep.subr.mxu0 0.0
    %120 = vmatpush1.msra.mxu0 %v81
    %121 = vmatprep.subr.mxu0 0.0
    %122 = vmatpush1.msra.mxu0 %v82
    %123 = vmatprep.subr.mxu0 0.0
    %124 = vmatpush1.msra.mxu0 0.0
    %125 = vmatprep.subr.mxu0 0.0
    %126 = vmatpush1.msra.mxu0 0.0
    %127 = vmatprep.subr.mxu0 0.0
    %128 = vmatpush1.msra.mxu0 0.0
    %129 = vmatprep.subr.mxu0 0.0
    %130 = vmatpush1.msra.mxu0 0.0
    %131 = vmatprep.subr.mxu0 0.0
    %132 = vmatpush1.msra.mxu0 0.0
    %133 = vmatprep.subr.mxu0 0.0
    %134 = vmatpush1.msra.mxu0 0.0
    %135 = vmatprep.subr.mxu0 0.0
    %136 = vmatpush1.msra.mxu0 0.0
    %137 = vmatprep.subr.mxu0 0.0
    %138 = vmatpush1.msra.mxu0 0.0
    %139 = vmatprep.subr.mxu0 0.0
    %140 = vmatpush1.msra.mxu0 0.0
    %141 = vmatprep.subr.mxu0 0.0
    %142 = vmatpush1.msra.mxu0 0.0
    %143 = vmatprep.subr.mxu0 0.0
    %144 = vmatpush1.msra.mxu0 0.0
    %145 = vmatprep.subr.mxu0 0.0
    %146 = vmatpush1.msra.mxu0 0.0
    %147 = vmatprep.subr.mxu0 0.0
    %148 = vmatpush1.msra.mxu0 0.0
    %149 = vmatprep.subr.mxu0 0.0
    %150 = vmatpush1.msra.mxu0 0.0
    %151 = vmatprep.subr.mxu0 0.0
    %152 = vmatpush1.msra.mxu0 0.0
    %153 = vmatprep.subr.mxu0 0.0
    %154 = vmatpush1.msra.mxu0 0.0
    %155 = vmatprep.subr.mxu0 0.0
    %156 = vmatpush1.msra.mxu0 0.0
    %157 = vmatprep.subr.mxu0 0.0
    %158 = vmatpush1.msra.mxu0 0.0
    %159 = vmatprep.subr.mxu0 0.0
    %160 = vmatpush1.msra.mxu0 0.0
    %161 = vmatprep.subr.mxu0 0.0
    %162 = vmatpush1.msra.mxu0 0.0
    %163 = vmatprep.subr.mxu0 0.0
    %164 = vmatpush1.msra.mxu0 0.0
    %165 = vmatprep.subr.mxu0 0.0
    %166 = vmatpush1.msra.mxu0 0.0
    %167 = vmatprep.subr.mxu0 0.0
    %168 = vmatpush1.msra.mxu0 0.0
    %169 = vmatprep.subr.mxu0 0.0
    %170 = vmatpush1.msra.mxu0 0.0
    %171 = vmatprep.subr.mxu0 0.0
    %172 = vmatpush1.msra.mxu0 0.0
    %173 = vmatprep.subr.mxu0 0.0
    %174 = vmatpush1.msra.mxu0 0.0
    %175 = vmatprep.subr.mxu0 0.0
    %176 = vmatpush1.msra.mxu0 0.0
    %177 = vmatprep.subr.mxu0 0.0
    %178 = vmatpush1.msra.mxu0 0.0
    %179 = vmatprep.subr.mxu0 0.0
    %180 = vmatpush1.msra.mxu0 0.0
    %181 = vmatprep.subr.mxu0 0.0
    %182 = vmatpush1.msra.mxu0 0.0
    %183 = vmatprep.mubr.f32.mxu0 0.0
    %184 = vmatmul.mubr.f32.gmra.mrb[0].mxu0 %v96
    %v185 = vpop.f32.mrb[0].mxu0
    %v186 = vadd.f32 %v92, %v185
    %v187 = vpop.f32.mrb[0].mxu0
    %188 = vmatprep.mubr.f32.mxu0 0.0
    %189 = vmatmul.mubr.f32.gmra.mrb[0].mxu0 %v99
    %v190 = vpop.f32.mrb[0].mxu0
    %v191 = vadd.f32 %v92, %v190
    %v192 = vpop.f32.mrb[0].mxu0
    %193 = vmatprep.mubr.f32.mxu0 0.0
    %194 = vmatmul.mubr.f32.gmra.mrb[0].mxu0 %v102
    %v195 = vpop.f32.mrb[0].mxu0
    %v196 = vadd.f32 %v92, %v195
    %v197 = vpop.f32.mrb[0].mxu0
    %198 = vmatprep.mubr.f32.mxu0 0.0
    %199 = vmatmul.mubr.f32.gmra.mrb[0].mxu0 %v105
    %v200 = vpop.f32.mrb[0].mxu0
    %v201 = vadd.f32 %v92, %v200
    %v202 = vpop.f32.mrb[0].mxu0
    %203 = vmatprep.mubr.f32.mxu0 0.0
    %204 = vmatmul.mubr.f32.gmra.mrb[0].mxu0 %v108
    %v205 = vpop.f32.mrb[0].mxu0
    %v206 = vadd.f32 %v92, %v205
    %v207 = vpop.f32.mrb[0].mxu0
    %208 = vmatprep.mubr.f32.mxu0 0.0
    %209 = vmatmul.mubr.f32.gmra.mrb[0].mxu0 %v111
    %v210 = vpop.f32.mrb[0].mxu0
    %v211 = vadd.f32 %v92, %v210
    %v212 = vpop.f32.mrb[0].mxu0
    %213 = vmatprep.mubr.f32.mxu0 0.0
    %214 = vmatmul.mubr.f32.gmra.mrb[0].mxu0 %v114
    %v215 = vpop.f32.mrb[0].mxu0
    %v216 = vadd.f32 %v92, %v215
    %v217 = vpop.f32.mrb[0].mxu0
    %218 = vmatprep.mubr.f32.mxu0 0.0
    %219 = vmatmul.mubr.f32.gmra.mrb[0].mxu0 %v117
    %v220 = vpop.f32.mrb[0].mxu0
    %v221 = vadd.f32 %v92, %v220
    %v222 = vpop.f32.mrb[0].mxu0
    %223 = vdwg.mxu0
    %vm224 = vcmask 261120
    %v226 = vsel %vm224, 0.0, 0
    %228 = vmatprep.subr.mxu0 0.0
    %229 = vmatpush1.msra.mxu0 %v83
    %230 = vmatprep.subr.mxu0 0.0
    %231 = vmatpush1.msra.mxu0 %v84
    %232 = vmatprep.subr.mxu0 0.0
    %233 = vmatpush1.msra.mxu0 %v85
    %234 = vmatprep.subr.mxu0 0.0
    %235 = vmatpush1.msra.mxu0 %v86
    %236 = vmatprep.subr.mxu0 0.0
    %237 = vmatpush1.msra.mxu0 0.0
    %238 = vmatprep.subr.mxu0 0.0
    %239 = vmatpush1.msra.mxu0 0.0
    %240 = vmatprep.subr.mxu0 0.0
    %241 = vmatpush1.msra.mxu0 0.0
    %242 = vmatprep.subr.mxu0 0.0
    %243 = vmatpush1.msra.mxu0 0.0
    %244 = vmatprep.subr.mxu0 0.0
    %245 = vmatpush1.msra.mxu0 0.0
    %246 = vmatprep.subr.mxu0 0.0
    %247 = vmatpush1.msra.mxu0 0.0
    %248 = vmatprep.subr.mxu0 0.0
    %249 = vmatpush1.msra.mxu0 0.0
    %250 = vmatprep.subr.mxu0 0.0
    %251 = vmatpush1.msra.mxu0 0.0
    %252 = vmatprep.subr.mxu0 0.0
    %253 = vmatpush1.msra.mxu0 0.0
    %254 = vmatprep.subr.mxu0 0.0
    %255 = vmatpush1.msra.mxu0 0.0
    %256 = vmatprep.subr.mxu0 0.0
    %257 = vmatpush1.msra.mxu0 0.0
    %258 = vmatprep.subr.mxu0 0.0
    %259 = vmatpush1.msra.mxu0 0.0
    %260 = vmatprep.subr.mxu0 0.0
    %261 = vmatpush1.msra.mxu0 0.0
    %262 = vmatprep.subr.mxu0 0.0
    %263 = vmatpush1.msra.mxu0 0.0
    %264 = vmatprep.subr.mxu0 0.0
    %265 = vmatpush1.msra.mxu0 0.0
    %266 = vmatprep.subr.mxu0 0.0
    %267 = vmatpush1.msra.mxu0 0.0
    %268 = vmatprep.subr.mxu0 0.0
    %269 = vmatpush1.msra.mxu0 0.0
    %270 = vmatprep.subr.mxu0 0.0
    %271 = vmatpush1.msra.mxu0 0.0
    %272 = vmatprep.subr.mxu0 0.0
    %273 = vmatpush1.msra.mxu0 0.0
    %274 = vmatprep.subr.mxu0 0.0
    %275 = vmatpush1.msra.mxu0 0.0
    %276 = vmatprep.subr.mxu0 0.0
    %277 = vmatpush1.msra.mxu0 0.0
    %278 = vmatprep.subr.mxu0 0.0
    %279 = vmatpush1.msra.mxu0 0.0
    %280 = vmatprep.subr.mxu0 0.0
    %281 = vmatpush1.msra.mxu0 0.0
    %282 = vmatprep.subr.mxu0 0.0
    %283 = vmatpush1.msra.mxu0 0.0
    %284 = vmatprep.subr.mxu0 0.0
    %285 = vmatpush1.msra.mxu0 0.0
    %286 = vmatprep.subr.mxu0 0.0
    %287 = vmatpush1.msra.mxu0 0.0
    %288 = vmatprep.subr.mxu0 0.0
    %289 = vmatpush1.msra.mxu0 0.0
    %290 = vmatprep.subr.mxu0 0.0
    %291 = vmatpush1.msra.mxu0 0.0
    %292 = vmatprep.mubr.f32.mxu0 0.0
    %293 = vmatmul.mubr.f32.gmra.mrb[0].mxu0 %v226
    %v294 = vpop.f32.mrb[0].mxu0
    %v295 = vadd.f32 0.0, %v294
    %v296 = vpop.f32.mrb[0].mxu0
    %297 = vdwg.mxu0
    %v298 = vadd.f32 %v186, %v295
    %v299 = vxor.u32 %v298, 2147483648
    %v300 = vmul.f32 %v299, 1.442695
    %v301 = vpow.pop %v300
    %v302 = vadd.f32 %v301, 1.0
    %v303 = vrcp.pop %v302
    %v304 = vmul.f32 1.0, %v303
    %v305 = vtanh.pop %v298
    %v306 = vmul.f32 %v304, 0.0
    %308 = vrot.lane.b32.xlu0 %v305, 64
    %v309 = vpop.permute.xlu0 %308
    %v311 = vmul.f32 %v304, %v309
    %313 = vrot.lane.b32.xlu0 %v311, 32
    %v314 = vpop.permute.xlu0 %313
    %v316 = vadd.f32 %v306, %v314
    %v317 = vtanh.pop %v316
    %319 = vrot.lane.b32.xlu0 %v317, 64
    %v320 = vpop.permute.xlu0 %319
    %v322 = vmul.f32 %v304, %v320
    %v323 = vsel %vm65, 1, 0
    %324 = vset.pattern.permute.xlu0 0
    %325 = vperm.xlu0 %324, %v323
    %v326 = vpop.permute.xlu0 %325
    %vm327 = vcmp.eq.s32.totalorder %v326, 1
    %v328 = vsel %vm327, %v322, 0.0
    %v329 = vsel %vm327, %v316, 0.0
    %331 = vrot.lane.b32.xlu0 %v328, 32
    %v332 = vpop.permute.xlu0 %331
    %v333 = vsel %vm224, %v332, 0
    %335 = vmatprep.subr.mxu0 0.0
    %336 = vmatpush1.msra.mxu0 %v83
    %337 = vmatprep.subr.mxu0 0.0
    %338 = vmatpush1.msra.mxu0 %v84
    %339 = vmatprep.subr.mxu0 0.0
    %340 = vmatpush1.msra.mxu0 %v85
    %341 = vmatprep.subr.mxu0 0.0
    %342 = vmatpush1.msra.mxu0 %v86
    %343 = vmatprep.subr.mxu0 0.0
    %344 = vmatpush1.msra.mxu0 0.0
    %345 = vmatprep.subr.mxu0 0.0
    %346 = vmatpush1.msra.mxu0 0.0
    %347 = vmatprep.subr.mxu0 0.0
    %348 = vmatpush1.msra.mxu0 0.0
    %349 = vmatprep.subr.mxu0 0.0
    %350 = vmatpush1.msra.mxu0 0.0
    %351 = vmatprep.subr.mxu0 0.0
    %352 = vmatpush1.msra.mxu0 0.0
    %353 = vmatprep.subr.mxu0 0.0
    %354 = vmatpush1.msra.mxu0 0.0
    %355 = vmatprep.subr.mxu0 0.0
    %356 = vmatpush1.msra.mxu0 0.0
    %357 = vmatprep.subr.mxu0 0.0
    %358 = vmatpush1.msra.mxu0 0.0
    %359 = vmatprep.subr.mxu0 0.0
    %360 = vmatpush1.msra.mxu0 0.0
    %361 = vmatprep.subr.mxu0 0.0
    %362 = vmatpush1.msra.mxu0 0.0
    %363 = vmatprep.subr.mxu0 0.0
    %364 = vmatpush1.msra.mxu0 0.0
    %365 = vmatprep.subr.mxu0 0.0
    %366 = vmatpush1.msra.mxu0 0.0
    %367 = vmatprep.subr.mxu0 0.0
    %368 = vmatpush1.msra.mxu0 0.0
    %369 = vmatprep.subr.mxu0 0.0
    %370 = vmatpush1.msra.mxu0 0.0
    %371 = vmatprep.subr.mxu0 0.0
    %372 = vmatpush1.msra.mxu0 0.0
    %373 = vmatprep.subr.mxu0 0.0
    %374 = vmatpush1.msra.mxu0 0.0
    %375 = vmatprep.subr.mxu0 0.0
    %376 = vmatpush1.msra.mxu0 0.0
    %377 = vmatprep.subr.mxu0 0.0
    %378 = vmatpush1.msra.mxu0 0.0
    %379 = vmatprep.subr.mxu0 0.0
    %380 = vmatpush1.msra.mxu0 0.0
    %381 = vmatprep.subr.mxu0 0.0
    %382 = vmatpush1.msra.mxu0 0.0
    %383 = vmatprep.subr.mxu0 0.0
    %384 = vmatpush1.msra.mxu0 0.0
    %385 = vmatprep.subr.mxu0 0.0
    %386 = vmatpush1.msra.mxu0 0.0
    %387 = vmatprep.subr.mxu0 0.0
    %388 = vmatpush1.msra.mxu0 0.0
    %389 = vmatprep.subr.mxu0 0.0
    %390 = vmatpush1.msra.mxu0 0.0
    %391 = vmatprep.subr.mxu0 0.0
    %392 = vmatpush1.msra.mxu0 0.0
    %393 = vmatprep.subr.mxu0 0.0
    %394 = vmatpush1.msra.mxu0 0.0
    %395 = vmatprep.subr.mxu0 0.0
    %396 = vmatpush1.msra.mxu0 0.0
    %397 = vmatprep.subr.mxu0 0.0
    %398 = vmatpush1.msra.mxu0 0.0
    %399 = vmatprep.mubr.f32.mxu0 0.0
    %400 = vmatmul.mubr.f32.gmra.mrb[0].mxu0 %v333
    %v401 = vpop.f32.mrb[0].mxu0
    %v402 = vadd.f32 0.0, %v401
    %v403 = vpop.f32.mrb[0].mxu0
    %404 = vdwg.mxu0
    %v405 = vadd.f32 %v191, %v402
    %v406 = vxor.u32 %v405, 2147483648
    %v407 = vmul.f32 %v406, 1.442695
    %v408 = vpow.pop %v407
    %v409 = vadd.f32 %v408, 1.0
    %v410 = vrcp.pop %v409
    %v411 = vmul.f32 1.0, %v410
    %v412 = vtanh.pop %v405
    %v413 = vmul.f32 %v411, %v329
    %415 = vrot.lane.b32.xlu0 %v412, 64
    %v416 = vpop.permute.xlu0 %415
    %v418 = vmul.f32 %v411, %v416
    %420 = vrot.lane.b32.xlu0 %v418, 32
    %v421 = vpop.permute.xlu0 %420
    %v423 = vadd.f32 %v413, %v421
    %v424 = vtanh.pop %v423
    %426 = vrot.lane.b32.xlu0 %v424, 64
    %v427 = vpop.permute.xlu0 %426
    %v429 = vmul.f32 %v411, %v427
    %v430 = vsel %vm66, 1, 0
    %431 = vset.pattern.permute.xlu0 0
    %432 = vperm.xlu0 %431, %v430
    %v433 = vpop.permute.xlu0 %432
    %vm434 = vcmp.eq.s32.totalorder %v433, 1
    %v435 = vsel %vm434, %v429, %v328
    %v436 = vsel %vm434, %v423, %v329
    %438 = vrot.lane.b32.xlu0 %v435, 32
    %v439 = vpop.permute.xlu0 %438
    %v440 = vsel %vm224, %v439, 0
    %442 = vmatprep.subr.mxu0 0.0
    %443 = vmatpush1.msra.mxu0 %v83
    %444 = vmatprep.subr.mxu0 0.0
    %445 = vmatpush1.msra.mxu0 %v84
    %446 = vmatprep.subr.mxu0 0.0
    %447 = vmatpush1.msra.mxu0 %v85
    %448 = vmatprep.subr.mxu0 0.0
    %449 = vmatpush1.msra.mxu0 %v86
    %450 = vmatprep.subr.mxu0 0.0
    %451 = vmatpush1.msra.mxu0 0.0
    %452 = vmatprep.subr.mxu0 0.0
    %453 = vmatpush1.msra.mxu0 0.0
    %454 = vmatprep.subr.mxu0 0.0
    %455 = vmatpush1.msra.mxu0 0.0
    %456 = vmatprep.subr.mxu0 0.0
    %457 = vmatpush1.msra.mxu0 0.0
    %458 = vmatprep.subr.mxu0 0.0
    %459 = vmatpush1.msra.mxu0 0.0
    %460 = vmatprep.subr.mxu0 0.0
    %461 = vmatpush1.msra.mxu0 0.0
    %462 = vmatprep.subr.mxu0 0.0
    %463 = vmatpush1.msra.mxu0 0.0
    %464 = vmatprep.subr.mxu0 0.0
    %465 = vmatpush1.msra.mxu0 0.0
    %466 = vmatprep.subr.mxu0 0.0
    %467 = vmatpush1.msra.mxu0 0.0
    %468 = vmatprep.subr.mxu0 0.0
    %469 = vmatpush1.msra.mxu0 0.0
    %470 = vmatprep.subr.mxu0 0.0
    %471 = vmatpush1.msra.mxu0 0.0
    %472 = vmatprep.subr.mxu0 0.0
    %473 = vmatpush1.msra.mxu0 0.0
    %474 = vmatprep.subr.mxu0 0.0
    %475 = vmatpush1.msra.mxu0 0.0
    %476 = vmatprep.subr.mxu0 0.0
    %477 = vmatpush1.msra.mxu0 0.0
    %478 = vmatprep.subr.mxu0 0.0
    %479 = vmatpush1.msra.mxu0 0.0
    %480 = vmatprep.subr.mxu0 0.0
    %481 = vmatpush1.msra.mxu0 0.0
    %482 = vmatprep.subr.mxu0 0.0
    %483 = vmatpush1.msra.mxu0 0.0
    %484 = vmatprep.subr.mxu0 0.0
    %485 = vmatpush1.msra.mxu0 0.0
    %486 = vmatprep.subr.mxu0 0.0
    %487 = vmatpush1.msra.mxu0 0.0
    %488 = vmatprep.subr.mxu0 0.0
    %489 = vmatpush1.msra.mxu0 0.0
    %490 = vmatprep.subr.mxu0 0.0
    %491 = vmatpush1.msra.mxu0 0.0
    %492 = vmatprep.subr.mxu0 0.0
    %493 = vmatpush1.msra.mxu0 0.0
    %494 = vmatprep.subr.mxu0 0.0
    %495 = vmatpush1.msra.mxu0 0.0
    %496 = vmatprep.subr.mxu0 0.0
    %497 = vmatpush1.msra.mxu0 0.0
    %498 = vmatprep.subr.mxu0 0.0
    %499 = vmatpush1.msra.mxu0 0.0
    %500 = vmatprep.subr.mxu0 0.0
    %501 = vmatpush1.msra.mxu0 0.0
    %502 = vmatprep.subr.mxu0 0.0
    %503 = vmatpush1.msra.mxu0 0.0
    %504 = vmatprep.subr.mxu0 0.0
    %505 = vmatpush1.msra.mxu0 0.0
    %506 = vmatprep.mubr.f32.mxu0 0.0
    %507 = vmatmul.mubr.f32.gmra.mrb[0].mxu0 %v440
    %v508 = vpop.f32.mrb[0].mxu0
    %v509 = vadd.f32 0.0, %v508
    %v510 = vpop.f32.mrb[0].mxu0
    %511 = vdwg.mxu0
    %v512 = vadd.f32 %v196, %v509
    %v513 = vxor.u32 %v512, 2147483648
    %v514 = vmul.f32 %v513, 1.442695
    %v515 = vpow.pop %v514
    %v516 = vadd.f32 %v515, 1.0
    %v517 = vrcp.pop %v516
    %v518 = vmul.f32 1.0, %v517
    %v519 = vtanh.pop %v512
    %v520 = vmul.f32 %v518, %v436
    %522 = vrot.lane.b32.xlu0 %v519, 64
    %v523 = vpop.permute.xlu0 %522
    %v525 = vmul.f32 %v518, %v523
    %527 = vrot.lane.b32.xlu0 %v525, 32
    %v528 = vpop.permute.xlu0 %527
    %v530 = vadd.f32 %v520, %v528
    %v531 = vtanh.pop %v530
    %533 = vrot.lane.b32.xlu0 %v531, 64
    %v534 = vpop.permute.xlu0 %533
    %v536 = vmul.f32 %v518, %v534
    %v537 = vsel %vm67, 1, 0
    %538 = vset.pattern.permute.xlu0 0
    %539 = vperm.xlu0 %538, %v537
    %v540 = vpop.permute.xlu0 %539
    %vm541 = vcmp.eq.s32.totalorder %v540, 1
    %v542 = vsel %vm541, %v536, %v435
    %v543 = vsel %vm541, %v530, %v436
    %545 = vrot.lane.b32.xlu0 %v542, 32
    %v546 = vpop.permute.xlu0 %545
    %v547 = vsel %vm224, %v546, 0
    %549 = vmatprep.subr.mxu0 0.0
    %550 = vmatpush1.msra.mxu0 %v83
    %551 = vmatprep.subr.mxu0 0.0
    %552 = vmatpush1.msra.mxu0 %v84
    %553 = vmatprep.subr.mxu0 0.0
    %554 = vmatpush1.msra.mxu0 %v85
    %555 = vmatprep.subr.mxu0 0.0
    %556 = vmatpush1.msra.mxu0 %v86
    %557 = vmatprep.subr.mxu0 0.0
    %558 = vmatpush1.msra.mxu0 0.0
    %559 = vmatprep.subr.mxu0 0.0
    %560 = vmatpush1.msra.mxu0 0.0
    %561 = vmatprep.subr.mxu0 0.0
    %562 = vmatpush1.msra.mxu0 0.0
    %563 = vmatprep.subr.mxu0 0.0
    %564 = vmatpush1.msra.mxu0 0.0
    %565 = vmatprep.subr.mxu0 0.0
    %566 = vmatpush1.msra.mxu0 0.0
    %567 = vmatprep.subr.mxu0 0.0
    %568 = vmatpush1.msra.mxu0 0.0
    %569 = vmatprep.subr.mxu0 0.0
    %570 = vmatpush1.msra.mxu0 0.0
    %571 = vmatprep.subr.mxu0 0.0
    %572 = vmatpush1.msra.mxu0 0.0
    %573 = vmatprep.subr.mxu0 0.0
    %574 = vmatpush1.msra.mxu0 0.0
    %575 = vmatprep.subr.mxu0 0.0
    %576 = vmatpush1.msra.mxu0 0.0
    %577 = vmatprep.subr.mxu0 0.0
    %578 = vmatpush1.msra.mxu0 0.0
    %579 = vmatprep.subr.mxu0 0.0
    %580 = vmatpush1.msra.mxu0 0.0
    %581 = vmatprep.subr.mxu0 0.0
    %582 = vmatpush1.msra.mxu0 0.0
    %583 = vmatprep.subr.mxu0 0.0
    %584 = vmatpush1.msra.mxu0 0.0
    %585 = vmatprep.subr.mxu0 0.0
    %586 = vmatpush1.msra.mxu0 0.0
    %587 = vmatprep.subr.mxu0 0.0
    %588 = vmatpush1.msra.mxu0 0.0
    %589 = vmatprep.subr.mxu0 0.0
    %590 = vmatpush1.msra.mxu0 0.0
    %591 = vmatprep.subr.mxu0 0.0
    %592 = vmatpush1.msra.mxu0 0.0
    %593 = vmatprep.subr.mxu0 0.0
    %594 = vmatpush1.msra.mxu0 0.0
    %595 = vmatprep.subr.mxu0 0.0
    %596 = vmatpush1.msra.mxu0 0.0
    %597 = vmatprep.subr.mxu0 0.0
    %598 = vmatpush1.msra.mxu0 0.0
    %599 = vmatprep.subr.mxu0 0.0
    %600 = vmatpush1.msra.mxu0 0.0
    %601 = vmatprep.subr.mxu0 0.0
    %602 = vmatpush1.msra.mxu0 0.0
    %603 = vmatprep.subr.mxu0 0.0
    %604 = vmatpush1.msra.mxu0 0.0
    %605 = vmatprep.subr.mxu0 0.0
    %606 = vmatpush1.msra.mxu0 0.0
    %607 = vmatprep.subr.mxu0 0.0
    %608 = vmatpush1.msra.mxu0 0.0
    %609 = vmatprep.subr.mxu0 0.0
    %610 = vmatpush1.msra.mxu0 0.0
    %611 = vmatprep.subr.mxu0 0.0
    %612 = vmatpush1.msra.mxu0 0.0
    %613 = vmatprep.mubr.f32.mxu0 0.0
    %614 = vmatmul.mubr.f32.gmra.mrb[0].mxu0 %v547
    %v615 = vpop.f32.mrb[0].mxu0
    %v616 = vadd.f32 0.0, %v615
    %v617 = vpop.f32.mrb[0].mxu0
    %618 = vdwg.mxu0
    %v619 = vadd.f32 %v201, %v616
    %v620 = vxor.u32 %v619, 2147483648
    %v621 = vmul.f32 %v620, 1.442695
    %v622 = vpow.pop %v621
    %v623 = vadd.f32 %v622, 1.0
    %v624 = vrcp.pop %v623
    %v625 = vmul.f32 1.0, %v624
    %v626 = vtanh.pop %v619
    %v627 = vmul.f32 %v625, %v543
    %629 = vrot.lane.b32.xlu0 %v626, 64
    %v630 = vpop.permute.xlu0 %629
    %v632 = vmul.f32 %v625, %v630
    %634 = vrot.lane.b32.xlu0 %v632, 32
    %v635 = vpop.permute.xlu0 %634
    %v637 = vadd.f32 %v627, %v635
    %v638 = vtanh.pop %v637
    %640 = vrot.lane.b32.xlu0 %v638, 64
    %v641 = vpop.permute.xlu0 %640
    %v643 = vmul.f32 %v625, %v641
    %v644 = vsel %vm68, 1, 0
    %645 = vset.pattern.permute.xlu0 0
    %646 = vperm.xlu0 %645, %v644
    %v647 = vpop.permute.xlu0 %646
    %vm648 = vcmp.eq.s32.totalorder %v647, 1
    %v649 = vsel %vm648, %v643, %v542
    %v650 = vsel %vm648, %v637, %v543
    %652 = vrot.lane.b32.xlu0 %v649, 32
    %v653 = vpop.permute.xlu0 %652
    %v654 = vsel %vm224, %v653, 0
    %656 = vmatprep.subr.mxu0 0.0
    %657 = vmatpush1.msra.mxu0 %v83
    %658 = vmatprep.subr.mxu0 0.0
    %659 = vmatpush1.msra.mxu0 %v84
    %660 = vmatprep.subr.mxu0 0.0
    %661 = vmatpush1.msra.mxu0 %v85
    %662 = vmatprep.subr.mxu0 0.0
    %663 = vmatpush1.msra.mxu0 %v86
    %664 = vmatprep.subr.mxu0 0.0
    %665 = vmatpush1.msra.mxu0 0.0
    %666 = vmatprep.subr.mxu0 0.0
    %667 = vmatpush1.msra.mxu0 0.0
    %668 = vmatprep.subr.mxu0 0.0
    %669 = vmatpush1.msra.mxu0 0.0
    %670 = vmatprep.subr.mxu0 0.0
    %671 = vmatpush1.msra.mxu0 0.0
    %672 = vmatprep.subr.mxu0 0.0
    %673 = vmatpush1.msra.mxu0 0.0
    %674 = vmatprep.subr.mxu0 0.0
    %675 = vmatpush1.msra.mxu0 0.0
    %676 = vmatprep.subr.mxu0 0.0
    %677 = vmatpush1.msra.mxu0 0.0
    %678 = vmatprep.subr.mxu0 0.0
    %679 = vmatpush1.msra.mxu0 0.0
    %680 = vmatprep.subr.mxu0 0.0
    %681 = vmatpush1.msra.mxu0 0.0
    %682 = vmatprep.subr.mxu0 0.0
    %683 = vmatpush1.msra.mxu0 0.0
    %684 = vmatprep.subr.mxu0 0.0
    %685 = vmatpush1.msra.mxu0 0.0
    %686 = vmatprep.subr.mxu0 0.0
    %687 = vmatpush1.msra.mxu0 0.0
    %688 = vmatprep.subr.mxu0 0.0
    %689 = vmatpush1.msra.mxu0 0.0
    %690 = vmatprep.subr.mxu0 0.0
    %691 = vmatpush1.msra.mxu0 0.0
    %692 = vmatprep.subr.mxu0 0.0
    %693 = vmatpush1.msra.mxu0 0.0
    %694 = vmatprep.subr.mxu0 0.0
    %695 = vmatpush1.msra.mxu0 0.0
    %696 = vmatprep.subr.mxu0 0.0
    %697 = vmatpush1.msra.mxu0 0.0
    %698 = vmatprep.subr.mxu0 0.0
    %699 = vmatpush1.msra.mxu0 0.0
    %700 = vmatprep.subr.mxu0 0.0
    %701 = vmatpush1.msra.mxu0 0.0
    %702 = vmatprep.subr.mxu0 0.0
    %703 = vmatpush1.msra.mxu0 0.0
    %704 = vmatprep.subr.mxu0 0.0
    %705 = vmatpush1.msra.mxu0 0.0
    %706 = vmatprep.subr.mxu0 0.0
    %707 = vmatpush1.msra.mxu0 0.0
    %708 = vmatprep.subr.mxu0 0.0
    %709 = vmatpush1.msra.mxu0 0.0
    %710 = vmatprep.subr.mxu0 0.0
    %711 = vmatpush1.msra.mxu0 0.0
    %712 = vmatprep.subr.mxu0 0.0
    %713 = vmatpush1.msra.mxu0 0.0
    %714 = vmatprep.subr.mxu0 0.0
    %715 = vmatpush1.msra.mxu0 0.0
    %716 = vmatprep.subr.mxu0 0.0
    %717 = vmatpush1.msra.mxu0 0.0
    %718 = vmatprep.subr.mxu0 0.0
    %719 = vmatpush1.msra.mxu0 0.0
    %720 = vmatprep.mubr.f32.mxu0 0.0
    %721 = vmatmul.mubr.f32.gmra.mrb[0].mxu0 %v654
    %v722 = vpop.f32.mrb[0].mxu0
    %v723 = vadd.f32 0.0, %v722
    %v724 = vpop.f32.mrb[0].mxu0
    %725 = vdwg.mxu0
    %v726 = vadd.f32 %v206, %v723
    %v727 = vxor.u32 %v726, 2147483648
    %v728 = vmul.f32 %v727, 1.442695
    %v729 = vpow.pop %v728
    %v730 = vadd.f32 %v729, 1.0
    %v731 = vrcp.pop %v730
    %v732 = vmul.f32 1.0, %v731
    %v733 = vtanh.pop %v726
    %v734 = vmul.f32 %v732, %v650
    %736 = vrot.lane.b32.xlu0 %v733, 64
    %v737 = vpop.permute.xlu0 %736
    %v739 = vmul.f32 %v732, %v737
    %741 = vrot.lane.b32.xlu0 %v739, 32
    %v742 = vpop.permute.xlu0 %741
    %v744 = vadd.f32 %v734, %v742
    %v745 = vtanh.pop %v744
    %747 = vrot.lane.b32.xlu0 %v745, 64
    %v748 = vpop.permute.xlu0 %747
    %v750 = vmul.f32 %v732, %v748
    %v751 = vsel %vm69, 1, 0
    %752 = vset.pattern.permute.xlu0 0
    %753 = vperm.xlu0 %752, %v751
    %v754 = vpop.permute.xlu0 %753
    %vm755 = vcmp.eq.s32.totalorder %v754, 1
    %v756 = vsel %vm755, %v750, %v649
    %v757 = vsel %vm755, %v744, %v650
    %759 = vrot.lane.b32.xlu0 %v756, 32
    %v760 = vpop.permute.xlu0 %759
    %v761 = vsel %vm224, %v760, 0
    %763 = vmatprep.subr.mxu0 0.0
    %764 = vmatpush1.msra.mxu0 %v83
    %765 = vmatprep.subr.mxu0 0.0
    %766 = vmatpush1.msra.mxu0 %v84
    %767 = vmatprep.subr.mxu0 0.0
    %768 = vmatpush1.msra.mxu0 %v85
    %769 = vmatprep.subr.mxu0 0.0
    %770 = vmatpush1.msra.mxu0 %v86
    %771 = vmatprep.subr.mxu0 0.0
    %772 = vmatpush1.msra.mxu0 0.0
    %773 = vmatprep.subr.mxu0 0.0
    %774 = vmatpush1.msra.mxu0 0.0
    %775 = vmatprep.subr.mxu0 0.0
    %776 = vmatpush1.msra.mxu0 0.0
    %777 = vmatprep.subr.mxu0 0.0
    %778 = vmatpush1.msra.mxu0 0.0
    %779 = vmatprep.subr.mxu0 0.0
    %780 = vmatpush1.msra.mxu0 0.0
    %781 = vmatprep.subr.mxu0 0.0
    %782 = vmatpush1.msra.mxu0 0.0
    %783 = vmatprep.subr.mxu0 0.0
    %784 = vmatpush1.msra.mxu0 0.0
    %785 = vmatprep.subr.mxu0 0.0
    %786 = vmatpush1.msra.mxu0 0.0
    %787 = vmatprep.subr.mxu0 0.0
    %788 = vmatpush1.msra.mxu0 0.0
    %789 = vmatprep.subr.mxu0 0.0
    %790 = vmatpush1.msra.mxu0 0.0
    %791 = vmatprep.subr.mxu0 0.0
    %792 = vmatpush1.msra.mxu0 0.0
    %793 = vmatprep.subr.mxu0 0.0
    %794 = vmatpush1.msra.mxu0 0.0
    %795 = vmatprep.subr.mxu0 0.0
    %796 = vmatpush1.msra.mxu0 0.0
    %797 = vmatprep.subr.mxu0 0.0
    %798 = vmatpush1.msra.mxu0 0.0
    %799 = vmatprep.subr.mxu0 0.0
    %800 = vmatpush1.msra.mxu0 0.0
    %801 = vmatprep.subr.mxu0 0.0
    %802 = vmatpush1.msra.mxu0 0.0
    %803 = vmatprep.subr.mxu0 0.0
    %804 = vmatpush1.msra.mxu0 0.0
    %805 = vmatprep.subr.mxu0 0.0
    %806 = vmatpush1.msra.mxu0 0.0
    %807 = vmatprep.subr.mxu0 0.0
    %808 = vmatpush1.msra.mxu0 0.0
    %809 = vmatprep.subr.mxu0 0.0
    %810 = vmatpush1.msra.mxu0 0.0
    %811 = vmatprep.subr.mxu0 0.0
    %812 = vmatpush1.msra.mxu0 0.0
    %813 = vmatprep.subr.mxu0 0.0
    %814 = vmatpush1.msra.mxu0 0.0
    %815 = vmatprep.subr.mxu0 0.0
    %816 = vmatpush1.msra.mxu0 0.0
    %817 = vmatprep.subr.mxu0 0.0
    %818 = vmatpush1.msra.mxu0 0.0
    %819 = vmatprep.subr.mxu0 0.0
    %820 = vmatpush1.msra.mxu0 0.0
    %821 = vmatprep.subr.mxu0 0.0
    %822 = vmatpush1.msra.mxu0 0.0
    %823 = vmatprep.subr.mxu0 0.0
    %824 = vmatpush1.msra.mxu0 0.0
    %825 = vmatprep.subr.mxu0 0.0
    %826 = vmatpush1.msra.mxu0 0.0
    %827 = vmatprep.mubr.f32.mxu0 0.0
    %828 = vmatmul.mubr.f32.gmra.mrb[0].mxu0 %v761
    %v829 = vpop.f32.mrb[0].mxu0
    %v830 = vadd.f32 0.0, %v829
    %v831 = vpop.f32.mrb[0].mxu0
    %832 = vdwg.mxu0
    %v833 = vadd.f32 %v211, %v830
    %v834 = vxor.u32 %v833, 2147483648
    %v835 = vmul.f32 %v834, 1.442695
    %v836 = vpow.pop %v835
    %v837 = vadd.f32 %v836, 1.0
    %v838 = vrcp.pop %v837
    %v839 = vmul.f32 1.0, %v838
    %v840 = vtanh.pop %v833
    %v841 = vmul.f32 %v839, %v757
    %843 = vrot.lane.b32.xlu0 %v840, 64
    %v844 = vpop.permute.xlu0 %843
    %v846 = vmul.f32 %v839, %v844
    %848 = vrot.lane.b32.xlu0 %v846, 32
    %v849 = vpop.permute.xlu0 %848
    %v851 = vadd.f32 %v841, %v849
    %v852 = vtanh.pop %v851
    %854 = vrot.lane.b32.xlu0 %v852, 64
    %v855 = vpop.permute.xlu0 %854
    %v857 = vmul.f32 %v839, %v855
    %v858 = vsel %vm70, 1, 0
    %859 = vset.pattern.permute.xlu0 0
    %860 = vperm.xlu0 %859, %v858
    %v861 = vpop.permute.xlu0 %860
    %vm862 = vcmp.eq.s32.totalorder %v861, 1
    %v863 = vsel %vm862, %v857, %v756
    %v864 = vsel %vm862, %v851, %v757
    %866 = vrot.lane.b32.xlu0 %v863, 32
    %v867 = vpop.permute.xlu0 %866
    %v868 = vsel %vm224, %v867, 0
    %870 = vmatprep.subr.mxu0 0.0
    %871 = vmatpush1.msra.mxu0 %v83
    %872 = vmatprep.subr.mxu0 0.0
    %873 = vmatpush1.msra.mxu0 %v84
    %874 = vmatprep.subr.mxu0 0.0
    %875 = vmatpush1.msra.mxu0 %v85
    %876 = vmatprep.subr.mxu0 0.0
    %877 = vmatpush1.msra.mxu0 %v86
    %878 = vmatprep.subr.mxu0 0.0
    %879 = vmatpush1.msra.mxu0 0.0
    %880 = vmatprep.subr.mxu0 0.0
    %881 = vmatpush1.msra.mxu0 0.0
    %882 = vmatprep.subr.mxu0 0.0
    %883 = vmatpush1.msra.mxu0 0.0
    %884 = vmatprep.subr.mxu0 0.0
    %885 = vmatpush1.msra.mxu0 0.0
    %886 = vmatprep.subr.mxu0 0.0
    %887 = vmatpush1.msra.mxu0 0.0
    %888 = vmatprep.subr.mxu0 0.0
    %889 = vmatpush1.msra.mxu0 0.0
    %890 = vmatprep.subr.mxu0 0.0
    %891 = vmatpush1.msra.mxu0 0.0
    %892 = vmatprep.subr.mxu0 0.0
    %893 = vmatpush1.msra.mxu0 0.0
    %894 = vmatprep.subr.mxu0 0.0
    %895 = vmatpush1.msra.mxu0 0.0
    %896 = vmatprep.subr.mxu0 0.0
    %897 = vmatpush1.msra.mxu0 0.0
    %898 = vmatprep.subr.mxu0 0.0
    %899 = vmatpush1.msra.mxu0 0.0
    %900 = vmatprep.subr.mxu0 0.0
    %901 = vmatpush1.msra.mxu0 0.0
    %902 = vmatprep.subr.mxu0 0.0
    %903 = vmatpush1.msra.mxu0 0.0
    %904 = vmatprep.subr.mxu0 0.0
    %905 = vmatpush1.msra.mxu0 0.0
    %906 = vmatprep.subr.mxu0 0.0
    %907 = vmatpush1.msra.mxu0 0.0
    %908 = vmatprep.subr.mxu0 0.0
    %909 = vmatpush1.msra.mxu0 0.0
    %910 = vmatprep.subr.mxu0 0.0
    %911 = vmatpush1.msra.mxu0 0.0
    %912 = vmatprep.subr.mxu0 0.0
    %913 = vmatpush1.msra.mxu0 0.0
    %914 = vmatprep.subr.mxu0 0.0
    %915 = vmatpush1.msra.mxu0 0.0
    %916 = vmatprep.subr.mxu0 0.0
    %917 = vmatpush1.msra.mxu0 0.0
    %918 = vmatprep.subr.mxu0 0.0
    %919 = vmatpush1.msra.mxu0 0.0
    %920 = vmatprep.subr.mxu0 0.0
    %921 = vmatpush1.msra.mxu0 0.0
    %922 = vmatprep.subr.mxu0 0.0
    %923 = vmatpush1.msra.mxu0 0.0
    %924 = vmatprep.subr.mxu0 0.0
    %925 = vmatpush1.msra.mxu0 0.0
    %926 = vmatprep.subr.mxu0 0.0
    %927 = vmatpush1.msra.mxu0 0.0
    %928 = vmatprep.subr.mxu0 0.0
    %929 = vmatpush1.msra.mxu0 0.0
    %930 = vmatprep.subr.mxu0 0.0
    %931 = vmatpush1.msra.mxu0 0.0
    %932 = vmatprep.subr.mxu0 0.0
    %933 = vmatpush1.msra.mxu0 0.0
    %934 = vmatprep.mubr.f32.mxu0 0.0
    %935 = vmatmul.mubr.f32.gmra.mrb[0].mxu0 %v868
    %v936 = vpop.f32.mrb[0].mxu0
    %v937 = vadd.f32 0.0, %v936
    %v938 = vpop.f32.mrb[0].mxu0
    %939 = vdwg.mxu0
    %v940 = vadd.f32 %v216, %v937
    %v941 = vxor.u32 %v940, 2147483648
    %v942 = vmul.f32 %v941, 1.442695
    %v943 = vpow.pop %v942
    %v944 = vadd.f32 %v943, 1.0
    %v945 = vrcp.pop %v944
    %v946 = vmul.f32 1.0, %v945
    %v947 = vtanh.pop %v940
    %v948 = vmul.f32 %v946, %v864
    %950 = vrot.lane.b32.xlu0 %v947, 64
    %v951 = vpop.permute.xlu0 %950
    %v953 = vmul.f32 %v946, %v951
    %955 = vrot.lane.b32.xlu0 %v953, 32
    %v956 = vpop.permute.xlu0 %955
    %v958 = vadd.f32 %v948, %v956
    %v959 = vtanh.pop %v958
    %961 = vrot.lane.b32.xlu0 %v959, 64
    %v962 = vpop.permute.xlu0 %961
    %v964 = vmul.f32 %v946, %v962
    %v965 = vsel %vm71, 1, 0
    %966 = vset.pattern.permute.xlu0 0
    %967 = vperm.xlu0 %966, %v965
    %v968 = vpop.permute.xlu0 %967
    %vm969 = vcmp.eq.s32.totalorder %v968, 1
    %v970 = vsel %vm969, %v964, %v863
    %v971 = vsel %vm969, %v958, %v864
    %973 = vrot.lane.b32.xlu0 %v970, 32
    %v974 = vpop.permute.xlu0 %973
    %v975 = vsel %vm224, %v974, 0
    %977 = vmatprep.subr.mxu0 0.0
    %978 = vmatpush1.msra.mxu0 %v83
    %979 = vmatprep.subr.mxu0 0.0
    %980 = vmatpush1.msra.mxu0 %v84
    %981 = vmatprep.subr.mxu0 0.0
    %982 = vmatpush1.msra.mxu0 %v85
    %983 = vmatprep.subr.mxu0 0.0
    %984 = vmatpush1.msra.mxu0 %v86
    %985 = vmatprep.subr.mxu0 0.0
    %986 = vmatpush1.msra.mxu0 0.0
    %987 = vmatprep.subr.mxu0 0.0
    %988 = vmatpush1.msra.mxu0 0.0
    %989 = vmatprep.subr.mxu0 0.0
    %990 = vmatpush1.msra.mxu0 0.0
    %991 = vmatprep.subr.mxu0 0.0
    %992 = vmatpush1.msra.mxu0 0.0
    %993 = vmatprep.subr.mxu0 0.0
    %994 = vmatpush1.msra.mxu0 0.0
    %995 = vmatprep.subr.mxu0 0.0
    %996 = vmatpush1.msra.mxu0 0.0
    %997 = vmatprep.subr.mxu0 0.0
    %998 = vmatpush1.msra.mxu0 0.0
    %999 = vmatprep.subr.mxu0 0.0
    %1000 = vmatpush1.msra.mxu0 0.0
    %1001 = vmatprep.subr.mxu0 0.0
    %1002 = vmatpush1.msra.mxu0 0.0
    %1003 = vmatprep.subr.mxu0 0.0
    %1004 = vmatpush1.msra.mxu0 0.0
    %1005 = vmatprep.subr.mxu0 0.0
    %1006 = vmatpush1.msra.mxu0 0.0
    %1007 = vmatprep.subr.mxu0 0.0
    %1008 = vmatpush1.msra.mxu0 0.0
    %1009 = vmatprep.subr.mxu0 0.0
    %1010 = vmatpush1.msra.mxu0 0.0
    %1011 = vmatprep.subr.mxu0 0.0
    %1012 = vmatpush1.msra.mxu0 0.0
    %1013 = vmatprep.subr.mxu0 0.0
    %1014 = vmatpush1.msra.mxu0 0.0
    %1015 = vmatprep.subr.mxu0 0.0
    %1016 = vmatpush1.msra.mxu0 0.0
    %1017 = vmatprep.subr.mxu0 0.0
    %1018 = vmatpush1.msra.mxu0 0.0
    %1019 = vmatprep.subr.mxu0 0.0
    %1020 = vmatpush1.msra.mxu0 0.0
    %1021 = vmatprep.subr.mxu0 0.0
    %1022 = vmatpush1.msra.mxu0 0.0
    %1023 = vmatprep.subr.mxu0 0.0
    %1024 = vmatpush1.msra.mxu0 0.0
    %1025 = vmatprep.subr.mxu0 0.0
    %1026 = vmatpush1.msra.mxu0 0.0
    %1027 = vmatprep.subr.mxu0 0.0
    %1028 = vmatpush1.msra.mxu0 0.0
    %1029 = vmatprep.subr.mxu0 0.0
    %1030 = vmatpush1.msra.mxu0 0.0
    %1031 = vmatprep.subr.mxu0 0.0
    %1032 = vmatpush1.msra.mxu0 0.0
    %1033 = vmatprep.subr.mxu0 0.0
    %1034 = vmatpush1.msra.mxu0 0.0
    %1035 = vmatprep.subr.mxu0 0.0
    %1036 = vmatpush1.msra.mxu0 0.0
    %1037 = vmatprep.subr.mxu0 0.0
    %1038 = vmatpush1.msra.mxu0 0.0
    %1039 = vmatprep.subr.mxu0 0.0
    %1040 = vmatpush1.msra.mxu0 0.0
    %1041 = vmatprep.mubr.f32.mxu0 0.0
    %1042 = vmatmul.mubr.f32.gmra.mrb[0].mxu0 %v975
    %v1043 = vpop.f32.mrb[0].mxu0
    %v1044 = vadd.f32 0.0, %v1043
    %v1045 = vpop.f32.mrb[0].mxu0
    %1046 = vdwg.mxu0
    %v1047 = vadd.f32 %v221, %v1044
    %v1048 = vxor.u32 %v1047, 2147483648
    %v1049 = vmul.f32 %v1048, 1.442695
    %v1050 = vpow.pop %v1049
    %v1051 = vadd.f32 %v1050, 1.0
    %v1052 = vrcp.pop %v1051
    %v1053 = vmul.f32 1.0, %v1052
    %v1054 = vtanh.pop %v1047
    %v1055 = vmul.f32 %v1053, %v971
    %1057 = vrot.lane.b32.xlu0 %v1054, 64
    %v1058 = vpop.permute.xlu0 %1057
    %v1060 = vmul.f32 %v1053, %v1058
    %1062 = vrot.lane.b32.xlu0 %v1060, 32
    %v1063 = vpop.permute.xlu0 %1062
    %v1065 = vadd.f32 %v1055, %v1063
    %v1066 = vtanh.pop %v1065
    %1068 = vrot.lane.b32.xlu0 %v1066, 64
    %v1069 = vpop.permute.xlu0 %1068
    %v1071 = vmul.f32 %v1053, %v1069
    %v1072 = vsel %vm72, 1, 0
    %1073 = vset.pattern.permute.xlu0 0
    %1074 = vperm.xlu0 %1073, %v1072
    %v1075 = vpop.permute.xlu0 %1074
    %vm1076 = vcmp.eq.s32.totalorder %v1075, 1
    %v1077 = vsel %vm1076, %v1071, %v970
    %v1078 = vsel %vm1076, %v1065, %v971
    %v1079 = vld [vmem:[%s3] sm:$0xff]
    %v1080 = vld [vmem:[%s3 + $0x8] sm:$0xff]
    %v1081 = vld [vmem:[%s3 + $0x10] sm:$0xff]
    %v1082 = vld [vmem:[%s3 + $0x18] sm:$0xff]
    %v1083 = vld [vmem:[%s5] sm:$0xff]
    %v1084 = vld [vmem:[%s5 + $0x8] sm:$0xff]
    %v1085 = vld [vmem:[%s5 + $0x10] sm:$0xff]
    %v1086 = vld [vmem:[%s5 + $0x18] sm:$0xff]
    %v1087 = vld [vmem:[%s7] sm:$0x1]
    %v1089 = vlaneseq
    %v1090 = vshrl.u32 %v1089, 7
    %v1091 = vsub.s32 0, %v1090
    %v1092 = vrot.slane %v1087, %v1091
    %1095 = vrot.lane.b32.xlu0 %v1077, 32
    %v1096 = vpop.permute.xlu0 %1095
    %v1097 = vsel %vm224, %v1096, 0
    %1099 = vmatprep.subr.mxu0 0.0
    %1100 = vmatpush1.msra.mxu0 %v1079
    %1101 = vmatprep.subr.mxu0 0.0
    %1102 = vmatpush1.msra.mxu0 %v1080
    %1103 = vmatprep.subr.mxu0 0.0
    %1104 = vmatpush1.msra.mxu0 %v1081
    %1105 = vmatprep.subr.mxu0 0.0
    %1106 = vmatpush1.msra.mxu0 %v1082
    %1107 = vmatprep.subr.mxu0 0.0
    %1108 = vmatpush1.msra.mxu0 0.0
    %1109 = vmatprep.subr.mxu0 0.0
    %1110 = vmatpush1.msra.mxu0 0.0
    %1111 = vmatprep.subr.mxu0 0.0
    %1112 = vmatpush1.msra.mxu0 0.0
    %1113 = vmatprep.subr.mxu0 0.0
    %1114 = vmatpush1.msra.mxu0 0.0
    %1115 = vmatprep.subr.mxu0 0.0
    %1116 = vmatpush1.msra.mxu0 0.0
    %1117 = vmatprep.subr.mxu0 0.0
    %1118 = vmatpush1.msra.mxu0 0.0
    %1119 = vmatprep.subr.mxu0 0.0
    %1120 = vmatpush1.msra.mxu0 0.0
    %1121 = vmatprep.subr.mxu0 0.0
    %1122 = vmatpush1.msra.mxu0 0.0
    %1123 = vmatprep.subr.mxu0 0.0
    %1124 = vmatpush1.msra.mxu0 0.0
    %1125 = vmatprep.subr.mxu0 0.0
    %1126 = vmatpush1.msra.mxu0 0.0
    %1127 = vmatprep.subr.mxu0 0.0
    %1128 = vmatpush1.msra.mxu0 0.0
    %1129 = vmatprep.subr.mxu0 0.0
    %1130 = vmatpush1.msra.mxu0 0.0
    %1131 = vmatprep.subr.mxu0 0.0
    %1132 = vmatpush1.msra.mxu0 0.0
    %1133 = vmatprep.subr.mxu0 0.0
    %1134 = vmatpush1.msra.mxu0 0.0
    %1135 = vmatprep.subr.mxu0 0.0
    %1136 = vmatpush1.msra.mxu0 0.0
    %1137 = vmatprep.subr.mxu0 0.0
    %1138 = vmatpush1.msra.mxu0 0.0
    %1139 = vmatprep.subr.mxu0 0.0
    %1140 = vmatpush1.msra.mxu0 0.0
    %1141 = vmatprep.subr.mxu0 0.0
    %1142 = vmatpush1.msra.mxu0 0.0
    %1143 = vmatprep.subr.mxu0 0.0
    %1144 = vmatpush1.msra.mxu0 0.0
    %1145 = vmatprep.subr.mxu0 0.0
    %1146 = vmatpush1.msra.mxu0 0.0
    %1147 = vmatprep.subr.mxu0 0.0
    %1148 = vmatpush1.msra.mxu0 0.0
    %1149 = vmatprep.subr.mxu0 0.0
    %1150 = vmatpush1.msra.mxu0 0.0
    %1151 = vmatprep.subr.mxu0 0.0
    %1152 = vmatpush1.msra.mxu0 0.0
    %1153 = vmatprep.subr.mxu0 0.0
    %1154 = vmatpush1.msra.mxu0 0.0
    %1155 = vmatprep.subr.mxu0 0.0
    %1156 = vmatpush1.msra.mxu0 0.0
    %1157 = vmatprep.subr.mxu0 0.0
    %1158 = vmatpush1.msra.mxu0 0.0
    %1159 = vmatprep.subr.mxu0 0.0
    %1160 = vmatpush1.msra.mxu0 0.0
    %1161 = vmatprep.subr.mxu0 0.0
    %1162 = vmatpush1.msra.mxu0 0.0
    %1163 = vmatprep.mubr.f32.mxu0 0.0
    %1164 = vmatmul.mubr.f32.gmra.mrb[0].mxu0 %v333
    %v1165 = vpop.f32.mrb[0].mxu0
    %v1166 = vadd.f32 %v1092, %v1165
    %v1167 = vpop.f32.mrb[0].mxu0
    %1168 = vmatprep.mubr.f32.mxu0 0.0
    %1169 = vmatmul.mubr.f32.gmra.mrb[0].mxu0 %v440
    %v1170 = vpop.f32.mrb[0].mxu0
    %v1171 = vadd.f32 %v1092, %v1170
    %v1172 = vpop.f32.mrb[0].mxu0
    %1173 = vmatprep.mubr.f32.mxu0 0.0
    %1174 = vmatmul.mubr.f32.gmra.mrb[0].mxu0 %v547
    %v1175 = vpop.f32.mrb[0].mxu0
    %v1176 = vadd.f32 %v1092, %v1175
    %v1177 = vpop.f32.mrb[0].mxu0
    %1178 = vmatprep.mubr.f32.mxu0 0.0
    %1179 = vmatmul.mubr.f32.gmra.mrb[0].mxu0 %v654
    %v1180 = vpop.f32.mrb[0].mxu0
    %v1181 = vadd.f32 %v1092, %v1180
    %v1182 = vpop.f32.mrb[0].mxu0
    %1183 = vmatprep.mubr.f32.mxu0 0.0
    %1184 = vmatmul.mubr.f32.gmra.mrb[0].mxu0 %v761
    %v1185 = vpop.f32.mrb[0].mxu0
    %v1186 = vadd.f32 %v1092, %v1185
    %v1187 = vpop.f32.mrb[0].mxu0
    %1188 = vmatprep.mubr.f32.mxu0 0.0
    %1189 = vmatmul.mubr.f32.gmra.mrb[0].mxu0 %v868
    %v1190 = vpop.f32.mrb[0].mxu0
    %v1191 = vadd.f32 %v1092, %v1190
    %v1192 = vpop.f32.mrb[0].mxu0
    %1193 = vmatprep.mubr.f32.mxu0 0.0
    %1194 = vmatmul.mubr.f32.gmra.mrb[0].mxu0 %v975
    %v1195 = vpop.f32.mrb[0].mxu0
    %v1196 = vadd.f32 %v1092, %v1195
    %v1197 = vpop.f32.mrb[0].mxu0
    %1198 = vmatprep.mubr.f32.mxu0 0.0
    %1199 = vmatmul.mubr.f32.gmra.mrb[0].mxu0 %v1097
    %v1200 = vpop.f32.mrb[0].mxu0
    %v1201 = vadd.f32 %v1092, %v1200
    %v1202 = vpop.f32.mrb[0].mxu0
    %1203 = vdwg.mxu0
    %1204 = vmatprep.subr.mxu0 0.0
    %1205 = vmatpush1.msra.mxu0 %v1083
    %1206 = vmatprep.subr.mxu0 0.0
    %1207 = vmatpush1.msra.mxu0 %v1084
    %1208 = vmatprep.subr.mxu0 0.0
    %1209 = vmatpush1.msra.mxu0 %v1085
    %1210 = vmatprep.subr.mxu0 0.0
    %1211 = vmatpush1.msra.mxu0 %v1086
    %1212 = vmatprep.subr.mxu0 0.0
    %1213 = vmatpush1.msra.mxu0 0.0
    %1214 = vmatprep.subr.mxu0 0.0
    %1215 = vmatpush1.msra.mxu0 0.0
    %1216 = vmatprep.subr.mxu0 0.0
    %1217 = vmatpush1.msra.mxu0 0.0
    %1218 = vmatprep.subr.mxu0 0.0
    %1219 = vmatpush1.msra.mxu0 0.0
    %1220 = vmatprep.subr.mxu0 0.0
    %1221 = vmatpush1.msra.mxu0 0.0
    %1222 = vmatprep.subr.mxu0 0.0
    %1223 = vmatpush1.msra.mxu0 0.0
    %1224 = vmatprep.subr.mxu0 0.0
    %1225 = vmatpush1.msra.mxu0 0.0
    %1226 = vmatprep.subr.mxu0 0.0
    %1227 = vmatpush1.msra.mxu0 0.0
    %1228 = vmatprep.subr.mxu0 0.0
    %1229 = vmatpush1.msra.mxu0 0.0
    %1230 = vmatprep.subr.mxu0 0.0
    %1231 = vmatpush1.msra.mxu0 0.0
    %1232 = vmatprep.subr.mxu0 0.0
    %1233 = vmatpush1.msra.mxu0 0.0
    %1234 = vmatprep.subr.mxu0 0.0
    %1235 = vmatpush1.msra.mxu0 0.0
    %1236 = vmatprep.subr.mxu0 0.0
    %1237 = vmatpush1.msra.mxu0 0.0
    %1238 = vmatprep.subr.mxu0 0.0
    %1239 = vmatpush1.msra.mxu0 0.0
    %1240 = vmatprep.subr.mxu0 0.0
    %1241 = vmatpush1.msra.mxu0 0.0
    %1242 = vmatprep.subr.mxu0 0.0
    %1243 = vmatpush1.msra.mxu0 0.0
    %1244 = vmatprep.subr.mxu0 0.0
    %1245 = vmatpush1.msra.mxu0 0.0
    %1246 = vmatprep.subr.mxu0 0.0
    %1247 = vmatpush1.msra.mxu0 0.0
    %1248 = vmatprep.subr.mxu0 0.0
    %1249 = vmatpush1.msra.mxu0 0.0
    %1250 = vmatprep.subr.mxu0 0.0
    %1251 = vmatpush1.msra.mxu0 0.0
    %1252 = vmatprep.subr.mxu0 0.0
    %1253 = vmatpush1.msra.mxu0 0.0
    %1254 = vmatprep.subr.mxu0 0.0
    %1255 = vmatpush1.msra.mxu0 0.0
    %1256 = vmatprep.subr.mxu0 0.0
    %1257 = vmatpush1.msra.mxu0 0.0
    %1258 = vmatprep.subr.mxu0 0.0
    %1259 = vmatpush1.msra.mxu0 0.0
    %1260 = vmatprep.subr.mxu0 0.0
    %1261 = vmatpush1.msra.mxu0 0.0
    %1262 = vmatprep.subr.mxu0 0.0
    %1263 = vmatpush1.msra.mxu0 0.0
    %1264 = vmatprep.subr.mxu0 0.0
    %1265 = vmatpush1.msra.mxu0 0.0
    %1266 = vmatprep.subr.mxu0 0.0
    %1267 = vmatpush1.msra.mxu0 0.0
    %1268 = vmatprep.mubr.f32.mxu0 0.0
    %1269 = vmatmul.mubr.f32.gmra.mrb[0].mxu0 %v226
    %v1270 = vpop.f32.mrb[0].mxu0
    %v1271 = vadd.f32 0.0, %v1270
    %v1272 = vpop.f32.mrb[0].mxu0
    %1273 = vdwg.mxu0
    %v1274 = vadd.f32 %v1166, %v1271
    %v1275 = vxor.u32 %v1274, 2147483648
    %v1276 = vmul.f32 %v1275, 1.442695
    %v1277 = vpow.pop %v1276
    %v1278 = vadd.f32 %v1277, 1.0
    %v1279 = vrcp.pop %v1278
    %v1280 = vmul.f32 1.0, %v1279
    %v1281 = vtanh.pop %v1274
    %v1282 = vmul.f32 %v1280, 0.0
    %1284 = vrot.lane.b32.xlu0 %v1281, 64
    %v1285 = vpop.permute.xlu0 %1284
    %v1287 = vmul.f32 %v1280, %v1285
    %1289 = vrot.lane.b32.xlu0 %v1287, 32
    %v1290 = vpop.permute.xlu0 %1289
    %v1292 = vadd.f32 %v1282, %v1290
    %v1293 = vtanh.pop %v1292
    %1295 = vrot.lane.b32.xlu0 %v1293, 64
    %v1296 = vpop.permute.xlu0 %1295
    %v1298 = vmul.f32 %v1280, %v1296
    %v1299 = vsel %vm327, %v1298, 0.0
    %v1300 = vsel %vm327, %v1292, 0.0
    %1302 = vrot.lane.b32.xlu0 %v1299, 32
    %v1303 = vpop.permute.xlu0 %1302
    %v1304 = vsel %vm224, %v1303, 0
    %1306 = vmatprep.subr.mxu0 0.0
    %1307 = vmatpush1.msra.mxu0 %v1083
    %1308 = vmatprep.subr.mxu0 0.0
    %1309 = vmatpush1.msra.mxu0 %v1084
    %1310 = vmatprep.subr.mxu0 0.0
    %1311 = vmatpush1.msra.mxu0 %v1085
    %1312 = vmatprep.subr.mxu0 0.0
    %1313 = vmatpush1.msra.mxu0 %v1086
    %1314 = vmatprep.subr.mxu0 0.0
    %1315 = vmatpush1.msra.mxu0 0.0
    %1316 = vmatprep.subr.mxu0 0.0
    %1317 = vmatpush1.msra.mxu0 0.0
    %1318 = vmatprep.subr.mxu0 0.0
    %1319 = vmatpush1.msra.mxu0 0.0
    %1320 = vmatprep.subr.mxu0 0.0
    %1321 = vmatpush1.msra.mxu0 0.0
    %1322 = vmatprep.subr.mxu0 0.0
    %1323 = vmatpush1.msra.mxu0 0.0
    %1324 = vmatprep.subr.mxu0 0.0
    %1325 = vmatpush1.msra.mxu0 0.0
    %1326 = vmatprep.subr.mxu0 0.0
    %1327 = vmatpush1.msra.mxu0 0.0
    %1328 = vmatprep.subr.mxu0 0.0
    %1329 = vmatpush1.msra.mxu0 0.0
    %1330 = vmatprep.subr.mxu0 0.0
    %1331 = vmatpush1.msra.mxu0 0.0
    %1332 = vmatprep.subr.mxu0 0.0
    %1333 = vmatpush1.msra.mxu0 0.0
    %1334 = vmatprep.subr.mxu0 0.0
    %1335 = vmatpush1.msra.mxu0 0.0
    %1336 = vmatprep.subr.mxu0 0.0
    %1337 = vmatpush1.msra.mxu0 0.0
    %1338 = vmatprep.subr.mxu0 0.0
    %1339 = vmatpush1.msra.mxu0 0.0
    %1340 = vmatprep.subr.mxu0 0.0
    %1341 = vmatpush1.msra.mxu0 0.0
    %1342 = vmatprep.subr.mxu0 0.0
    %1343 = vmatpush1.msra.mxu0 0.0
    %1344 = vmatprep.subr.mxu0 0.0
    %1345 = vmatpush1.msra.mxu0 0.0
    %1346 = vmatprep.subr.mxu0 0.0
    %1347 = vmatpush1.msra.mxu0 0.0
    %1348 = vmatprep.subr.mxu0 0.0
    %1349 = vmatpush1.msra.mxu0 0.0
    %1350 = vmatprep.subr.mxu0 0.0
    %1351 = vmatpush1.msra.mxu0 0.0
    %1352 = vmatprep.subr.mxu0 0.0
    %1353 = vmatpush1.msra.mxu0 0.0
    %1354 = vmatprep.subr.mxu0 0.0
    %1355 = vmatpush1.msra.mxu0 0.0
    %1356 = vmatprep.subr.mxu0 0.0
    %1357 = vmatpush1.msra.mxu0 0.0
    %1358 = vmatprep.subr.mxu0 0.0
    %1359 = vmatpush1.msra.mxu0 0.0
    %1360 = vmatprep.subr.mxu0 0.0
    %1361 = vmatpush1.msra.mxu0 0.0
    %1362 = vmatprep.subr.mxu0 0.0
    %1363 = vmatpush1.msra.mxu0 0.0
    %1364 = vmatprep.subr.mxu0 0.0
    %1365 = vmatpush1.msra.mxu0 0.0
    %1366 = vmatprep.subr.mxu0 0.0
    %1367 = vmatpush1.msra.mxu0 0.0
    %1368 = vmatprep.subr.mxu0 0.0
    %1369 = vmatpush1.msra.mxu0 0.0
    %1370 = vmatprep.mubr.f32.mxu0 0.0
    %1371 = vmatmul.mubr.f32.gmra.mrb[0].mxu0 %v1304
    %v1372 = vpop.f32.mrb[0].mxu0
    %v1373 = vadd.f32 0.0, %v1372
    %v1374 = vpop.f32.mrb[0].mxu0
    %1375 = vdwg.mxu0
    %v1376 = vadd.f32 %v1171, %v1373
    %v1377 = vxor.u32 %v1376, 2147483648
    %v1378 = vmul.f32 %v1377, 1.442695
    %v1379 = vpow.pop %v1378
    %v1380 = vadd.f32 %v1379, 1.0
    %v1381 = vrcp.pop %v1380
    %v1382 = vmul.f32 1.0, %v1381
    %v1383 = vtanh.pop %v1376
    %v1384 = vmul.f32 %v1382, %v1300
    %1386 = vrot.lane.b32.xlu0 %v1383, 64
    %v1387 = vpop.permute.xlu0 %1386
    %v1389 = vmul.f32 %v1382, %v1387
    %1391 = vrot.lane.b32.xlu0 %v1389, 32
    %v1392 = vpop.permute.xlu0 %1391
    %v1394 = vadd.f32 %v1384, %v1392
    %v1395 = vtanh.pop %v1394
    %1397 = vrot.lane.b32.xlu0 %v1395, 64
    %v1398 = vpop.permute.xlu0 %1397
    %v1400 = vmul.f32 %v1382, %v1398
    %v1401 = vsel %vm434, %v1400, %v1299
    %v1402 = vsel %vm434, %v1394, %v1300
    %1404 = vrot.lane.b32.xlu0 %v1401, 32
    %v1405 = vpop.permute.xlu0 %1404
    %v1406 = vsel %vm224, %v1405, 0
    %1408 = vmatprep.subr.mxu0 0.0
    %1409 = vmatpush1.msra.mxu0 %v1083
    %1410 = vmatprep.subr.mxu0 0.0
    %1411 = vmatpush1.msra.mxu0 %v1084
    %1412 = vmatprep.subr.mxu0 0.0
    %1413 = vmatpush1.msra.mxu0 %v1085
    %1414 = vmatprep.subr.mxu0 0.0
    %1415 = vmatpush1.msra.mxu0 %v1086
    %1416 = vmatprep.subr.mxu0 0.0
    %1417 = vmatpush1.msra.mxu0 0.0
    %1418 = vmatprep.subr.mxu0 0.0
    %1419 = vmatpush1.msra.mxu0 0.0
    %1420 = vmatprep.subr.mxu0 0.0
    %1421 = vmatpush1.msra.mxu0 0.0
    %1422 = vmatprep.subr.mxu0 0.0
    %1423 = vmatpush1.msra.mxu0 0.0
    %1424 = vmatprep.subr.mxu0 0.0
    %1425 = vmatpush1.msra.mxu0 0.0
    %1426 = vmatprep.subr.mxu0 0.0
    %1427 = vmatpush1.msra.mxu0 0.0
    %1428 = vmatprep.subr.mxu0 0.0
    %1429 = vmatpush1.msra.mxu0 0.0
    %1430 = vmatprep.subr.mxu0 0.0
    %1431 = vmatpush1.msra.mxu0 0.0
    %1432 = vmatprep.subr.mxu0 0.0
    %1433 = vmatpush1.msra.mxu0 0.0
    %1434 = vmatprep.subr.mxu0 0.0
    %1435 = vmatpush1.msra.mxu0 0.0
    %1436 = vmatprep.subr.mxu0 0.0
    %1437 = vmatpush1.msra.mxu0 0.0
    %1438 = vmatprep.subr.mxu0 0.0
    %1439 = vmatpush1.msra.mxu0 0.0
    %1440 = vmatprep.subr.mxu0 0.0
    %1441 = vmatpush1.msra.mxu0 0.0
    %1442 = vmatprep.subr.mxu0 0.0
    %1443 = vmatpush1.msra.mxu0 0.0
    %1444 = vmatprep.subr.mxu0 0.0
    %1445 = vmatpush1.msra.mxu0 0.0
    %1446 = vmatprep.subr.mxu0 0.0
    %1447 = vmatpush1.msra.mxu0 0.0
    %1448 = vmatprep.subr.mxu0 0.0
    %1449 = vmatpush1.msra.mxu0 0.0
    %1450 = vmatprep.subr.mxu0 0.0
    %1451 = vmatpush1.msra.mxu0 0.0
    %1452 = vmatprep.subr.mxu0 0.0
    %1453 = vmatpush1.msra.mxu0 0.0
    %1454 = vmatprep.subr.mxu0 0.0
    %1455 = vmatpush1.msra.mxu0 0.0
    %1456 = vmatprep.subr.mxu0 0.0
    %1457 = vmatpush1.msra.mxu0 0.0
    %1458 = vmatprep.subr.mxu0 0.0
    %1459 = vmatpush1.msra.mxu0 0.0
    %1460 = vmatprep.subr.mxu0 0.0
    %1461 = vmatpush1.msra.mxu0 0.0
    %1462 = vmatprep.subr.mxu0 0.0
    %1463 = vmatpush1.msra.mxu0 0.0
    %1464 = vmatprep.subr.mxu0 0.0
    %1465 = vmatpush1.msra.mxu0 0.0
    %1466 = vmatprep.subr.mxu0 0.0
    %1467 = vmatpush1.msra.mxu0 0.0
    %1468 = vmatprep.subr.mxu0 0.0
    %1469 = vmatpush1.msra.mxu0 0.0
    %1470 = vmatprep.subr.mxu0 0.0
    %1471 = vmatpush1.msra.mxu0 0.0
    %1472 = vmatprep.mubr.f32.mxu0 0.0
    %1473 = vmatmul.mubr.f32.gmra.mrb[0].mxu0 %v1406
    %v1474 = vpop.f32.mrb[0].mxu0
    %v1475 = vadd.f32 0.0, %v1474
    %v1476 = vpop.f32.mrb[0].mxu0
    %1477 = vdwg.mxu0
    %v1478 = vadd.f32 %v1176, %v1475
    %v1479 = vxor.u32 %v1478, 2147483648
    %v1480 = vmul.f32 %v1479, 1.442695
    %v1481 = vpow.pop %v1480
    %v1482 = vadd.f32 %v1481, 1.0
    %v1483 = vrcp.pop %v1482
    %v1484 = vmul.f32 1.0, %v1483
    %v1485 = vtanh.pop %v1478
    %v1486 = vmul.f32 %v1484, %v1402
    %1488 = vrot.lane.b32.xlu0 %v1485, 64
    %v1489 = vpop.permute.xlu0 %1488
    %v1491 = vmul.f32 %v1484, %v1489
    %1493 = vrot.lane.b32.xlu0 %v1491, 32
    %v1494 = vpop.permute.xlu0 %1493
    %v1496 = vadd.f32 %v1486, %v1494
    %v1497 = vtanh.pop %v1496
    %1499 = vrot.lane.b32.xlu0 %v1497, 64
    %v1500 = vpop.permute.xlu0 %1499
    %v1502 = vmul.f32 %v1484, %v1500
    %v1503 = vsel %vm541, %v1502, %v1401
    %v1504 = vsel %vm541, %v1496, %v1402
    %1506 = vrot.lane.b32.xlu0 %v1503, 32
    %v1507 = vpop.permute.xlu0 %1506
    %v1508 = vsel %vm224, %v1507, 0
    %1510 = vmatprep.subr.mxu0 0.0
    %1511 = vmatpush1.msra.mxu0 %v1083
    %1512 = vmatprep.subr.mxu0 0.0
    %1513 = vmatpush1.msra.mxu0 %v1084
    %1514 = vmatprep.subr.mxu0 0.0
    %1515 = vmatpush1.msra.mxu0 %v1085
    %1516 = vmatprep.subr.mxu0 0.0
    %1517 = vmatpush1.msra.mxu0 %v1086
    %1518 = vmatprep.subr.mxu0 0.0
    %1519 = vmatpush1.msra.mxu0 0.0
    %1520 = vmatprep.subr.mxu0 0.0
    %1521 = vmatpush1.msra.mxu0 0.0
    %1522 = vmatprep.subr.mxu0 0.0
    %1523 = vmatpush1.msra.mxu0 0.0
    %1524 = vmatprep.subr.mxu0 0.0
    %1525 = vmatpush1.msra.mxu0 0.0
    %1526 = vmatprep.subr.mxu0 0.0
    %1527 = vmatpush1.msra.mxu0 0.0
    %1528 = vmatprep.subr.mxu0 0.0
    %1529 = vmatpush1.msra.mxu0 0.0
    %1530 = vmatprep.subr.mxu0 0.0
    %1531 = vmatpush1.msra.mxu0 0.0
    %1532 = vmatprep.subr.mxu0 0.0
    %1533 = vmatpush1.msra.mxu0 0.0
    %1534 = vmatprep.subr.mxu0 0.0
    %1535 = vmatpush1.msra.mxu0 0.0
    %1536 = vmatprep.subr.mxu0 0.0
    %1537 = vmatpush1.msra.mxu0 0.0
    %1538 = vmatprep.subr.mxu0 0.0
    %1539 = vmatpush1.msra.mxu0 0.0
    %1540 = vmatprep.subr.mxu0 0.0
    %1541 = vmatpush1.msra.mxu0 0.0
    %1542 = vmatprep.subr.mxu0 0.0
    %1543 = vmatpush1.msra.mxu0 0.0
    %1544 = vmatprep.subr.mxu0 0.0
    %1545 = vmatpush1.msra.mxu0 0.0
    %1546 = vmatprep.subr.mxu0 0.0
    %1547 = vmatpush1.msra.mxu0 0.0
    %1548 = vmatprep.subr.mxu0 0.0
    %1549 = vmatpush1.msra.mxu0 0.0
    %1550 = vmatprep.subr.mxu0 0.0
    %1551 = vmatpush1.msra.mxu0 0.0
    %1552 = vmatprep.subr.mxu0 0.0
    %1553 = vmatpush1.msra.mxu0 0.0
    %1554 = vmatprep.subr.mxu0 0.0
    %1555 = vmatpush1.msra.mxu0 0.0
    %1556 = vmatprep.subr.mxu0 0.0
    %1557 = vmatpush1.msra.mxu0 0.0
    %1558 = vmatprep.subr.mxu0 0.0
    %1559 = vmatpush1.msra.mxu0 0.0
    %1560 = vmatprep.subr.mxu0 0.0
    %1561 = vmatpush1.msra.mxu0 0.0
    %1562 = vmatprep.subr.mxu0 0.0
    %1563 = vmatpush1.msra.mxu0 0.0
    %1564 = vmatprep.subr.mxu0 0.0
    %1565 = vmatpush1.msra.mxu0 0.0
    %1566 = vmatprep.subr.mxu0 0.0
    %1567 = vmatpush1.msra.mxu0 0.0
    %1568 = vmatprep.subr.mxu0 0.0
    %1569 = vmatpush1.msra.mxu0 0.0
    %1570 = vmatprep.subr.mxu0 0.0
    %1571 = vmatpush1.msra.mxu0 0.0
    %1572 = vmatprep.subr.mxu0 0.0
    %1573 = vmatpush1.msra.mxu0 0.0
    %1574 = vmatprep.mubr.f32.mxu0 0.0
    %1575 = vmatmul.mubr.f32.gmra.mrb[0].mxu0 %v1508
    %v1576 = vpop.f32.mrb[0].mxu0
    %v1577 = vadd.f32 0.0, %v1576
    %v1578 = vpop.f32.mrb[0].mxu0
    %1579 = vdwg.mxu0
    %v1580 = vadd.f32 %v1181, %v1577
    %v1581 = vxor.u32 %v1580, 2147483648
    %v1582 = vmul.f32 %v1581, 1.442695
    %v1583 = vpow.pop %v1582
    %v1584 = vadd.f32 %v1583, 1.0
    %v1585 = vrcp.pop %v1584
    %v1586 = vmul.f32 1.0, %v1585
    %v1587 = vtanh.pop %v1580
    %v1588 = vmul.f32 %v1586, %v1504
    %1590 = vrot.lane.b32.xlu0 %v1587, 64
    %v1591 = vpop.permute.xlu0 %1590
    %v1593 = vmul.f32 %v1586, %v1591
    %1595 = vrot.lane.b32.xlu0 %v1593, 32
    %v1596 = vpop.permute.xlu0 %1595
    %v1598 = vadd.f32 %v1588, %v1596
    %v1599 = vtanh.pop %v1598
    %1601 = vrot.lane.b32.xlu0 %v1599, 64
    %v1602 = vpop.permute.xlu0 %1601
    %v1604 = vmul.f32 %v1586, %v1602
    %v1605 = vsel %vm648, %v1604, %v1503
    %v1606 = vsel %vm648, %v1598, %v1504
    %1608 = vrot.lane.b32.xlu0 %v1605, 32
    %v1609 = vpop.permute.xlu0 %1608
    %v1610 = vsel %vm224, %v1609, 0
    %1612 = vmatprep.subr.mxu0 0.0
    %1613 = vmatpush1.msra.mxu0 %v1083
    %1614 = vmatprep.subr.mxu0 0.0
    %1615 = vmatpush1.msra.mxu0 %v1084
    %1616 = vmatprep.subr.mxu0 0.0
    %1617 = vmatpush1.msra.mxu0 %v1085
    %1618 = vmatprep.subr.mxu0 0.0
    %1619 = vmatpush1.msra.mxu0 %v1086
    %1620 = vmatprep.subr.mxu0 0.0
    %1621 = vmatpush1.msra.mxu0 0.0
    %1622 = vmatprep.subr.mxu0 0.0
    %1623 = vmatpush1.msra.mxu0 0.0
    %1624 = vmatprep.subr.mxu0 0.0
    %1625 = vmatpush1.msra.mxu0 0.0
    %1626 = vmatprep.subr.mxu0 0.0
    %1627 = vmatpush1.msra.mxu0 0.0
    %1628 = vmatprep.subr.mxu0 0.0
    %1629 = vmatpush1.msra.mxu0 0.0
    %1630 = vmatprep.subr.mxu0 0.0
    %1631 = vmatpush1.msra.mxu0 0.0
    %1632 = vmatprep.subr.mxu0 0.0
    %1633 = vmatpush1.msra.mxu0 0.0
    %1634 = vmatprep.subr.mxu0 0.0
    %1635 = vmatpush1.msra.mxu0 0.0
    %1636 = vmatprep.subr.mxu0 0.0
    %1637 = vmatpush1.msra.mxu0 0.0
    %1638 = vmatprep.subr.mxu0 0.0
    %1639 = vmatpush1.msra.mxu0 0.0
    %1640 = vmatprep.subr.mxu0 0.0
    %1641 = vmatpush1.msra.mxu0 0.0
    %1642 = vmatprep.subr.mxu0 0.0
    %1643 = vmatpush1.msra.mxu0 0.0
    %1644 = vmatprep.subr.mxu0 0.0
    %1645 = vmatpush1.msra.mxu0 0.0
    %1646 = vmatprep.subr.mxu0 0.0
    %1647 = vmatpush1.msra.mxu0 0.0
    %1648 = vmatprep.subr.mxu0 0.0
    %1649 = vmatpush1.msra.mxu0 0.0
    %1650 = vmatprep.subr.mxu0 0.0
    %1651 = vmatpush1.msra.mxu0 0.0
    %1652 = vmatprep.subr.mxu0 0.0
    %1653 = vmatpush1.msra.mxu0 0.0
    %1654 = vmatprep.subr.mxu0 0.0
    %1655 = vmatpush1.msra.mxu0 0.0
    %1656 = vmatprep.subr.mxu0 0.0
    %1657 = vmatpush1.msra.mxu0 0.0
    %1658 = vmatprep.subr.mxu0 0.0
    %1659 = vmatpush1.msra.mxu0 0.0
    %1660 = vmatprep.subr.mxu0 0.0
    %1661 = vmatpush1.msra.mxu0 0.0
    %1662 = vmatprep.subr.mxu0 0.0
    %1663 = vmatpush1.msra.mxu0 0.0
    %1664 = vmatprep.subr.mxu0 0.0
    %1665 = vmatpush1.msra.mxu0 0.0
    %1666 = vmatprep.subr.mxu0 0.0
    %1667 = vmatpush1.msra.mxu0 0.0
    %1668 = vmatprep.subr.mxu0 0.0
    %1669 = vmatpush1.msra.mxu0 0.0
    %1670 = vmatprep.subr.mxu0 0.0
    %1671 = vmatpush1.msra.mxu0 0.0
    %1672 = vmatprep.subr.mxu0 0.0
    %1673 = vmatpush1.msra.mxu0 0.0
    %1674 = vmatprep.subr.mxu0 0.0
    %1675 = vmatpush1.msra.mxu0 0.0
    %1676 = vmatprep.mubr.f32.mxu0 0.0
    %1677 = vmatmul.mubr.f32.gmra.mrb[0].mxu0 %v1610
    %v1678 = vpop.f32.mrb[0].mxu0
    %v1679 = vadd.f32 0.0, %v1678
    %v1680 = vpop.f32.mrb[0].mxu0
    %1681 = vdwg.mxu0
    %v1682 = vadd.f32 %v1186, %v1679
    %v1683 = vxor.u32 %v1682, 2147483648
    %v1684 = vmul.f32 %v1683, 1.442695
    %v1685 = vpow.pop %v1684
    %v1686 = vadd.f32 %v1685, 1.0
    %v1687 = vrcp.pop %v1686
    %v1688 = vmul.f32 1.0, %v1687
    %v1689 = vtanh.pop %v1682
    %v1690 = vmul.f32 %v1688, %v1606
    %1692 = vrot.lane.b32.xlu0 %v1689, 64
    %v1693 = vpop.permute.xlu0 %1692
    %v1695 = vmul.f32 %v1688, %v1693
    %1697 = vrot.lane.b32.xlu0 %v1695, 32
    %v1698 = vpop.permute.xlu0 %1697
    %v1700 = vadd.f32 %v1690, %v1698
    %v1701 = vtanh.pop %v1700
    %1703 = vrot.lane.b32.xlu0 %v1701, 64
    %v1704 = vpop.permute.xlu0 %1703
    %v1706 = vmul.f32 %v1688, %v1704
    %v1707 = vsel %vm755, %v1706, %v1605
    %v1708 = vsel %vm755, %v1700, %v1606
    %1710 = vrot.lane.b32.xlu0 %v1707, 32
    %v1711 = vpop.permute.xlu0 %1710
    %v1712 = vsel %vm224, %v1711, 0
    %1714 = vmatprep.subr.mxu0 0.0
    %1715 = vmatpush1.msra.mxu0 %v1083
    %1716 = vmatprep.subr.mxu0 0.0
    %1717 = vmatpush1.msra.mxu0 %v1084
    %1718 = vmatprep.subr.mxu0 0.0
    %1719 = vmatpush1.msra.mxu0 %v1085
    %1720 = vmatprep.subr.mxu0 0.0
    %1721 = vmatpush1.msra.mxu0 %v1086
    %1722 = vmatprep.subr.mxu0 0.0
    %1723 = vmatpush1.msra.mxu0 0.0
    %1724 = vmatprep.subr.mxu0 0.0
    %1725 = vmatpush1.msra.mxu0 0.0
    %1726 = vmatprep.subr.mxu0 0.0
    %1727 = vmatpush1.msra.mxu0 0.0
    %1728 = vmatprep.subr.mxu0 0.0
    %1729 = vmatpush1.msra.mxu0 0.0
    %1730 = vmatprep.subr.mxu0 0.0
    %1731 = vmatpush1.msra.mxu0 0.0
    %1732 = vmatprep.subr.mxu0 0.0
    %1733 = vmatpush1.msra.mxu0 0.0
    %1734 = vmatprep.subr.mxu0 0.0
    %1735 = vmatpush1.msra.mxu0 0.0
    %1736 = vmatprep.subr.mxu0 0.0
    %1737 = vmatpush1.msra.mxu0 0.0
    %1738 = vmatprep.subr.mxu0 0.0
    %1739 = vmatpush1.msra.mxu0 0.0
    %1740 = vmatprep.subr.mxu0 0.0
    %1741 = vmatpush1.msra.mxu0 0.0
    %1742 = vmatprep.subr.mxu0 0.0
    %1743 = vmatpush1.msra.mxu0 0.0
    %1744 = vmatprep.subr.mxu0 0.0
    %1745 = vmatpush1.msra.mxu0 0.0
    %1746 = vmatprep.subr.mxu0 0.0
    %1747 = vmatpush1.msra.mxu0 0.0
    %1748 = vmatprep.subr.mxu0 0.0
    %1749 = vmatpush1.msra.mxu0 0.0
    %1750 = vmatprep.subr.mxu0 0.0
    %1751 = vmatpush1.msra.mxu0 0.0
    %1752 = vmatprep.subr.mxu0 0.0
    %1753 = vmatpush1.msra.mxu0 0.0
    %1754 = vmatprep.subr.mxu0 0.0
    %1755 = vmatpush1.msra.mxu0 0.0
    %1756 = vmatprep.subr.mxu0 0.0
    %1757 = vmatpush1.msra.mxu0 0.0
    %1758 = vmatprep.subr.mxu0 0.0
    %1759 = vmatpush1.msra.mxu0 0.0
    %1760 = vmatprep.subr.mxu0 0.0
    %1761 = vmatpush1.msra.mxu0 0.0
    %1762 = vmatprep.subr.mxu0 0.0
    %1763 = vmatpush1.msra.mxu0 0.0
    %1764 = vmatprep.subr.mxu0 0.0
    %1765 = vmatpush1.msra.mxu0 0.0
    %1766 = vmatprep.subr.mxu0 0.0
    %1767 = vmatpush1.msra.mxu0 0.0
    %1768 = vmatprep.subr.mxu0 0.0
    %1769 = vmatpush1.msra.mxu0 0.0
    %1770 = vmatprep.subr.mxu0 0.0
    %1771 = vmatpush1.msra.mxu0 0.0
    %1772 = vmatprep.subr.mxu0 0.0
    %1773 = vmatpush1.msra.mxu0 0.0
    %1774 = vmatprep.subr.mxu0 0.0
    %1775 = vmatpush1.msra.mxu0 0.0
    %1776 = vmatprep.subr.mxu0 0.0
    %1777 = vmatpush1.msra.mxu0 0.0
    %1778 = vmatprep.mubr.f32.mxu0 0.0
    %1779 = vmatmul.mubr.f32.gmra.mrb[0].mxu0 %v1712
    %v1780 = vpop.f32.mrb[0].mxu0
    %v1781 = vadd.f32 0.0, %v1780
    %v1782 = vpop.f32.mrb[0].mxu0
    %1783 = vdwg.mxu0
    %v1784 = vadd.f32 %v1191, %v1781
    %v1785 = vxor.u32 %v1784, 2147483648
    %v1786 = vmul.f32 %v1785, 1.442695
    %v1787 = vpow.pop %v1786
    %v1788 = vadd.f32 %v1787, 1.0
    %v1789 = vrcp.pop %v1788
    %v1790 = vmul.f32 1.0, %v1789
    %v1791 = vtanh.pop %v1784
    %v1792 = vmul.f32 %v1790, %v1708
    %1794 = vrot.lane.b32.xlu0 %v1791, 64
    %v1795 = vpop.permute.xlu0 %1794
    %v1797 = vmul.f32 %v1790, %v1795
    %1799 = vrot.lane.b32.xlu0 %v1797, 32
    %v1800 = vpop.permute.xlu0 %1799
    %v1802 = vadd.f32 %v1792, %v1800
    %v1803 = vtanh.pop %v1802
    %1805 = vrot.lane.b32.xlu0 %v1803, 64
    %v1806 = vpop.permute.xlu0 %1805
    %v1808 = vmul.f32 %v1790, %v1806
    %v1809 = vsel %vm862, %v1808, %v1707
    %v1810 = vsel %vm862, %v1802, %v1708
    %1812 = vrot.lane.b32.xlu0 %v1809, 32
    %v1813 = vpop.permute.xlu0 %1812
    %v1814 = vsel %vm224, %v1813, 0
    %1816 = vmatprep.subr.mxu0 0.0
    %1817 = vmatpush1.msra.mxu0 %v1083
    %1818 = vmatprep.subr.mxu0 0.0
    %1819 = vmatpush1.msra.mxu0 %v1084
    %1820 = vmatprep.subr.mxu0 0.0
    %1821 = vmatpush1.msra.mxu0 %v1085
    %1822 = vmatprep.subr.mxu0 0.0
    %1823 = vmatpush1.msra.mxu0 %v1086
    %1824 = vmatprep.subr.mxu0 0.0
    %1825 = vmatpush1.msra.mxu0 0.0
    %1826 = vmatprep.subr.mxu0 0.0
    %1827 = vmatpush1.msra.mxu0 0.0
    %1828 = vmatprep.subr.mxu0 0.0
    %1829 = vmatpush1.msra.mxu0 0.0
    %1830 = vmatprep.subr.mxu0 0.0
    %1831 = vmatpush1.msra.mxu0 0.0
    %1832 = vmatprep.subr.mxu0 0.0
    %1833 = vmatpush1.msra.mxu0 0.0
    %1834 = vmatprep.subr.mxu0 0.0
    %1835 = vmatpush1.msra.mxu0 0.0
    %1836 = vmatprep.subr.mxu0 0.0
    %1837 = vmatpush1.msra.mxu0 0.0
    %1838 = vmatprep.subr.mxu0 0.0
    %1839 = vmatpush1.msra.mxu0 0.0
    %1840 = vmatprep.subr.mxu0 0.0
    %1841 = vmatpush1.msra.mxu0 0.0
    %1842 = vmatprep.subr.mxu0 0.0
    %1843 = vmatpush1.msra.mxu0 0.0
    %1844 = vmatprep.subr.mxu0 0.0
    %1845 = vmatpush1.msra.mxu0 0.0
    %1846 = vmatprep.subr.mxu0 0.0
    %1847 = vmatpush1.msra.mxu0 0.0
    %1848 = vmatprep.subr.mxu0 0.0
    %1849 = vmatpush1.msra.mxu0 0.0
    %1850 = vmatprep.subr.mxu0 0.0
    %1851 = vmatpush1.msra.mxu0 0.0
    %1852 = vmatprep.subr.mxu0 0.0
    %1853 = vmatpush1.msra.mxu0 0.0
    %1854 = vmatprep.subr.mxu0 0.0
    %1855 = vmatpush1.msra.mxu0 0.0
    %1856 = vmatprep.subr.mxu0 0.0
    %1857 = vmatpush1.msra.mxu0 0.0
    %1858 = vmatprep.subr.mxu0 0.0
    %1859 = vmatpush1.msra.mxu0 0.0
    %1860 = vmatprep.subr.mxu0 0.0
    %1861 = vmatpush1.msra.mxu0 0.0
    %1862 = vmatprep.subr.mxu0 0.0
    %1863 = vmatpush1.msra.mxu0 0.0
    %1864 = vmatprep.subr.mxu0 0.0
    %1865 = vmatpush1.msra.mxu0 0.0
    %1866 = vmatprep.subr.mxu0 0.0
    %1867 = vmatpush1.msra.mxu0 0.0
    %1868 = vmatprep.subr.mxu0 0.0
    %1869 = vmatpush1.msra.mxu0 0.0
    %1870 = vmatprep.subr.mxu0 0.0
    %1871 = vmatpush1.msra.mxu0 0.0
    %1872 = vmatprep.subr.mxu0 0.0
    %1873 = vmatpush1.msra.mxu0 0.0
    %1874 = vmatprep.subr.mxu0 0.0
    %1875 = vmatpush1.msra.mxu0 0.0
    %1876 = vmatprep.subr.mxu0 0.0
    %1877 = vmatpush1.msra.mxu0 0.0
    %1878 = vmatprep.subr.mxu0 0.0
    %1879 = vmatpush1.msra.mxu0 0.0
    %1880 = vmatprep.mubr.f32.mxu0 0.0
    %1881 = vmatmul.mubr.f32.gmra.mrb[0].mxu0 %v1814
    %v1882 = vpop.f32.mrb[0].mxu0
    %v1883 = vadd.f32 0.0, %v1882
    %v1884 = vpop.f32.mrb[0].mxu0
    %1885 = vdwg.mxu0
    %v1886 = vadd.f32 %v1196, %v1883
    %v1887 = vxor.u32 %v1886, 2147483648
    %v1888 = vmul.f32 %v1887, 1.442695
    %v1889 = vpow.pop %v1888
    %v1890 = vadd.f32 %v1889, 1.0
    %v1891 = vrcp.pop %v1890
    %v1892 = vmul.f32 1.0, %v1891
    %v1893 = vtanh.pop %v1886
    %v1894 = vmul.f32 %v1892, %v1810
    %1896 = vrot.lane.b32.xlu0 %v1893, 64
    %v1897 = vpop.permute.xlu0 %1896
    %v1899 = vmul.f32 %v1892, %v1897
    %1901 = vrot.lane.b32.xlu0 %v1899, 32
    %v1902 = vpop.permute.xlu0 %1901
    %v1904 = vadd.f32 %v1894, %v1902
    %v1905 = vtanh.pop %v1904
    %1907 = vrot.lane.b32.xlu0 %v1905, 64
    %v1908 = vpop.permute.xlu0 %1907
    %v1910 = vmul.f32 %v1892, %v1908
    %v1911 = vsel %vm969, %v1910, %v1809
    %v1912 = vsel %vm969, %v1904, %v1810
    %1914 = vrot.lane.b32.xlu0 %v1911, 32
    %v1915 = vpop.permute.xlu0 %1914
    %v1916 = vsel %vm224, %v1915, 0
    %1918 = vmatprep.subr.mxu0 0.0
    %1919 = vmatpush1.msra.mxu0 %v1083
    %1920 = vmatprep.subr.mxu0 0.0
    %1921 = vmatpush1.msra.mxu0 %v1084
    %1922 = vmatprep.subr.mxu0 0.0
    %1923 = vmatpush1.msra.mxu0 %v1085
    %1924 = vmatprep.subr.mxu0 0.0
    %1925 = vmatpush1.msra.mxu0 %v1086
    %1926 = vmatprep.subr.mxu0 0.0
    %1927 = vmatpush1.msra.mxu0 0.0
    %1928 = vmatprep.subr.mxu0 0.0
    %1929 = vmatpush1.msra.mxu0 0.0
    %1930 = vmatprep.subr.mxu0 0.0
    %1931 = vmatpush1.msra.mxu0 0.0
    %1932 = vmatprep.subr.mxu0 0.0
    %1933 = vmatpush1.msra.mxu0 0.0
    %1934 = vmatprep.subr.mxu0 0.0
    %1935 = vmatpush1.msra.mxu0 0.0
    %1936 = vmatprep.subr.mxu0 0.0
    %1937 = vmatpush1.msra.mxu0 0.0
    %1938 = vmatprep.subr.mxu0 0.0
    %1939 = vmatpush1.msra.mxu0 0.0
    %1940 = vmatprep.subr.mxu0 0.0
    %1941 = vmatpush1.msra.mxu0 0.0
    %1942 = vmatprep.subr.mxu0 0.0
    %1943 = vmatpush1.msra.mxu0 0.0
    %1944 = vmatprep.subr.mxu0 0.0
    %1945 = vmatpush1.msra.mxu0 0.0
    %1946 = vmatprep.subr.mxu0 0.0
    %1947 = vmatpush1.msra.mxu0 0.0
    %1948 = vmatprep.subr.mxu0 0.0
    %1949 = vmatpush1.msra.mxu0 0.0
    %1950 = vmatprep.subr.mxu0 0.0
    %1951 = vmatpush1.msra.mxu0 0.0
    %1952 = vmatprep.subr.mxu0 0.0
    %1953 = vmatpush1.msra.mxu0 0.0
    %1954 = vmatprep.subr.mxu0 0.0
    %1955 = vmatpush1.msra.mxu0 0.0
    %1956 = vmatprep.subr.mxu0 0.0
    %1957 = vmatpush1.msra.mxu0 0.0
    %1958 = vmatprep.subr.mxu0 0.0
    %1959 = vmatpush1.msra.mxu0 0.0
    %1960 = vmatprep.subr.mxu0 0.0
    %1961 = vmatpush1.msra.mxu0 0.0
    %1962 = vmatprep.subr.mxu0 0.0
    %1963 = vmatpush1.msra.mxu0 0.0
    %1964 = vmatprep.subr.mxu0 0.0
    %1965 = vmatpush1.msra.mxu0 0.0
    %1966 = vmatprep.subr.mxu0 0.0
    %1967 = vmatpush1.msra.mxu0 0.0
    %1968 = vmatprep.subr.mxu0 0.0
    %1969 = vmatpush1.msra.mxu0 0.0
    %1970 = vmatprep.subr.mxu0 0.0
    %1971 = vmatpush1.msra.mxu0 0.0
    %1972 = vmatprep.subr.mxu0 0.0
    %1973 = vmatpush1.msra.mxu0 0.0
    %1974 = vmatprep.subr.mxu0 0.0
    %1975 = vmatpush1.msra.mxu0 0.0
    %1976 = vmatprep.subr.mxu0 0.0
    %1977 = vmatpush1.msra.mxu0 0.0
    %1978 = vmatprep.subr.mxu0 0.0
    %1979 = vmatpush1.msra.mxu0 0.0
    %1980 = vmatprep.subr.mxu0 0.0
    %1981 = vmatpush1.msra.mxu0 0.0
    %1982 = vmatprep.mubr.f32.mxu0 0.0
    %1983 = vmatmul.mubr.f32.gmra.mrb[0].mxu0 %v1916
    %v1984 = vpop.f32.mrb[0].mxu0
    %v1985 = vadd.f32 0.0, %v1984
    %v1986 = vpop.f32.mrb[0].mxu0
    %1987 = vdwg.mxu0
    %v1988 = vadd.f32 %v1201, %v1985
    %v1989 = vxor.u32 %v1988, 2147483648
    %v1990 = vmul.f32 %v1989, 1.442695
    %v1991 = vpow.pop %v1990
    %v1992 = vadd.f32 %v1991, 1.0
    %v1993 = vrcp.pop %v1992
    %v1994 = vmul.f32 1.0, %v1993
    %v1995 = vtanh.pop %v1988
    %v1996 = vmul.f32 %v1994, %v1912
    %1998 = vrot.lane.b32.xlu0 %v1995, 64
    %v1999 = vpop.permute.xlu0 %1998
    %v2001 = vmul.f32 %v1994, %v1999
    %2003 = vrot.lane.b32.xlu0 %v2001, 32
    %v2004 = vpop.permute.xlu0 %2003
    %v2006 = vadd.f32 %v1996, %v2004
    %v2007 = vtanh.pop %v2006
    %2009 = vrot.lane.b32.xlu0 %v2007, 64
    %v2010 = vpop.permute.xlu0 %2009
    %v2012 = vmul.f32 %v1994, %v2010
    %v2013 = vsel %vm1076, %v2012, %v1911
    %v2014 = vsel %vm1076, %v2006, %v1912
    %v2015 = vld [vmem:[#allocation5] sm:$0xff]
    %v2016 = vld [vmem:[#allocation5 + $0x8] sm:$0xff]
    %v2017 = vld [vmem:[#allocation5 + $0x10] sm:$0xff]
    %v2018 = vld [vmem:[#allocation5 + $0x18] sm:$0xff]
    %v2019 = vld [vmem:[#allocation5 + $0x20] sm:$0xff]
    %v2020 = vld [vmem:[#allocation5 + $0x28] sm:$0xff]
    %v2021 = vld [vmem:[#allocation5 + $0x30] sm:$0xff]
    %v2022 = vld [vmem:[#allocation5 + $0x38] sm:$0xff]
    %v2023 = vld [vmem:[#allocation5 + $0x40] sm:$0xff]
    %v2024 = vld [vmem:[#allocation5 + $0x48] sm:$0xff]
    %v2025 = vld [vmem:[#allocation5 + $0x50] sm:$0xff]
    %v2026 = vld [vmem:[#allocation5 + $0x58] sm:$0xff]
    %v2027 = vld [vmem:[#allocation5 + $0x60] sm:$0xff]
    %v2028 = vld [vmem:[#allocation5 + $0x68] sm:$0xff]
    %v2029 = vld [vmem:[#allocation5 + $0x70] sm:$0xff]
    %v2030 = vld [vmem:[#allocation5 + $0x78] sm:$0xff]
    %v2031 = vld [vmem:[#allocation5 + $0x80] sm:$0xff]
    %v2032 = vld [vmem:[#allocation5 + $0x88] sm:$0xff]
    %v2033 = vld [vmem:[#allocation5 + $0x90] sm:$0xff]
    %v2034 = vld [vmem:[#allocation5 + $0x98] sm:$0xff]
    %v2035 = vld [vmem:[#allocation5 + $0xa0] sm:$0xff]
    %v2036 = vld [vmem:[#allocation5 + $0xa8] sm:$0xff]
    %v2037 = vld [vmem:[#allocation5 + $0xb0] sm:$0xff]
    %v2038 = vld [vmem:[#allocation5 + $0xb8] sm:$0xff]
    %v2039 = vld [vmem:[#allocation5 + $0xc0] sm:$0xff]
    %v2040 = vld [vmem:[#allocation5 + $0xc8] sm:$0xff]
    %v2041 = vld [vmem:[#allocation5 + $0xd0] sm:$0xff]
    %v2042 = vld [vmem:[#allocation5 + $0xd8] sm:$0xff]
    %v2043 = vld [vmem:[#allocation5 + $0xe0] sm:$0xff]
    %v2044 = vld [vmem:[#allocation5 + $0xe8] sm:$0xff]
    %v2045 = vld [vmem:[#allocation5 + $0xf0] sm:$0xff]
    %v2046 = vld [vmem:[#allocation5 + $0xf8] sm:$0xff]
    %v2047 = vld [vmem:[#allocation5 + $0x100] sm:$0xff]
    %v2048 = vld [vmem:[#allocation5 + $0x108] sm:$0xff]
    %v2049 = vld [vmem:[#allocation5 + $0x110] sm:$0xff]
    %v2050 = vld [vmem:[#allocation5 + $0x118] sm:$0xff]
    %v2051 = vld [vmem:[#allocation5 + $0x120] sm:$0xff]
    %v2052 = vld [vmem:[#allocation5 + $0x128] sm:$0xff]
    %v2053 = vld [vmem:[#allocation5 + $0x130] sm:$0xff]
    %v2054 = vld [vmem:[#allocation5 + $0x138] sm:$0xff]
    %v2055 = vld [vmem:[#allocation5 + $0x140] sm:$0xff]
    %v2056 = vld [vmem:[#allocation5 + $0x148] sm:$0xff]
    %v2057 = vld [vmem:[#allocation5 + $0x150] sm:$0xff]
    %v2058 = vld [vmem:[#allocation5 + $0x158] sm:$0xff]
    %v2059 = vld [vmem:[#allocation5 + $0x160] sm:$0xff]
    %v2060 = vld [vmem:[#allocation5 + $0x168] sm:$0xff]
    %v2061 = vld [vmem:[#allocation5 + $0x170] sm:$0xff]
    %v2062 = vld [vmem:[#allocation5 + $0x178] sm:$0xff]
    %v2063 = vld [vmem:[#allocation5 + $0x180] sm:$0xff]
    %v2064 = vld [vmem:[#allocation5 + $0x188] sm:$0xff]
    %v2065 = vld [vmem:[#allocation5 + $0x190] sm:$0xff]
    %v2066 = vld [vmem:[#allocation5 + $0x198] sm:$0xff]
    %v2067 = vld [vmem:[#allocation5 + $0x1a0] sm:$0xff]
    %v2068 = vld [vmem:[#allocation5 + $0x1a8] sm:$0xff]
    %v2069 = vld [vmem:[#allocation5 + $0x1b0] sm:$0xff]
    %v2070 = vld [vmem:[#allocation5 + $0x1b8] sm:$0xff]
    %v2071 = vld [vmem:[#allocation5 + $0x1c0] sm:$0xff]
    %v2072 = vld [vmem:[#allocation5 + $0x1c8] sm:$0xff]
    %v2073 = vld [vmem:[#allocation5 + $0x1d0] sm:$0xff]
    %v2074 = vld [vmem:[#allocation5 + $0x1d8] sm:$0xff]
    %v2075 = vld [vmem:[#allocation5 + $0x1e0] sm:$0xff]
    %v2076 = vld [vmem:[#allocation5 + $0x1e8] sm:$0xff]
    %v2077 = vld [vmem:[#allocation5 + $0x1f0] sm:$0xff]
    %v2078 = vld [vmem:[#allocation5 + $0x1f8] sm:$0xff]
    %2080 = vrot.lane.b32.xlu0 %v2013, 32
    %v2081 = vpop.permute.xlu0 %2080
    %v2082 = vsel %vm224, %v2081, 0
    %2084 = vmatprep.subr.mxu0 %v2048
    %2085 = vmatpush1.msra.mxu0 %v2047
    %2086 = vmatprep.subr.mxu0 %v2056
    %2087 = vmatpush1.msra.mxu0 %v2055
    %2088 = vmatprep.subr.mxu0 %v2064
    %2089 = vmatpush1.msra.mxu0 %v2063
    %2090 = vmatprep.subr.mxu0 %v2072
    %2091 = vmatpush1.msra.mxu0 %v2071
    %2092 = vmatprep.subr.mxu0 0.0
    %2093 = vmatpush1.msra.mxu0 0.0
    %2094 = vmatprep.subr.mxu0 0.0
    %2095 = vmatpush1.msra.mxu0 0.0
    %2096 = vmatprep.subr.mxu0 0.0
    %2097 = vmatpush1.msra.mxu0 0.0
    %2098 = vmatprep.subr.mxu0 0.0
    %2099 = vmatpush1.msra.mxu0 0.0
    %2100 = vmatprep.subr.mxu0 0.0
    %2101 = vmatpush1.msra.mxu0 0.0
    %2102 = vmatprep.subr.mxu0 0.0
    %2103 = vmatpush1.msra.mxu0 0.0
    %2104 = vmatprep.subr.mxu0 0.0
    %2105 = vmatpush1.msra.mxu0 0.0
    %2106 = vmatprep.subr.mxu0 0.0
    %2107 = vmatpush1.msra.mxu0 0.0
    %2108 = vmatprep.subr.mxu0 0.0
    %2109 = vmatpush1.msra.mxu0 0.0
    %2110 = vmatprep.subr.mxu0 0.0
    %2111 = vmatpush1.msra.mxu0 0.0
    %2112 = vmatprep.subr.mxu0 0.0
    %2113 = vmatpush1.msra.mxu0 0.0
    %2114 = vmatprep.subr.mxu0 0.0
    %2115 = vmatpush1.msra.mxu0 0.0
    %2116 = vmatprep.subr.mxu0 0.0
    %2117 = vmatpush1.msra.mxu0 0.0
    %2118 = vmatprep.subr.mxu0 0.0
    %2119 = vmatpush1.msra.mxu0 0.0
    %2120 = vmatprep.subr.mxu0 0.0
    %2121 = vmatpush1.msra.mxu0 0.0
    %2122 = vmatprep.subr.mxu0 0.0
    %2123 = vmatpush1.msra.mxu0 0.0
    %2124 = vmatprep.subr.mxu0 0.0
    %2125 = vmatpush1.msra.mxu0 0.0
    %2126 = vmatprep.subr.mxu0 0.0
    %2127 = vmatpush1.msra.mxu0 0.0
    %2128 = vmatprep.subr.mxu0 0.0
    %2129 = vmatpush1.msra.mxu0 0.0
    %2130 = vmatprep.subr.mxu0 0.0
    %2131 = vmatpush1.msra.mxu0 0.0
    %2132 = vmatprep.subr.mxu0 0.0
    %2133 = vmatpush1.msra.mxu0 0.0
    %2134 = vmatprep.subr.mxu0 0.0
    %2135 = vmatpush1.msra.mxu0 0.0
    %2136 = vmatprep.subr.mxu0 0.0
    %2137 = vmatpush1.msra.mxu0 0.0
    %2138 = vmatprep.subr.mxu0 0.0
    %2139 = vmatpush1.msra.mxu0 0.0
    %2140 = vmatprep.subr.mxu0 0.0
    %2141 = vmatpush1.msra.mxu0 0.0
    %2142 = vmatprep.subr.mxu0 0.0
    %2143 = vmatpush1.msra.mxu0 0.0
    %2144 = vmatprep.subr.mxu0 0.0
    %2145 = vmatpush1.msra.mxu0 0.0
    %2146 = vmatprep.subr.mxu0 0.0
    %2147 = vmatpush1.msra.mxu0 0.0
    %2148 = vmatprep.mubr.f32.mxu0 0.0
    %2149 = vmatmul.mubr.f32.gmra.mrb[0].mxu0 %v2082
    %v2150 = vpop.f32.mrb[0].mxu0
    %v2151 = vadd.f32 0.0, %v2150
    %v2152 = vpop.f32.mrb[0].mxu0
    %v2153 = vadd.f32 0.0, %v2152
    %2154 = vdwg.mxu0
    %2155 = vmatprep.subr.mxu0 %v2050
    %2156 = vmatpush1.msra.mxu0 %v2049
    %2157 = vmatprep.subr.mxu0 %v2058
    %2158 = vmatpush1.msra.mxu0 %v2057
    %2159 = vmatprep.subr.mxu0 %v2066
    %2160 = vmatpush1.msra.mxu0 %v2065
    %2161 = vmatprep.subr.mxu0 %v2074
    %2162 = vmatpush1.msra.mxu0 %v2073
    %2163 = vmatprep.subr.mxu0 0.0
    %2164 = vmatpush1.msra.mxu0 0.0
    %2165 = vmatprep.subr.mxu0 0.0
    %2166 = vmatpush1.msra.mxu0 0.0
    %2167 = vmatprep.subr.mxu0 0.0
    %2168 = vmatpush1.msra.mxu0 0.0
    %2169 = vmatprep.subr.mxu0 0.0
    %2170 = vmatpush1.msra.mxu0 0.0
    %2171 = vmatprep.subr.mxu0 0.0
    %2172 = vmatpush1.msra.mxu0 0.0
    %2173 = vmatprep.subr.mxu0 0.0
    %2174 = vmatpush1.msra.mxu0 0.0
    %2175 = vmatprep.subr.mxu0 0.0
    %2176 = vmatpush1.msra.mxu0 0.0
    %2177 = vmatprep.subr.mxu0 0.0
    %2178 = vmatpush1.msra.mxu0 0.0
    %2179 = vmatprep.subr.mxu0 0.0
    %2180 = vmatpush1.msra.mxu0 0.0
    %2181 = vmatprep.subr.mxu0 0.0
    %2182 = vmatpush1.msra.mxu0 0.0
    %2183 = vmatprep.subr.mxu0 0.0
    %2184 = vmatpush1.msra.mxu0 0.0
    %2185 = vmatprep.subr.mxu0 0.0
    %2186 = vmatpush1.msra.mxu0 0.0
    %2187 = vmatprep.subr.mxu0 0.0
    %2188 = vmatpush1.msra.mxu0 0.0
    %2189 = vmatprep.subr.mxu0 0.0
    %2190 = vmatpush1.msra.mxu0 0.0
    %2191 = vmatprep.subr.mxu0 0.0
    %2192 = vmatpush1.msra.mxu0 0.0
    %2193 = vmatprep.subr.mxu0 0.0
    %2194 = vmatpush1.msra.mxu0 0.0
    %2195 = vmatprep.subr.mxu0 0.0
    %2196 = vmatpush1.msra.mxu0 0.0
    %2197 = vmatprep.subr.mxu0 0.0
    %2198 = vmatpush1.msra.mxu0 0.0
    %2199 = vmatprep.subr.mxu0 0.0
    %2200 = vmatpush1.msra.mxu0 0.0
    %2201 = vmatprep.subr.mxu0 0.0
    %2202 = vmatpush1.msra.mxu0 0.0
    %2203 = vmatprep.subr.mxu0 0.0
    %2204 = vmatpush1.msra.mxu0 0.0
    %2205 = vmatprep.subr.mxu0 0.0
    %2206 = vmatpush1.msra.mxu0 0.0
    %2207 = vmatprep.subr.mxu0 0.0
    %2208 = vmatpush1.msra.mxu0 0.0
    %2209 = vmatprep.subr.mxu0 0.0
    %2210 = vmatpush1.msra.mxu0 0.0
    %2211 = vmatprep.subr.mxu0 0.0
    %2212 = vmatpush1.msra.mxu0 0.0
    %2213 = vmatprep.subr.mxu0 0.0
    %2214 = vmatpush1.msra.mxu0 0.0
    %2215 = vmatprep.subr.mxu0 0.0
    %2216 = vmatpush1.msra.mxu0 0.0
    %2217 = vmatprep.subr.mxu0 0.0
    %2218 = vmatpush1.msra.mxu0 0.0
    %2219 = vmatprep.mubr.f32.mxu0 0.0
    %2220 = vmatmul.mubr.f32.gmra.mrb[0].mxu0 %v2082
    %v2221 = vpop.f32.mrb[0].mxu0
    %v2222 = vadd.f32 0.0, %v2221
    %v2223 = vpop.f32.mrb[0].mxu0
    %v2224 = vadd.f32 0.0, %v2223
    %2225 = vdwg.mxu0
    %2226 = vmatprep.subr.mxu0 %v2052
    %2227 = vmatpush1.msra.mxu0 %v2051
    %2228 = vmatprep.subr.mxu0 %v2060
    %2229 = vmatpush1.msra.mxu0 %v2059
    %2230 = vmatprep.subr.mxu0 %v2068
    %2231 = vmatpush1.msra.mxu0 %v2067
    %2232 = vmatprep.subr.mxu0 %v2076
    %2233 = vmatpush1.msra.mxu0 %v2075
    %2234 = vmatprep.subr.mxu0 0.0
    %2235 = vmatpush1.msra.mxu0 0.0
    %2236 = vmatprep.subr.mxu0 0.0
    %2237 = vmatpush1.msra.mxu0 0.0
    %2238 = vmatprep.subr.mxu0 0.0
    %2239 = vmatpush1.msra.mxu0 0.0
    %2240 = vmatprep.subr.mxu0 0.0
    %2241 = vmatpush1.msra.mxu0 0.0
    %2242 = vmatprep.subr.mxu0 0.0
    %2243 = vmatpush1.msra.mxu0 0.0
    %2244 = vmatprep.subr.mxu0 0.0
    %2245 = vmatpush1.msra.mxu0 0.0
    %2246 = vmatprep.subr.mxu0 0.0
    %2247 = vmatpush1.msra.mxu0 0.0
    %2248 = vmatprep.subr.mxu0 0.0
    %2249 = vmatpush1.msra.mxu0 0.0
    %2250 = vmatprep.subr.mxu0 0.0
    %2251 = vmatpush1.msra.mxu0 0.0
    %2252 = vmatprep.subr.mxu0 0.0
    %2253 = vmatpush1.msra.mxu0 0.0
    %2254 = vmatprep.subr.mxu0 0.0
    %2255 = vmatpush1.msra.mxu0 0.0
    %2256 = vmatprep.subr.mxu0 0.0
    %2257 = vmatpush1.msra.mxu0 0.0
    %2258 = vmatprep.subr.mxu0 0.0
    %2259 = vmatpush1.msra.mxu0 0.0
    %2260 = vmatprep.subr.mxu0 0.0
    %2261 = vmatpush1.msra.mxu0 0.0
    %2262 = vmatprep.subr.mxu0 0.0
    %2263 = vmatpush1.msra.mxu0 0.0
    %2264 = vmatprep.subr.mxu0 0.0
    %2265 = vmatpush1.msra.mxu0 0.0
    %2266 = vmatprep.subr.mxu0 0.0
    %2267 = vmatpush1.msra.mxu0 0.0
    %2268 = vmatprep.subr.mxu0 0.0
    %2269 = vmatpush1.msra.mxu0 0.0
    %2270 = vmatprep.subr.mxu0 0.0
    %2271 = vmatpush1.msra.mxu0 0.0
    %2272 = vmatprep.subr.mxu0 0.0
    %2273 = vmatpush1.msra.mxu0 0.0
    %2274 = vmatprep.subr.mxu0 0.0
    %2275 = vmatpush1.msra.mxu0 0.0
    %2276 = vmatprep.subr.mxu0 0.0
    %2277 = vmatpush1.msra.mxu0 0.0
    %2278 = vmatprep.subr.mxu0 0.0
    %2279 = vmatpush1.msra.mxu0 0.0
    %2280 = vmatprep.subr.mxu0 0.0
    %2281 = vmatpush1.msra.mxu0 0.0
    %2282 = vmatprep.subr.mxu0 0.0
    %2283 = vmatpush1.msra.mxu0 0.0
    %2284 = vmatprep.subr.mxu0 0.0
    %2285 = vmatpush1.msra.mxu0 0.0
    %2286 = vmatprep.subr.mxu0 0.0
    %2287 = vmatpush1.msra.mxu0 0.0
    %2288 = vmatprep.subr.mxu0 0.0
    %2289 = vmatpush1.msra.mxu0 0.0
    %2290 = vmatprep.mubr.f32.mxu0 0.0
    %2291 = vmatmul.mubr.f32.gmra.mrb[0].mxu0 %v2082
    %v2292 = vpop.f32.mrb[0].mxu0
    %v2293 = vadd.f32 0.0, %v2292
    %v2294 = vpop.f32.mrb[0].mxu0
    %v2295 = vadd.f32 0.0, %v2294
    %2296 = vdwg.mxu0
    %2297 = vmatprep.subr.mxu0 %v2054
    %2298 = vmatpush1.msra.mxu0 %v2053
    %2299 = vmatprep.subr.mxu0 %v2062
    %2300 = vmatpush1.msra.mxu0 %v2061
    %2301 = vmatprep.subr.mxu0 %v2070
    %2302 = vmatpush1.msra.mxu0 %v2069
    %2303 = vmatprep.subr.mxu0 %v2078
    %2304 = vmatpush1.msra.mxu0 %v2077
    %2305 = vmatprep.subr.mxu0 0.0
    %2306 = vmatpush1.msra.mxu0 0.0
    %2307 = vmatprep.subr.mxu0 0.0
    %2308 = vmatpush1.msra.mxu0 0.0
    %2309 = vmatprep.subr.mxu0 0.0
    %2310 = vmatpush1.msra.mxu0 0.0
    %2311 = vmatprep.subr.mxu0 0.0
    %2312 = vmatpush1.msra.mxu0 0.0
    %2313 = vmatprep.subr.mxu0 0.0
    %2314 = vmatpush1.msra.mxu0 0.0
    %2315 = vmatprep.subr.mxu0 0.0
    %2316 = vmatpush1.msra.mxu0 0.0
    %2317 = vmatprep.subr.mxu0 0.0
    %2318 = vmatpush1.msra.mxu0 0.0
    %2319 = vmatprep.subr.mxu0 0.0
    %2320 = vmatpush1.msra.mxu0 0.0
    %2321 = vmatprep.subr.mxu0 0.0
    %2322 = vmatpush1.msra.mxu0 0.0
    %2323 = vmatprep.subr.mxu0 0.0
    %2324 = vmatpush1.msra.mxu0 0.0
    %2325 = vmatprep.subr.mxu0 0.0
    %2326 = vmatpush1.msra.mxu0 0.0
    %2327 = vmatprep.subr.mxu0 0.0
    %2328 = vmatpush1.msra.mxu0 0.0
    %2329 = vmatprep.subr.mxu0 0.0
    %2330 = vmatpush1.msra.mxu0 0.0
    %2331 = vmatprep.subr.mxu0 0.0
    %2332 = vmatpush1.msra.mxu0 0.0
    %2333 = vmatprep.subr.mxu0 0.0
    %2334 = vmatpush1.msra.mxu0 0.0
    %2335 = vmatprep.subr.mxu0 0.0
    %2336 = vmatpush1.msra.mxu0 0.0
    %2337 = vmatprep.subr.mxu0 0.0
    %2338 = vmatpush1.msra.mxu0 0.0
    %2339 = vmatprep.subr.mxu0 0.0
    %2340 = vmatpush1.msra.mxu0 0.0
    %2341 = vmatprep.subr.mxu0 0.0
    %2342 = vmatpush1.msra.mxu0 0.0
    %2343 = vmatprep.subr.mxu0 0.0
    %2344 = vmatpush1.msra.mxu0 0.0
    %2345 = vmatprep.subr.mxu0 0.0
    %2346 = vmatpush1.msra.mxu0 0.0
    %2347 = vmatprep.subr.mxu0 0.0
    %2348 = vmatpush1.msra.mxu0 0.0
    %2349 = vmatprep.subr.mxu0 0.0
    %2350 = vmatpush1.msra.mxu0 0.0
    %2351 = vmatprep.subr.mxu0 0.0
    %2352 = vmatpush1.msra.mxu0 0.0
    %2353 = vmatprep.subr.mxu0 0.0
    %2354 = vmatpush1.msra.mxu0 0.0
    %2355 = vmatprep.subr.mxu0 0.0
    %2356 = vmatpush1.msra.mxu0 0.0
    %2357 = vmatprep.subr.mxu0 0.0
    %2358 = vmatpush1.msra.mxu0 0.0
    %2359 = vmatprep.subr.mxu0 0.0
    %2360 = vmatpush1.msra.mxu0 0.0
    %2361 = vmatprep.mubr.f32.mxu0 0.0
    %2362 = vmatmul.mubr.f32.gmra.mrb[0].mxu0 %v2082
    %v2363 = vpop.f32.mrb[0].mxu0
    %v2364 = vadd.f32 0.0, %v2363
    %v2365 = vpop.f32.mrb[0].mxu0
    %v2366 = vadd.f32 0.0, %v2365
    %2367 = vdwg.mxu0
    %2368 = vmatprep.subr.mxu0 %v2016
    %2369 = vmatpush1.msra.mxu0 %v2015
    %2370 = vmatprep.subr.mxu0 %v2024
    %2371 = vmatpush1.msra.mxu0 %v2023
    %2372 = vmatprep.subr.mxu0 %v2032
    %2373 = vmatpush1.msra.mxu0 %v2031
    %2374 = vmatprep.subr.mxu0 %v2040
    %2375 = vmatpush1.msra.mxu0 %v2039
    %2376 = vmatprep.subr.mxu0 0.0
    %2377 = vmatpush1.msra.mxu0 0.0
    %2378 = vmatprep.subr.mxu0 0.0
    %2379 = vmatpush1.msra.mxu0 0.0
    %2380 = vmatprep.subr.mxu0 0.0
    %2381 = vmatpush1.msra.mxu0 0.0
    %2382 = vmatprep.subr.mxu0 0.0
    %2383 = vmatpush1.msra.mxu0 0.0
    %2384 = vmatprep.subr.mxu0 0.0
    %2385 = vmatpush1.msra.mxu0 0.0
    %2386 = vmatprep.subr.mxu0 0.0
    %2387 = vmatpush1.msra.mxu0 0.0
    %2388 = vmatprep.subr.mxu0 0.0
    %2389 = vmatpush1.msra.mxu0 0.0
    %2390 = vmatprep.subr.mxu0 0.0
    %2391 = vmatpush1.msra.mxu0 0.0
    %2392 = vmatprep.subr.mxu0 0.0
    %2393 = vmatpush1.msra.mxu0 0.0
    %2394 = vmatprep.subr.mxu0 0.0
    %2395 = vmatpush1.msra.mxu0 0.0
    %2396 = vmatprep.subr.mxu0 0.0
    %2397 = vmatpush1.msra.mxu0 0.0
    %2398 = vmatprep.subr.mxu0 0.0
    %2399 = vmatpush1.msra.mxu0 0.0
    %2400 = vmatprep.subr.mxu0 0.0
    %2401 = vmatpush1.msra.mxu0 0.0
    %2402 = vmatprep.subr.mxu0 0.0
    %2403 = vmatpush1.msra.mxu0 0.0
    %2404 = vmatprep.subr.mxu0 0.0
    %2405 = vmatpush1.msra.mxu0 0.0
    %2406 = vmatprep.subr.mxu0 0.0
    %2407 = vmatpush1.msra.mxu0 0.0
    %2408 = vmatprep.subr.mxu0 0.0
    %2409 = vmatpush1.msra.mxu0 0.0
    %2410 = vmatprep.subr.mxu0 0.0
    %2411 = vmatpush1.msra.mxu0 0.0
    %2412 = vmatprep.subr.mxu0 0.0
    %2413 = vmatpush1.msra.mxu0 0.0
    %2414 = vmatprep.subr.mxu0 0.0
    %2415 = vmatpush1.msra.mxu0 0.0
    %2416 = vmatprep.subr.mxu0 0.0
    %2417 = vmatpush1.msra.mxu0 0.0
    %2418 = vmatprep.subr.mxu0 0.0
    %2419 = vmatpush1.msra.mxu0 0.0
    %2420 = vmatprep.subr.mxu0 0.0
    %2421 = vmatpush1.msra.mxu0 0.0
    %2422 = vmatprep.subr.mxu0 0.0
    %2423 = vmatpush1.msra.mxu0 0.0
    %2424 = vmatprep.subr.mxu0 0.0
    %2425 = vmatpush1.msra.mxu0 0.0
    %2426 = vmatprep.subr.mxu0 0.0
    %2427 = vmatpush1.msra.mxu0 0.0
    %2428 = vmatprep.subr.mxu0 0.0
    %2429 = vmatpush1.msra.mxu0 0.0
    %2430 = vmatprep.subr.mxu0 0.0
    %2431 = vmatpush1.msra.mxu0 0.0
    %2432 = vmatprep.mubr.f32.mxu0 0.0
    %2433 = vmatmul.mubr.f32.gmra.mrb[0].mxu0 %v1097
    %v2434 = vpop.f32.mrb[0].mxu0
    %v2435 = vadd.f32 %v2151, %v2434
    %v2436 = vpop.f32.mrb[0].mxu0
    %v2437 = vadd.f32 %v2153, %v2436
    %2438 = vdwg.mxu0
    %2439 = vmatprep.subr.mxu0 %v2018
    %2440 = vmatpush1.msra.mxu0 %v2017
    %2441 = vmatprep.subr.mxu0 %v2026
    %2442 = vmatpush1.msra.mxu0 %v2025
    %2443 = vmatprep.subr.mxu0 %v2034
    %2444 = vmatpush1.msra.mxu0 %v2033
    %2445 = vmatprep.subr.mxu0 %v2042
    %2446 = vmatpush1.msra.mxu0 %v2041
    %2447 = vmatprep.subr.mxu0 0.0
    %2448 = vmatpush1.msra.mxu0 0.0
    %2449 = vmatprep.subr.mxu0 0.0
    %2450 = vmatpush1.msra.mxu0 0.0
    %2451 = vmatprep.subr.mxu0 0.0
    %2452 = vmatpush1.msra.mxu0 0.0
    %2453 = vmatprep.subr.mxu0 0.0
    %2454 = vmatpush1.msra.mxu0 0.0
    %2455 = vmatprep.subr.mxu0 0.0
    %2456 = vmatpush1.msra.mxu0 0.0
    %2457 = vmatprep.subr.mxu0 0.0
    %2458 = vmatpush1.msra.mxu0 0.0
    %2459 = vmatprep.subr.mxu0 0.0
    %2460 = vmatpush1.msra.mxu0 0.0
    %2461 = vmatprep.subr.mxu0 0.0
    %2462 = vmatpush1.msra.mxu0 0.0
    %2463 = vmatprep.subr.mxu0 0.0
    %2464 = vmatpush1.msra.mxu0 0.0
    %2465 = vmatprep.subr.mxu0 0.0
    %2466 = vmatpush1.msra.mxu0 0.0
    %2467 = vmatprep.subr.mxu0 0.0
    %2468 = vmatpush1.msra.mxu0 0.0
    %2469 = vmatprep.subr.mxu0 0.0
    %2470 = vmatpush1.msra.mxu0 0.0
    %2471 = vmatprep.subr.mxu0 0.0
    %2472 = vmatpush1.msra.mxu0 0.0
    %2473 = vmatprep.subr.mxu0 0.0
    %2474 = vmatpush1.msra.mxu0 0.0
    %2475 = vmatprep.subr.mxu0 0.0
    %2476 = vmatpush1.msra.mxu0 0.0
    %2477 = vmatprep.subr.mxu0 0.0
    %2478 = vmatpush1.msra.mxu0 0.0
    %2479 = vmatprep.subr.mxu0 0.0
    %2480 = vmatpush1.msra.mxu0 0.0
    %2481 = vmatprep.subr.mxu0 0.0
    %2482 = vmatpush1.msra.mxu0 0.0
    %2483 = vmatprep.subr.mxu0 0.0
    %2484 = vmatpush1.msra.mxu0 0.0
    %2485 = vmatprep.subr.mxu0 0.0
    %2486 = vmatpush1.msra.mxu0 0.0
    %2487 = vmatprep.subr.mxu0 0.0
    %2488 = vmatpush1.msra.mxu0 0.0
    %2489 = vmatprep.subr.mxu0 0.0
    %2490 = vmatpush1.msra.mxu0 0.0
    %2491 = vmatprep.subr.mxu0 0.0
    %2492 = vmatpush1.msra.mxu0 0.0
    %2493 = vmatprep.subr.mxu0 0.0
    %2494 = vmatpush1.msra.mxu0 0.0
    %2495 = vmatprep.subr.mxu0 0.0
    %2496 = vmatpush1.msra.mxu0 0.0
    %2497 = vmatprep.subr.mxu0 0.0
    %2498 = vmatpush1.msra.mxu0 0.0
    %2499 = vmatprep.subr.mxu0 0.0
    %2500 = vmatpush1.msra.mxu0 0.0
    %2501 = vmatprep.subr.mxu0 0.0
    %2502 = vmatpush1.msra.mxu0 0.0
    %2503 = vmatprep.mubr.f32.mxu0 0.0
    %2504 = vmatmul.mubr.f32.gmra.mrb[0].mxu0 %v1097
    %v2505 = vpop.f32.mrb[0].mxu0
    %v2506 = vadd.f32 %v2222, %v2505
    %v2507 = vpop.f32.mrb[0].mxu0
    %v2508 = vadd.f32 %v2224, %v2507
    %2509 = vdwg.mxu0
    %2510 = vmatprep.subr.mxu0 %v2020
    %2511 = vmatpush1.msra.mxu0 %v2019
    %2512 = vmatprep.subr.mxu0 %v2028
    %2513 = vmatpush1.msra.mxu0 %v2027
    %2514 = vmatprep.subr.mxu0 %v2036
    %2515 = vmatpush1.msra.mxu0 %v2035
    %2516 = vmatprep.subr.mxu0 %v2044
    %2517 = vmatpush1.msra.mxu0 %v2043
    %2518 = vmatprep.subr.mxu0 0.0
    %2519 = vmatpush1.msra.mxu0 0.0
    %2520 = vmatprep.subr.mxu0 0.0
    %2521 = vmatpush1.msra.mxu0 0.0
    %2522 = vmatprep.subr.mxu0 0.0
    %2523 = vmatpush1.msra.mxu0 0.0
    %2524 = vmatprep.subr.mxu0 0.0
    %2525 = vmatpush1.msra.mxu0 0.0
    %2526 = vmatprep.subr.mxu0 0.0
    %2527 = vmatpush1.msra.mxu0 0.0
    %2528 = vmatprep.subr.mxu0 0.0
    %2529 = vmatpush1.msra.mxu0 0.0
    %2530 = vmatprep.subr.mxu0 0.0
    %2531 = vmatpush1.msra.mxu0 0.0
    %2532 = vmatprep.subr.mxu0 0.0
    %2533 = vmatpush1.msra.mxu0 0.0
    %2534 = vmatprep.subr.mxu0 0.0
    %2535 = vmatpush1.msra.mxu0 0.0
    %2536 = vmatprep.subr.mxu0 0.0
    %2537 = vmatpush1.msra.mxu0 0.0
    %2538 = vmatprep.subr.mxu0 0.0
    %2539 = vmatpush1.msra.mxu0 0.0
    %2540 = vmatprep.subr.mxu0 0.0
    %2541 = vmatpush1.msra.mxu0 0.0
    %2542 = vmatprep.subr.mxu0 0.0
    %2543 = vmatpush1.msra.mxu0 0.0
    %2544 = vmatprep.subr.mxu0 0.0
    %2545 = vmatpush1.msra.mxu0 0.0
    %2546 = vmatprep.subr.mxu0 0.0
    %2547 = vmatpush1.msra.mxu0 0.0
    %2548 = vmatprep.subr.mxu0 0.0
    %2549 = vmatpush1.msra.mxu0 0.0
    %2550 = vmatprep.subr.mxu0 0.0
    %2551 = vmatpush1.msra.mxu0 0.0
    %2552 = vmatprep.subr.mxu0 0.0
    %2553 = vmatpush1.msra.mxu0 0.0
    %2554 = vmatprep.subr.mxu0 0.0
    %2555 = vmatpush1.msra.mxu0 0.0
    %2556 = vmatprep.subr.mxu0 0.0
    %2557 = vmatpush1.msra.mxu0 0.0
    %2558 = vmatprep.subr.mxu0 0.0
    %2559 = vmatpush1.msra.mxu0 0.0
    %2560 = vmatprep.subr.mxu0 0.0
    %2561 = vmatpush1.msra.mxu0 0.0
    %2562 = vmatprep.subr.mxu0 0.0
    %2563 = vmatpush1.msra.mxu0 0.0
    %2564 = vmatprep.subr.mxu0 0.0
    %2565 = vmatpush1.msra.mxu0 0.0
    %2566 = vmatprep.subr.mxu0 0.0
    %2567 = vmatpush1.msra.mxu0 0.0
    %2568 = vmatprep.subr.mxu0 0.0
    %2569 = vmatpush1.msra.mxu0 0.0
    %2570 = vmatprep.subr.mxu0 0.0
    %2571 = vmatpush1.msra.mxu0 0.0
    %2572 = vmatprep.subr.mxu0 0.0
    %2573 = vmatpush1.msra.mxu0 0.0
    %2574 = vmatprep.mubr.f32.mxu0 0.0
    %2575 = vmatmul.mubr.f32.gmra.mrb[0].mxu0 %v1097
    %v2576 = vpop.f32.mrb[0].mxu0
    %v2577 = vadd.f32 %v2293, %v2576
    %v2578 = vpop.f32.mrb[0].mxu0
    %v2579 = vadd.f32 %v2295, %v2578
    %2580 = vdwg.mxu0
    %2581 = vmatprep.subr.mxu0 %v2022
    %2582 = vmatpush1.msra.mxu0 %v2021
    %2583 = vmatprep.subr.mxu0 %v2030
    %2584 = vmatpush1.msra.mxu0 %v2029
    %2585 = vmatprep.subr.mxu0 %v2038
    %2586 = vmatpush1.msra.mxu0 %v2037
    %2587 = vmatprep.subr.mxu0 %v2046
    %2588 = vmatpush1.msra.mxu0 %v2045
    %2589 = vmatprep.subr.mxu0 0.0
    %2590 = vmatpush1.msra.mxu0 0.0
    %2591 = vmatprep.subr.mxu0 0.0
    %2592 = vmatpush1.msra.mxu0 0.0
    %2593 = vmatprep.subr.mxu0 0.0
    %2594 = vmatpush1.msra.mxu0 0.0
    %2595 = vmatprep.subr.mxu0 0.0
    %2596 = vmatpush1.msra.mxu0 0.0
    %2597 = vmatprep.subr.mxu0 0.0
    %2598 = vmatpush1.msra.mxu0 0.0
    %2599 = vmatprep.subr.mxu0 0.0
    %2600 = vmatpush1.msra.mxu0 0.0
    %2601 = vmatprep.subr.mxu0 0.0
    %2602 = vmatpush1.msra.mxu0 0.0
    %2603 = vmatprep.subr.mxu0 0.0
    %2604 = vmatpush1.msra.mxu0 0.0
    %2605 = vmatprep.subr.mxu0 0.0
    %2606 = vmatpush1.msra.mxu0 0.0
    %2607 = vmatprep.subr.mxu0 0.0
    %2608 = vmatpush1.msra.mxu0 0.0
    %2609 = vmatprep.subr.mxu0 0.0
    %2610 = vmatpush1.msra.mxu0 0.0
    %2611 = vmatprep.subr.mxu0 0.0
    %2612 = vmatpush1.msra.mxu0 0.0
    %2613 = vmatprep.subr.mxu0 0.0
    %2614 = vmatpush1.msra.mxu0 0.0
    %2615 = vmatprep.subr.mxu0 0.0
    %2616 = vmatpush1.msra.mxu0 0.0
    %2617 = vmatprep.subr.mxu0 0.0
    %2618 = vmatpush1.msra.mxu0 0.0
    %2619 = vmatprep.subr.mxu0 0.0
    %2620 = vmatpush1.msra.mxu0 0.0
    %2621 = vmatprep.subr.mxu0 0.0
    %2622 = vmatpush1.msra.mxu0 0.0
    %2623 = vmatprep.subr.mxu0 0.0
    %2624 = vmatpush1.msra.mxu0 0.0
    %2625 = vmatprep.subr.mxu0 0.0
    %2626 = vmatpush1.msra.mxu0 0.0
    %2627 = vmatprep.subr.mxu0 0.0
    %2628 = vmatpush1.msra.mxu0 0.0
    %2629 = vmatprep.subr.mxu0 0.0
    %2630 = vmatpush1.msra.mxu0 0.0
    %2631 = vmatprep.subr.mxu0 0.0
    %2632 = vmatpush1.msra.mxu0 0.0
    %2633 = vmatprep.subr.mxu0 0.0
    %2634 = vmatpush1.msra.mxu0 0.0
    %2635 = vmatprep.subr.mxu0 0.0
    %2636 = vmatpush1.msra.mxu0 0.0
    %2637 = vmatprep.subr.mxu0 0.0
    %2638 = vmatpush1.msra.mxu0 0.0
    %2639 = vmatprep.subr.mxu0 0.0
    %2640 = vmatpush1.msra.mxu0 0.0
    %2641 = vmatprep.subr.mxu0 0.0
    %2642 = vmatpush1.msra.mxu0 0.0
    %2643 = vmatprep.subr.mxu0 0.0
    %2644 = vmatpush1.msra.mxu0 0.0
    %2645 = vmatprep.mubr.f32.mxu0 0.0
    %2646 = vmatmul.mubr.f32.gmra.mrb[0].mxu0 %v1097
    %v2647 = vpop.f32.mrb[0].mxu0
    %v2648 = vadd.f32 %v2364, %v2647
    %v2649 = vpop.f32.mrb[0].mxu0
    %v2650 = vadd.f32 %v2366, %v2649
    %2651 = vdwg.mxu0
    %v2652 = vld [vmem:[#allocation5 + $0x200] sm:$0xff]
    %v2653 = vld [vmem:[#allocation5 + $0x208] sm:$0xff]
    %v2654 = vld [vmem:[#allocation5 + $0x210] sm:$0xff]
    %v2655 = vld [vmem:[#allocation5 + $0x218] sm:$0xff]
    %v2656 = vld [vmem:[#allocation5 + $0x220] sm:$0xff]
    %v2657 = vld [vmem:[#allocation5 + $0x228] sm:$0xff]
    %v2658 = vld [vmem:[#allocation5 + $0x230] sm:$0xff]
    %v2659 = vld [vmem:[#allocation5 + $0x238] sm:$0xff]
    %v2660 = vld [vmem:[#allocation5 + $0x240] sm:$0xff]
    %v2661 = vld [vmem:[#allocation5 + $0x248] sm:$0xff]
    %v2662 = vld [vmem:[#allocation5 + $0x250] sm:$0xff]
    %v2663 = vld [vmem:[#allocation5 + $0x258] sm:$0xff]
    %v2664 = vld [vmem:[#allocation5 + $0x260] sm:$0xff]
    %v2665 = vld [vmem:[#allocation5 + $0x268] sm:$0xff]
    %v2666 = vld [vmem:[#allocation5 + $0x270] sm:$0xff]
    %v2667 = vld [vmem:[#allocation5 + $0x278] sm:$0xff]
    %v2668 = vld [vmem:[#allocation5 + $0x280] sm:$0xff]
    %v2669 = vld [vmem:[#allocation5 + $0x288] sm:$0xff]
    %v2670 = vld [vmem:[#allocation5 + $0x290] sm:$0xff]
    %v2671 = vld [vmem:[#allocation5 + $0x298] sm:$0xff]
    %v2672 = vld [vmem:[#allocation5 + $0x2a0] sm:$0xff]
    %v2673 = vld [vmem:[#allocation5 + $0x2a8] sm:$0xff]
    %v2674 = vld [vmem:[#allocation5 + $0x2b0] sm:$0xff]
    %v2675 = vld [vmem:[#allocation5 + $0x2b8] sm:$0xff]
    %v2676 = vld [vmem:[#allocation5 + $0x2c0] sm:$0xff]
    %v2677 = vld [vmem:[#allocation5 + $0x2c8] sm:$0xff]
    %v2678 = vld [vmem:[#allocation5 + $0x2d0] sm:$0xff]
    %v2679 = vld [vmem:[#allocation5 + $0x2d8] sm:$0xff]
    %v2680 = vld [vmem:[#allocation5 + $0x2e0] sm:$0xff]
    %v2681 = vld [vmem:[#allocation5 + $0x2e8] sm:$0xff]
    %v2682 = vld [vmem:[#allocation5 + $0x2f0] sm:$0xff]
    %v2683 = vld [vmem:[#allocation5 + $0x2f8] sm:$0xff]
    %2685 = vrot.lane.b32.xlu0 %v1078, 96
    %v2686 = vpop.permute.xlu0 %2685
    %v2687 = vsel %vm224, %v2686, 0
    %2689 = vmatprep.subr.mxu0 %v2653
    %2690 = vmatpush1.msra.mxu0 %v2652
    %2691 = vmatprep.subr.mxu0 %v2661
    %2692 = vmatpush1.msra.mxu0 %v2660
    %2693 = vmatprep.subr.mxu0 %v2669
    %2694 = vmatpush1.msra.mxu0 %v2668
    %2695 = vmatprep.subr.mxu0 %v2677
    %2696 = vmatpush1.msra.mxu0 %v2676
    %2697 = vmatprep.subr.mxu0 0.0
    %2698 = vmatpush1.msra.mxu0 0.0
    %2699 = vmatprep.subr.mxu0 0.0
    %2700 = vmatpush1.msra.mxu0 0.0
    %2701 = vmatprep.subr.mxu0 0.0
    %2702 = vmatpush1.msra.mxu0 0.0
    %2703 = vmatprep.subr.mxu0 0.0
    %2704 = vmatpush1.msra.mxu0 0.0
    %2705 = vmatprep.subr.mxu0 0.0
    %2706 = vmatpush1.msra.mxu0 0.0
    %2707 = vmatprep.subr.mxu0 0.0
    %2708 = vmatpush1.msra.mxu0 0.0
    %2709 = vmatprep.subr.mxu0 0.0
    %2710 = vmatpush1.msra.mxu0 0.0
    %2711 = vmatprep.subr.mxu0 0.0
    %2712 = vmatpush1.msra.mxu0 0.0
    %2713 = vmatprep.subr.mxu0 0.0
    %2714 = vmatpush1.msra.mxu0 0.0
    %2715 = vmatprep.subr.mxu0 0.0
    %2716 = vmatpush1.msra.mxu0 0.0
    %2717 = vmatprep.subr.mxu0 0.0
    %2718 = vmatpush1.msra.mxu0 0.0
    %2719 = vmatprep.subr.mxu0 0.0
    %2720 = vmatpush1.msra.mxu0 0.0
    %2721 = vmatprep.subr.mxu0 0.0
    %2722 = vmatpush1.msra.mxu0 0.0
    %2723 = vmatprep.subr.mxu0 0.0
    %2724 = vmatpush1.msra.mxu0 0.0
    %2725 = vmatprep.subr.mxu0 0.0
    %2726 = vmatpush1.msra.mxu0 0.0
    %2727 = vmatprep.subr.mxu0 0.0
    %2728 = vmatpush1.msra.mxu0 0.0
    %2729 = vmatprep.subr.mxu0 0.0
    %2730 = vmatpush1.msra.mxu0 0.0
    %2731 = vmatprep.subr.mxu0 0.0
    %2732 = vmatpush1.msra.mxu0 0.0
    %2733 = vmatprep.subr.mxu0 0.0
    %2734 = vmatpush1.msra.mxu0 0.0
    %2735 = vmatprep.subr.mxu0 0.0
    %2736 = vmatpush1.msra.mxu0 0.0
    %2737 = vmatprep.subr.mxu0 0.0
    %2738 = vmatpush1.msra.mxu0 0.0
    %2739 = vmatprep.subr.mxu0 0.0
    %2740 = vmatpush1.msra.mxu0 0.0
    %2741 = vmatprep.subr.mxu0 0.0
    %2742 = vmatpush1.msra.mxu0 0.0
    %2743 = vmatprep.subr.mxu0 0.0
    %2744 = vmatpush1.msra.mxu0 0.0
    %2745 = vmatprep.subr.mxu0 0.0
    %2746 = vmatpush1.msra.mxu0 0.0
    %2747 = vmatprep.subr.mxu0 0.0
    %2748 = vmatpush1.msra.mxu0 0.0
    %2749 = vmatprep.subr.mxu0 0.0
    %2750 = vmatpush1.msra.mxu0 0.0
    %2751 = vmatprep.subr.mxu0 0.0
    %2752 = vmatpush1.msra.mxu0 0.0
    %2753 = vmatprep.mubr.f32.mxu0 0.0
    %2754 = vmatmul.mubr.f32.gmra.mrb[0].mxu0 %v2687
    %v2755 = vpop.f32.mrb[0].mxu0
    %v2756 = vadd.f32 0.0, %v2755
    %v2757 = vpop.f32.mrb[0].mxu0
    %v2758 = vadd.f32 0.0, %v2757
    %2759 = vdwg.mxu0
    %2760 = vmatprep.subr.mxu0 %v2655
    %2761 = vmatpush1.msra.mxu0 %v2654
    %2762 = vmatprep.subr.mxu0 %v2663
    %2763 = vmatpush1.msra.mxu0 %v2662
    %2764 = vmatprep.subr.mxu0 %v2671
    %2765 = vmatpush1.msra.mxu0 %v2670
    %2766 = vmatprep.subr.mxu0 %v2679
    %2767 = vmatpush1.msra.mxu0 %v2678
    %2768 = vmatprep.subr.mxu0 0.0
    %2769 = vmatpush1.msra.mxu0 0.0
    %2770 = vmatprep.subr.mxu0 0.0
    %2771 = vmatpush1.msra.mxu0 0.0
    %2772 = vmatprep.subr.mxu0 0.0
    %2773 = vmatpush1.msra.mxu0 0.0
    %2774 = vmatprep.subr.mxu0 0.0
    %2775 = vmatpush1.msra.mxu0 0.0
    %2776 = vmatprep.subr.mxu0 0.0
    %2777 = vmatpush1.msra.mxu0 0.0
    %2778 = vmatprep.subr.mxu0 0.0
    %2779 = vmatpush1.msra.mxu0 0.0
    %2780 = vmatprep.subr.mxu0 0.0
    %2781 = vmatpush1.msra.mxu0 0.0
    %2782 = vmatprep.subr.mxu0 0.0
    %2783 = vmatpush1.msra.mxu0 0.0
    %2784 = vmatprep.subr.mxu0 0.0
    %2785 = vmatpush1.msra.mxu0 0.0
    %2786 = vmatprep.subr.mxu0 0.0
    %2787 = vmatpush1.msra.mxu0 0.0
    %2788 = vmatprep.subr.mxu0 0.0
    %2789 = vmatpush1.msra.mxu0 0.0
    %2790 = vmatprep.subr.mxu0 0.0
    %2791 = vmatpush1.msra.mxu0 0.0
    %2792 = vmatprep.subr.mxu0 0.0
    %2793 = vmatpush1.msra.mxu0 0.0
    %2794 = vmatprep.subr.mxu0 0.0
    %2795 = vmatpush1.msra.mxu0 0.0
    %2796 = vmatprep.subr.mxu0 0.0
    %2797 = vmatpush1.msra.mxu0 0.0
    %2798 = vmatprep.subr.mxu0 0.0
    %2799 = vmatpush1.msra.mxu0 0.0
    %2800 = vmatprep.subr.mxu0 0.0
    %2801 = vmatpush1.msra.mxu0 0.0
    %2802 = vmatprep.subr.mxu0 0.0
    %2803 = vmatpush1.msra.mxu0 0.0
    %2804 = vmatprep.subr.mxu0 0.0
    %2805 = vmatpush1.msra.mxu0 0.0
    %2806 = vmatprep.subr.mxu0 0.0
    %2807 = vmatpush1.msra.mxu0 0.0
    %2808 = vmatprep.subr.mxu0 0.0
    %2809 = vmatpush1.msra.mxu0 0.0
    %2810 = vmatprep.subr.mxu0 0.0
    %2811 = vmatpush1.msra.mxu0 0.0
    %2812 = vmatprep.subr.mxu0 0.0
    %2813 = vmatpush1.msra.mxu0 0.0
    %2814 = vmatprep.subr.mxu0 0.0
    %2815 = vmatpush1.msra.mxu0 0.0
    %2816 = vmatprep.subr.mxu0 0.0
    %2817 = vmatpush1.msra.mxu0 0.0
    %2818 = vmatprep.subr.mxu0 0.0
    %2819 = vmatpush1.msra.mxu0 0.0
    %2820 = vmatprep.subr.mxu0 0.0
    %2821 = vmatpush1.msra.mxu0 0.0
    %2822 = vmatprep.subr.mxu0 0.0
    %2823 = vmatpush1.msra.mxu0 0.0
    %2824 = vmatprep.mubr.f32.mxu0 0.0
    %2825 = vmatmul.mubr.f32.gmra.mrb[0].mxu0 %v2687
    %v2826 = vpop.f32.mrb[0].mxu0
    %v2827 = vadd.f32 0.0, %v2826
    %v2828 = vpop.f32.mrb[0].mxu0
    %v2829 = vadd.f32 0.0, %v2828
    %2830 = vdwg.mxu0
    %2831 = vmatprep.subr.mxu0 %v2657
    %2832 = vmatpush1.msra.mxu0 %v2656
    %2833 = vmatprep.subr.mxu0 %v2665
    %2834 = vmatpush1.msra.mxu0 %v2664
    %2835 = vmatprep.subr.mxu0 %v2673
    %2836 = vmatpush1.msra.mxu0 %v2672
    %2837 = vmatprep.subr.mxu0 %v2681
    %2838 = vmatpush1.msra.mxu0 %v2680
    %2839 = vmatprep.subr.mxu0 0.0
    %2840 = vmatpush1.msra.mxu0 0.0
    %2841 = vmatprep.subr.mxu0 0.0
    %2842 = vmatpush1.msra.mxu0 0.0
    %2843 = vmatprep.subr.mxu0 0.0
    %2844 = vmatpush1.msra.mxu0 0.0
    %2845 = vmatprep.subr.mxu0 0.0
    %2846 = vmatpush1.msra.mxu0 0.0
    %2847 = vmatprep.subr.mxu0 0.0
    %2848 = vmatpush1.msra.mxu0 0.0
    %2849 = vmatprep.subr.mxu0 0.0
    %2850 = vmatpush1.msra.mxu0 0.0
    %2851 = vmatprep.subr.mxu0 0.0
    %2852 = vmatpush1.msra.mxu0 0.0
    %2853 = vmatprep.subr.mxu0 0.0
    %2854 = vmatpush1.msra.mxu0 0.0
    %2855 = vmatprep.subr.mxu0 0.0
    %2856 = vmatpush1.msra.mxu0 0.0
    %2857 = vmatprep.subr.mxu0 0.0
    %2858 = vmatpush1.msra.mxu0 0.0
    %2859 = vmatprep.subr.mxu0 0.0
    %2860 = vmatpush1.msra.mxu0 0.0
    %2861 = vmatprep.subr.mxu0 0.0
    %2862 = vmatpush1.msra.mxu0 0.0
    %2863 = vmatprep.subr.mxu0 0.0
    %2864 = vmatpush1.msra.mxu0 0.0
    %2865 = vmatprep.subr.mxu0 0.0
    %2866 = vmatpush1.msra.mxu0 0.0
    %2867 = vmatprep.subr.mxu0 0.0
    %2868 = vmatpush1.msra.mxu0 0.0
    %2869 = vmatprep.subr.mxu0 0.0
    %2870 = vmatpush1.msra.mxu0 0.0
    %2871 = vmatprep.subr.mxu0 0.0
    %2872 = vmatpush1.msra.mxu0 0.0
    %2873 = vmatprep.subr.mxu0 0.0
    %2874 = vmatpush1.msra.mxu0 0.0
    %2875 = vmatprep.subr.mxu0 0.0
    %2876 = vmatpush1.msra.mxu0 0.0
    %2877 = vmatprep.subr.mxu0 0.0
    %2878 = vmatpush1.msra.mxu0 0.0
    %2879 = vmatprep.subr.mxu0 0.0
    %2880 = vmatpush1.msra.mxu0 0.0
    %2881 = vmatprep.subr.mxu0 0.0
    %2882 = vmatpush1.msra.mxu0 0.0
    %2883 = vmatprep.subr.mxu0 0.0
    %2884 = vmatpush1.msra.mxu0 0.0
    %2885 = vmatprep.subr.mxu0 0.0
    %2886 = vmatpush1.msra.mxu0 0.0
    %2887 = vmatprep.subr.mxu0 0.0
    %2888 = vmatpush1.msra.mxu0 0.0
    %2889 = vmatprep.subr.mxu0 0.0
    %2890 = vmatpush1.msra.mxu0 0.0
    %2891 = vmatprep.subr.mxu0 0.0
    %2892 = vmatpush1.msra.mxu0 0.0
    %2893 = vmatprep.subr.mxu0 0.0
    %2894 = vmatpush1.msra.mxu0 0.0
    %2895 = vmatprep.mubr.f32.mxu0 0.0
    %2896 = vmatmul.mubr.f32.gmra.mrb[0].mxu0 %v2687
    %v2897 = vpop.f32.mrb[0].mxu0
    %v2898 = vadd.f32 0.0, %v2897
    %v2899 = vpop.f32.mrb[0].mxu0
    %v2900 = vadd.f32 0.0, %v2899
    %2901 = vdwg.mxu0
    %2902 = vmatprep.subr.mxu0 %v2659
    %2903 = vmatpush1.msra.mxu0 %v2658
    %2904 = vmatprep.subr.mxu0 %v2667
    %2905 = vmatpush1.msra.mxu0 %v2666
    %2906 = vmatprep.subr.mxu0 %v2675
    %2907 = vmatpush1.msra.mxu0 %v2674
    %2908 = vmatprep.subr.mxu0 %v2683
    %2909 = vmatpush1.msra.mxu0 %v2682
    %2910 = vmatprep.subr.mxu0 0.0
    %2911 = vmatpush1.msra.mxu0 0.0
    %2912 = vmatprep.subr.mxu0 0.0
    %2913 = vmatpush1.msra.mxu0 0.0
    %2914 = vmatprep.subr.mxu0 0.0
    %2915 = vmatpush1.msra.mxu0 0.0
    %2916 = vmatprep.subr.mxu0 0.0
    %2917 = vmatpush1.msra.mxu0 0.0
    %2918 = vmatprep.subr.mxu0 0.0
    %2919 = vmatpush1.msra.mxu0 0.0
    %2920 = vmatprep.subr.mxu0 0.0
    %2921 = vmatpush1.msra.mxu0 0.0
    %2922 = vmatprep.subr.mxu0 0.0
    %2923 = vmatpush1.msra.mxu0 0.0
    %2924 = vmatprep.subr.mxu0 0.0
    %2925 = vmatpush1.msra.mxu0 0.0
    %2926 = vmatprep.subr.mxu0 0.0
    %2927 = vmatpush1.msra.mxu0 0.0
    %2928 = vmatprep.subr.mxu0 0.0
    %2929 = vmatpush1.msra.mxu0 0.0
    %2930 = vmatprep.subr.mxu0 0.0
    %2931 = vmatpush1.msra.mxu0 0.0
    %2932 = vmatprep.subr.mxu0 0.0
    %2933 = vmatpush1.msra.mxu0 0.0
    %2934 = vmatprep.subr.mxu0 0.0
    %2935 = vmatpush1.msra.mxu0 0.0
    %2936 = vmatprep.subr.mxu0 0.0
    %2937 = vmatpush1.msra.mxu0 0.0
    %2938 = vmatprep.subr.mxu0 0.0
    %2939 = vmatpush1.msra.mxu0 0.0
    %2940 = vmatprep.subr.mxu0 0.0
    %2941 = vmatpush1.msra.mxu0 0.0
    %2942 = vmatprep.subr.mxu0 0.0
    %2943 = vmatpush1.msra.mxu0 0.0
    %2944 = vmatprep.subr.mxu0 0.0
    %2945 = vmatpush1.msra.mxu0 0.0
    %2946 = vmatprep.subr.mxu0 0.0
    %2947 = vmatpush1.msra.mxu0 0.0
    %2948 = vmatprep.subr.mxu0 0.0
    %2949 = vmatpush1.msra.mxu0 0.0
    %2950 = vmatprep.subr.mxu0 0.0
    %2951 = vmatpush1.msra.mxu0 0.0
    %2952 = vmatprep.subr.mxu0 0.0
    %2953 = vmatpush1.msra.mxu0 0.0
    %2954 = vmatprep.subr.mxu0 0.0
    %2955 = vmatpush1.msra.mxu0 0.0
    %2956 = vmatprep.subr.mxu0 0.0
    %2957 = vmatpush1.msra.mxu0 0.0
    %2958 = vmatprep.subr.mxu0 0.0
    %2959 = vmatpush1.msra.mxu0 0.0
    %2960 = vmatprep.subr.mxu0 0.0
    %2961 = vmatpush1.msra.mxu0 0.0
    %2962 = vmatprep.subr.mxu0 0.0
    %2963 = vmatpush1.msra.mxu0 0.0
    %2964 = vmatprep.subr.mxu0 0.0
    %2965 = vmatpush1.msra.mxu0 0.0
    %2966 = vmatprep.mubr.f32.mxu0 0.0
    %2967 = vmatmul.mubr.f32.gmra.mrb[0].mxu0 %v2687
    %v2968 = vpop.f32.mrb[0].mxu0
    %v2969 = vadd.f32 0.0, %v2968
    %v2970 = vpop.f32.mrb[0].mxu0
    %v2971 = vadd.f32 0.0, %v2970
    %2972 = vdwg.mxu0
    %v2973 = vadd.f32 %v2435, %v2756
    %v2974 = vadd.f32 %v2437, %v2758
    %v2975 = vadd.f32 %v2506, %v2827
    %v2976 = vadd.f32 %v2508, %v2829
    %v2977 = vadd.f32 %v2577, %v2898
    %v2978 = vadd.f32 %v2579, %v2900
    %v2979 = vadd.f32 %v2648, %v2969
    %v2980 = vadd.f32 %v2650, %v2971
    %v2981 = vld [vmem:[#allocation5 + $0x300] sm:$0xff]
    %v2982 = vld [vmem:[#allocation5 + $0x308] sm:$0xff]
    %v2983 = vld [vmem:[#allocation5 + $0x310] sm:$0xff]
    %v2984 = vld [vmem:[#allocation5 + $0x318] sm:$0xff]
    %v2985 = vld [vmem:[#allocation5 + $0x320] sm:$0xff]
    %v2986 = vld [vmem:[#allocation5 + $0x328] sm:$0xff]
    %v2987 = vld [vmem:[#allocation5 + $0x330] sm:$0xff]
    %v2988 = vld [vmem:[#allocation5 + $0x338] sm:$0xff]
    %v2989 = vld [vmem:[#allocation5 + $0x340] sm:$0xff]
    %v2990 = vld [vmem:[#allocation5 + $0x348] sm:$0xff]
    %v2991 = vld [vmem:[#allocation5 + $0x350] sm:$0xff]
    %v2992 = vld [vmem:[#allocation5 + $0x358] sm:$0xff]
    %v2993 = vld [vmem:[#allocation5 + $0x360] sm:$0xff]
    %v2994 = vld [vmem:[#allocation5 + $0x368] sm:$0xff]
    %v2995 = vld [vmem:[#allocation5 + $0x370] sm:$0xff]
    %v2996 = vld [vmem:[#allocation5 + $0x378] sm:$0xff]
    %v2997 = vld [vmem:[#allocation5 + $0x380] sm:$0xff]
    %v2998 = vld [vmem:[#allocation5 + $0x388] sm:$0xff]
    %v2999 = vld [vmem:[#allocation5 + $0x390] sm:$0xff]
    %v3000 = vld [vmem:[#allocation5 + $0x398] sm:$0xff]
    %v3001 = vld [vmem:[#allocation5 + $0x3a0] sm:$0xff]
    %v3002 = vld [vmem:[#allocation5 + $0x3a8] sm:$0xff]
    %v3003 = vld [vmem:[#allocation5 + $0x3b0] sm:$0xff]
    %v3004 = vld [vmem:[#allocation5 + $0x3b8] sm:$0xff]
    %v3005 = vld [vmem:[#allocation5 + $0x3c0] sm:$0xff]
    %v3006 = vld [vmem:[#allocation5 + $0x3c8] sm:$0xff]
    %v3007 = vld [vmem:[#allocation5 + $0x3d0] sm:$0xff]
    %v3008 = vld [vmem:[#allocation5 + $0x3d8] sm:$0xff]
    %v3009 = vld [vmem:[#allocation5 + $0x3e0] sm:$0xff]
    %v3010 = vld [vmem:[#allocation5 + $0x3e8] sm:$0xff]
    %v3011 = vld [vmem:[#allocation5 + $0x3f0] sm:$0xff]
    %v3012 = vld [vmem:[#allocation5 + $0x3f8] sm:$0xff]
    %3014 = vrot.lane.b32.xlu0 %v2014, 96
    %v3015 = vpop.permute.xlu0 %3014
    %v3016 = vsel %vm224, %v3015, 0
    %3018 = vmatprep.subr.mxu0 %v2982
    %3019 = vmatpush1.msra.mxu0 %v2981
    %3020 = vmatprep.subr.mxu0 %v2990
    %3021 = vmatpush1.msra.mxu0 %v2989
    %3022 = vmatprep.subr.mxu0 %v2998
    %3023 = vmatpush1.msra.mxu0 %v2997
    %3024 = vmatprep.subr.mxu0 %v3006
    %3025 = vmatpush1.msra.mxu0 %v3005
    %3026 = vmatprep.subr.mxu0 0.0
    %3027 = vmatpush1.msra.mxu0 0.0
    %3028 = vmatprep.subr.mxu0 0.0
    %3029 = vmatpush1.msra.mxu0 0.0
    %3030 = vmatprep.subr.mxu0 0.0
    %3031 = vmatpush1.msra.mxu0 0.0
    %3032 = vmatprep.subr.mxu0 0.0
    %3033 = vmatpush1.msra.mxu0 0.0
    %3034 = vmatprep.subr.mxu0 0.0
    %3035 = vmatpush1.msra.mxu0 0.0
    %3036 = vmatprep.subr.mxu0 0.0
    %3037 = vmatpush1.msra.mxu0 0.0
    %3038 = vmatprep.subr.mxu0 0.0
    %3039 = vmatpush1.msra.mxu0 0.0
    %3040 = vmatprep.subr.mxu0 0.0
    %3041 = vmatpush1.msra.mxu0 0.0
    %3042 = vmatprep.subr.mxu0 0.0
    %3043 = vmatpush1.msra.mxu0 0.0
    %3044 = vmatprep.subr.mxu0 0.0
    %3045 = vmatpush1.msra.mxu0 0.0
    %3046 = vmatprep.subr.mxu0 0.0
    %3047 = vmatpush1.msra.mxu0 0.0
    %3048 = vmatprep.subr.mxu0 0.0
    %3049 = vmatpush1.msra.mxu0 0.0
    %3050 = vmatprep.subr.mxu0 0.0
    %3051 = vmatpush1.msra.mxu0 0.0
    %3052 = vmatprep.subr.mxu0 0.0
    %3053 = vmatpush1.msra.mxu0 0.0
    %3054 = vmatprep.subr.mxu0 0.0
    %3055 = vmatpush1.msra.mxu0 0.0
    %3056 = vmatprep.subr.mxu0 0.0
    %3057 = vmatpush1.msra.mxu0 0.0
    %3058 = vmatprep.subr.mxu0 0.0
    %3059 = vmatpush1.msra.mxu0 0.0
    %3060 = vmatprep.subr.mxu0 0.0
    %3061 = vmatpush1.msra.mxu0 0.0
    %3062 = vmatprep.subr.mxu0 0.0
    %3063 = vmatpush1.msra.mxu0 0.0
    %3064 = vmatprep.subr.mxu0 0.0
    %3065 = vmatpush1.msra.mxu0 0.0
    %3066 = vmatprep.subr.mxu0 0.0
    %3067 = vmatpush1.msra.mxu0 0.0
    %3068 = vmatprep.subr.mxu0 0.0
    %3069 = vmatpush1.msra.mxu0 0.0
    %3070 = vmatprep.subr.mxu0 0.0
    %3071 = vmatpush1.msra.mxu0 0.0
    %3072 = vmatprep.subr.mxu0 0.0
    %3073 = vmatpush1.msra.mxu0 0.0
    %3074 = vmatprep.subr.mxu0 0.0
    %3075 = vmatpush1.msra.mxu0 0.0
    %3076 = vmatprep.subr.mxu0 0.0
    %3077 = vmatpush1.msra.mxu0 0.0
    %3078 = vmatprep.subr.mxu0 0.0
    %3079 = vmatpush1.msra.mxu0 0.0
    %3080 = vmatprep.subr.mxu0 0.0
    %3081 = vmatpush1.msra.mxu0 0.0
    %3082 = vmatprep.mubr.f32.mxu0 0.0
    %3083 = vmatmul.mubr.f32.gmra.mrb[0].mxu0 %v3016
    %v3084 = vpop.f32.mrb[0].mxu0
    %v3085 = vadd.f32 0.0, %v3084
    %v3086 = vpop.f32.mrb[0].mxu0
    %v3087 = vadd.f32 0.0, %v3086
    %3088 = vdwg.mxu0
    %3089 = vmatprep.subr.mxu0 %v2984
    %3090 = vmatpush1.msra.mxu0 %v2983
    %3091 = vmatprep.subr.mxu0 %v2992
    %3092 = vmatpush1.msra.mxu0 %v2991
    %3093 = vmatprep.subr.mxu0 %v3000
    %3094 = vmatpush1.msra.mxu0 %v2999
    %3095 = vmatprep.subr.mxu0 %v3008
    %3096 = vmatpush1.msra.mxu0 %v3007
    %3097 = vmatprep.subr.mxu0 0.0
    %3098 = vmatpush1.msra.mxu0 0.0
    %3099 = vmatprep.subr.mxu0 0.0
    %3100 = vmatpush1.msra.mxu0 0.0
    %3101 = vmatprep.subr.mxu0 0.0
    %3102 = vmatpush1.msra.mxu0 0.0
    %3103 = vmatprep.subr.mxu0 0.0
    %3104 = vmatpush1.msra.mxu0 0.0
    %3105 = vmatprep.subr.mxu0 0.0
    %3106 = vmatpush1.msra.mxu0 0.0
    %3107 = vmatprep.subr.mxu0 0.0
    %3108 = vmatpush1.msra.mxu0 0.0
    %3109 = vmatprep.subr.mxu0 0.0
    %3110 = vmatpush1.msra.mxu0 0.0
    %3111 = vmatprep.subr.mxu0 0.0
    %3112 = vmatpush1.msra.mxu0 0.0
    %3113 = vmatprep.subr.mxu0 0.0
    %3114 = vmatpush1.msra.mxu0 0.0
    %3115 = vmatprep.subr.mxu0 0.0
    %3116 = vmatpush1.msra.mxu0 0.0
    %3117 = vmatprep.subr.mxu0 0.0
    %3118 = vmatpush1.msra.mxu0 0.0
    %3119 = vmatprep.subr.mxu0 0.0
    %3120 = vmatpush1.msra.mxu0 0.0
    %3121 = vmatprep.subr.mxu0 0.0
    %3122 = vmatpush1.msra.mxu0 0.0
    %3123 = vmatprep.subr.mxu0 0.0
    %3124 = vmatpush1.msra.mxu0 0.0
    %3125 = vmatprep.subr.mxu0 0.0
    %3126 = vmatpush1.msra.mxu0 0.0
    %3127 = vmatprep.subr.mxu0 0.0
    %3128 = vmatpush1.msra.mxu0 0.0
    %3129 = vmatprep.subr.mxu0 0.0
    %3130 = vmatpush1.msra.mxu0 0.0
    %3131 = vmatprep.subr.mxu0 0.0
    %3132 = vmatpush1.msra.mxu0 0.0
    %3133 = vmatprep.subr.mxu0 0.0
    %3134 = vmatpush1.msra.mxu0 0.0
    %3135 = vmatprep.subr.mxu0 0.0
    %3136 = vmatpush1.msra.mxu0 0.0
    %3137 = vmatprep.subr.mxu0 0.0
    %3138 = vmatpush1.msra.mxu0 0.0
    %3139 = vmatprep.subr.mxu0 0.0
    %3140 = vmatpush1.msra.mxu0 0.0
    %3141 = vmatprep.subr.mxu0 0.0
    %3142 = vmatpush1.msra.mxu0 0.0
    %3143 = vmatprep.subr.mxu0 0.0
    %3144 = vmatpush1.msra.mxu0 0.0
    %3145 = vmatprep.subr.mxu0 0.0
    %3146 = vmatpush1.msra.mxu0 0.0
    %3147 = vmatprep.subr.mxu0 0.0
    %3148 = vmatpush1.msra.mxu0 0.0
    %3149 = vmatprep.subr.mxu0 0.0
    %3150 = vmatpush1.msra.mxu0 0.0
    %3151 = vmatprep.subr.mxu0 0.0
    %3152 = vmatpush1.msra.mxu0 0.0
    %3153 = vmatprep.mubr.f32.mxu0 0.0
    %3154 = vmatmul.mubr.f32.gmra.mrb[0].mxu0 %v3016
    %v3155 = vpop.f32.mrb[0].mxu0
    %v3156 = vadd.f32 0.0, %v3155
    %v3157 = vpop.f32.mrb[0].mxu0
    %v3158 = vadd.f32 0.0, %v3157
    %3159 = vdwg.mxu0
    %3160 = vmatprep.subr.mxu0 %v2986
    %3161 = vmatpush1.msra.mxu0 %v2985
    %3162 = vmatprep.subr.mxu0 %v2994
    %3163 = vmatpush1.msra.mxu0 %v2993
    %3164 = vmatprep.subr.mxu0 %v3002
    %3165 = vmatpush1.msra.mxu0 %v3001
    %3166 = vmatprep.subr.mxu0 %v3010
    %3167 = vmatpush1.msra.mxu0 %v3009
    %3168 = vmatprep.subr.mxu0 0.0
    %3169 = vmatpush1.msra.mxu0 0.0
    %3170 = vmatprep.subr.mxu0 0.0
    %3171 = vmatpush1.msra.mxu0 0.0
    %3172 = vmatprep.subr.mxu0 0.0
    %3173 = vmatpush1.msra.mxu0 0.0
    %3174 = vmatprep.subr.mxu0 0.0
    %3175 = vmatpush1.msra.mxu0 0.0
    %3176 = vmatprep.subr.mxu0 0.0
    %3177 = vmatpush1.msra.mxu0 0.0
    %3178 = vmatprep.subr.mxu0 0.0
    %3179 = vmatpush1.msra.mxu0 0.0
    %3180 = vmatprep.subr.mxu0 0.0
    %3181 = vmatpush1.msra.mxu0 0.0
    %3182 = vmatprep.subr.mxu0 0.0
    %3183 = vmatpush1.msra.mxu0 0.0
    %3184 = vmatprep.subr.mxu0 0.0
    %3185 = vmatpush1.msra.mxu0 0.0
    %3186 = vmatprep.subr.mxu0 0.0
    %3187 = vmatpush1.msra.mxu0 0.0
    %3188 = vmatprep.subr.mxu0 0.0
    %3189 = vmatpush1.msra.mxu0 0.0
    %3190 = vmatprep.subr.mxu0 0.0
    %3191 = vmatpush1.msra.mxu0 0.0
    %3192 = vmatprep.subr.mxu0 0.0
    %3193 = vmatpush1.msra.mxu0 0.0
    %3194 = vmatprep.subr.mxu0 0.0
    %3195 = vmatpush1.msra.mxu0 0.0
    %3196 = vmatprep.subr.mxu0 0.0
    %3197 = vmatpush1.msra.mxu0 0.0
    %3198 = vmatprep.subr.mxu0 0.0
    %3199 = vmatpush1.msra.mxu0 0.0
    %3200 = vmatprep.subr.mxu0 0.0
    %3201 = vmatpush1.msra.mxu0 0.0
    %3202 = vmatprep.subr.mxu0 0.0
    %3203 = vmatpush1.msra.mxu0 0.0
    %3204 = vmatprep.subr.mxu0 0.0
    %3205 = vmatpush1.msra.mxu0 0.0
    %3206 = vmatprep.subr.mxu0 0.0
    %3207 = vmatpush1.msra.mxu0 0.0
    %3208 = vmatprep.subr.mxu0 0.0
    %3209 = vmatpush1.msra.mxu0 0.0
    %3210 = vmatprep.subr.mxu0 0.0
    %3211 = vmatpush1.msra.mxu0 0.0
    %3212 = vmatprep.subr.mxu0 0.0
    %3213 = vmatpush1.msra.mxu0 0.0
    %3214 = vmatprep.subr.mxu0 0.0
    %3215 = vmatpush1.msra.mxu0 0.0
    %3216 = vmatprep.subr.mxu0 0.0
    %3217 = vmatpush1.msra.mxu0 0.0
    %3218 = vmatprep.subr.mxu0 0.0
    %3219 = vmatpush1.msra.mxu0 0.0
    %3220 = vmatprep.subr.mxu0 0.0
    %3221 = vmatpush1.msra.mxu0 0.0
    %3222 = vmatprep.subr.mxu0 0.0
    %3223 = vmatpush1.msra.mxu0 0.0
    %3224 = vmatprep.mubr.f32.mxu0 0.0
    %3225 = vmatmul.mubr.f32.gmra.mrb[0].mxu0 %v3016
    %v3226 = vpop.f32.mrb[0].mxu0
    %v3227 = vadd.f32 0.0, %v3226
    %v3228 = vpop.f32.mrb[0].mxu0
    %v3229 = vadd.f32 0.0, %v3228
    %3230 = vdwg.mxu0
    %3231 = vmatprep.subr.mxu0 %v2988
    %3232 = vmatpush1.msra.mxu0 %v2987
    %3233 = vmatprep.subr.mxu0 %v2996
    %3234 = vmatpush1.msra.mxu0 %v2995
    %3235 = vmatprep.subr.mxu0 %v3004
    %3236 = vmatpush1.msra.mxu0 %v3003
    %3237 = vmatprep.subr.mxu0 %v3012
    %3238 = vmatpush1.msra.mxu0 %v3011
    %3239 = vmatprep.subr.mxu0 0.0
    %3240 = vmatpush1.msra.mxu0 0.0
    %3241 = vmatprep.subr.mxu0 0.0
    %3242 = vmatpush1.msra.mxu0 0.0
    %3243 = vmatprep.subr.mxu0 0.0
    %3244 = vmatpush1.msra.mxu0 0.0
    %3245 = vmatprep.subr.mxu0 0.0
    %3246 = vmatpush1.msra.mxu0 0.0
    %3247 = vmatprep.subr.mxu0 0.0
    %3248 = vmatpush1.msra.mxu0 0.0
    %3249 = vmatprep.subr.mxu0 0.0
    %3250 = vmatpush1.msra.mxu0 0.0
    %3251 = vmatprep.subr.mxu0 0.0
    %3252 = vmatpush1.msra.mxu0 0.0
    %3253 = vmatprep.subr.mxu0 0.0
    %3254 = vmatpush1.msra.mxu0 0.0
    %3255 = vmatprep.subr.mxu0 0.0
    %3256 = vmatpush1.msra.mxu0 0.0
    %3257 = vmatprep.subr.mxu0 0.0
    %3258 = vmatpush1.msra.mxu0 0.0
    %3259 = vmatprep.subr.mxu0 0.0
    %3260 = vmatpush1.msra.mxu0 0.0
    %3261 = vmatprep.subr.mxu0 0.0
    %3262 = vmatpush1.msra.mxu0 0.0
    %3263 = vmatprep.subr.mxu0 0.0
    %3264 = vmatpush1.msra.mxu0 0.0
    %3265 = vmatprep.subr.mxu0 0.0
    %3266 = vmatpush1.msra.mxu0 0.0
    %3267 = vmatprep.subr.mxu0 0.0
    %3268 = vmatpush1.msra.mxu0 0.0
    %3269 = vmatprep.subr.mxu0 0.0
    %3270 = vmatpush1.msra.mxu0 0.0
    %3271 = vmatprep.subr.mxu0 0.0
    %3272 = vmatpush1.msra.mxu0 0.0
    %3273 = vmatprep.subr.mxu0 0.0
    %3274 = vmatpush1.msra.mxu0 0.0
    %3275 = vmatprep.subr.mxu0 0.0
    %3276 = vmatpush1.msra.mxu0 0.0
    %3277 = vmatprep.subr.mxu0 0.0
    %3278 = vmatpush1.msra.mxu0 0.0
    %3279 = vmatprep.subr.mxu0 0.0
    %3280 = vmatpush1.msra.mxu0 0.0
    %3281 = vmatprep.subr.mxu0 0.0
    %3282 = vmatpush1.msra.mxu0 0.0
    %3283 = vmatprep.subr.mxu0 0.0
    %3284 = vmatpush1.msra.mxu0 0.0
    %3285 = vmatprep.subr.mxu0 0.0
    %3286 = vmatpush1.msra.mxu0 0.0
    %3287 = vmatprep.subr.mxu0 0.0
    %3288 = vmatpush1.msra.mxu0 0.0
    %3289 = vmatprep.subr.mxu0 0.0
    %3290 = vmatpush1.msra.mxu0 0.0
    %3291 = vmatprep.subr.mxu0 0.0
    %3292 = vmatpush1.msra.mxu0 0.0
    %3293 = vmatprep.subr.mxu0 0.0
    %3294 = vmatpush1.msra.mxu0 0.0
    %3295 = vmatprep.mubr.f32.mxu0 0.0
    %3296 = vmatmul.mubr.f32.gmra.mrb[0].mxu0 %v3016
    %v3297 = vpop.f32.mrb[0].mxu0
    %v3298 = vadd.f32 0.0, %v3297
    %v3299 = vpop.f32.mrb[0].mxu0
    %v3300 = vadd.f32 0.0, %v3299
    %3301 = vdwg.mxu0
    %v3302 = vadd.f32 %v2973, %v3085
    %v3303 = vadd.f32 %v2974, %v3087
    %v3304 = vadd.f32 %v2975, %v3156
    %v3305 = vadd.f32 %v2976, %v3158
    %v3306 = vadd.f32 %v2977, %v3227
    %v3307 = vadd.f32 %v2978, %v3229
    %v3308 = vadd.f32 %v2979, %v3298
    %v3309 = vadd.f32 %v2980, %v3300
    %v3310 = vld [vmem:[%s9] sm:$0xff]
    %v3312 = vlaneseq
    %v3313 = vshrl.u32 %v3312, 7
    %v3314 = vsub.s32 0, %v3313
    %v3315 = vrot.slane %v3310, %v3314
    %v3316 = vlaneseq
    %v3317 = vshrl.u32 %v3316, 7
    %v3318 = vsub.s32 1, %v3317
    %v3319 = vrot.slane %v3310, %v3318
    %v3320 = vlaneseq
    %v3321 = vshrl.u32 %v3320, 7
    %v3322 = vsub.s32 2, %v3321
    %v3323 = vrot.slane %v3310, %v3322
    %v3324 = vlaneseq
    %v3325 = vshrl.u32 %v3324, 7
    %v3326 = vsub.s32 3, %v3325
    %v3327 = vrot.slane %v3310, %v3326
    %v3328 = vlaneseq
    %v3329 = vshrl.u32 %v3328, 7
    %v3330 = vsub.s32 4, %v3329
    %v3331 = vrot.slane %v3310, %v3330
    %v3332 = vlaneseq
    %v3333 = vshrl.u32 %v3332, 7
    %v3334 = vsub.s32 5, %v3333
    %v3335 = vrot.slane %v3310, %v3334
    %v3336 = vlaneseq
    %v3337 = vshrl.u32 %v3336, 7
    %v3338 = vsub.s32 6, %v3337
    %v3339 = vrot.slane %v3310, %v3338
    %v3340 = vlaneseq
    %v3341 = vshrl.u32 %v3340, 7
    %v3342 = vsub.s32 7, %v3341
    %v3343 = vrot.slane %v3310, %v3342
    %v3352 = vadd.f32 %v3302, %v3315
    %v3353 = vadd.f32 %v3303, %v3319
    %v3354 = vadd.f32 %v3304, %v3323
    %v3355 = vadd.f32 %v3305, %v3327
    %v3356 = vadd.f32 %v3306, %v3331
    %v3357 = vadd.f32 %v3307, %v3335
    %v3358 = vadd.f32 %v3308, %v3339
    %v3359 = vadd.f32 %v3309, %v3343
    %3360 = vst [vmem:[#allocation7] sm:$0xff] %v3352
    %3361 = vst [vmem:[#allocation7 + $0x8] sm:$0xff] %v3353
    %3362 = vst [vmem:[#allocation7 + $0x10] sm:$0xff] %v3354
    %3363 = vst [vmem:[#allocation7 + $0x18] sm:$0xff] %v3355
    %3364 = vst [vmem:[#allocation7 + $0x20] sm:$0xff] %v3356
    %3365 = vst [vmem:[#allocation7 + $0x28] sm:$0xff] %v3357
    %3366 = vst [vmem:[#allocation7 + $0x30] sm:$0xff] %v3358
    %3367 = vst [vmem:[#allocation7 + $0x38] sm:$0xff] %v3359
    // Predicated region
    $region50: #{tpu_custom_call.1} parent=1 // pred_check
      _
    $region51: #{tpu_custom_call.1} parent=1 // pred_check_branch
      %3369 = sbr.rel (0) target = $region53
    $region52: #{tpu_custom_call.1} parent=1 // pred_region
      %s3371 = ssub.s32 1024, 1024
      %3372 = vsyncadd [#allocation4], %s3371
      %s3374 = sshll.u32 [#allocation7], 4
      %s3375 = int_to_ptr.vmem [resolvable:$true] %s3374
      %3377 = dma.vmem_to_hbm [thread:$0]  %s3375, 1024, %s10, [#allocation4]
    $region53: #{tpu_custom_call.1} parent=1 // pred_fallthru
      _
    // Predicated region
    $region54: #{tpu_custom_call.1} parent=1 // pred_check
      _
    $region55: #{tpu_custom_call.1} parent=1 // pred_check_branch
      %3379 = sbr.rel (0) target = $region57
    $region56: #{tpu_custom_call.1} parent=1 // pred_region
      %3380 = dma.done [#allocation4], 1024
    $region57: #{tpu_custom_call.1} parent=1 // pred_fallthru
      _
    %3381 = vsyncpa [#allocation3], 1
    %3382 = vsyncpa [#allocation6], 1
    %3383 = vsyncpa [#allocation4], 1

</llo_original>
